<compile_context>
chip_gen: v6e
topology: v6e:2x2x1
jax: 0.10.0
libtpu: 0.0.40
codegen_flags: <defaults>
</compile_context>

<pallas_src>
import numpy as np
import jax
import jax.numpy as jnp
from jax.experimental import pallas as pl
from jax.experimental.pallas import tpu as pltpu

# ---------------- static configuration (small demo shapes) ----------------
B, H, W = 2, 8, 8
DIM = 32                 # dim
HEADS = 4                # num_blocks -> num_heads of Nat2D
KS = 3                   # kernel_size
MLP_RATIO = 4.0
HD = DIM // HEADS        # head dim
K2 = KS * KS
HW = H * W
HIDDEN = int(DIM * MLP_RATIO)
SCALE = float(HD) ** -0.5        # qk_scale=None -> head_dim ** -0.5
_SQRT_2_OVER_PI = 0.7978845608028654

# head segment-sum (DIM, HEADS) and expand (HEADS, DIM) matrices: structural
# constants (not parameters) used to reduce / broadcast within head groups.
_seg_np = np.zeros((DIM, HEADS), np.float32)
_seg_np[np.arange(DIM), np.arange(DIM) // HD] = 1.0
SEG_MAT = jnp.asarray(_seg_np)           # sum channels of each head -> per-head scalar
EXP_MAT = jnp.asarray(_seg_np.T)         # broadcast per-head scalar across its channels


# ---------------- neighborhood gather matrix + rpb expansion ----------------
def _starts(L, k):
    i = np.arange(L)
    return np.clip(i - k // 2, 0, L - k)


def build_gather_and_bias(rpb_np):
    """G2d[slot*HW + q, p] = 1 iff pixel p is the `slot`-th neighbor of query q
    (window clamped at the borders, exactly like natten).
    bias[slot, q, h] = rpb[h, rel_i + KS-1, rel_j + KS-1]."""
    si = _starts(H, KS)
    sj = _starts(W, KS)
    G = np.zeros((K2, HW, HW), np.float32)
    bias = np.zeros((K2, HW, HEADS), np.float32)
    for i in range(H):
        for j in range(W):
            n = i * W + j
            for a in range(KS):
                for b in range(KS):
                    pi, pj = si[i] + a, sj[j] + b
                    m = pi * W + pj
                    slot = a * KS + b
                    G[slot, n, m] = 1.0
                    bias[slot, n, :] = rpb_np[:, pi - i + KS - 1, pj - j + KS - 1]
    return jnp.asarray(G.reshape(K2 * HW, HW)), jnp.asarray(bias)


# ---------------- in-kernel tanh-GELU (EUP tanh, within 2e-3 of exact) ------
def _gelu_tanh(x):
    return 0.5 * x * (1.0 + jnp.tanh(_SQRT_2_OVER_PI * (x + 0.044715 * x * x * x)))


# ---------------- Pallas kernel ----------------
def natblock_kernel(x_ref, wqkv_ref, bqkv_ref, g2d_ref, bias_ref, seg_ref, exp_ref,
                    wproj_ref, bproj_ref, wfc1_ref, bfc1_ref, wfc2_ref, bfc2_ref,
                    o_ref):
    x = x_ref[0]                                                 # (HW, DIM)

    # norm1 == Identity (norm=None). qkv projection; the 1/sqrt(HD) query
    # scale is already folded into the Q columns of wqkv/bqkv (host side).
    qkv = jnp.dot(x, wqkv_ref[...], preferred_element_type=jnp.float32) + bqkv_ref[...]
    q = qkv[:, :DIM]
    k = qkv[:, DIM:2 * DIM]
    v = qkv[:, 2 * DIM:]

    # Batched one-hot neighborhood gather: two lane-dense matmuls.
    g2d = g2d_ref[...]                                           # (K2*HW, HW)
    k_nb = jnp.dot(g2d, k, preferred_element_type=jnp.float32).reshape(K2, HW, DIM)
    v_nb = jnp.dot(g2d, v, preferred_element_type=jnp.float32).reshape(K2, HW, DIM)

    # scores[a, n, h] = <q[n, head h], k_nb[a, n, head h]>  via a segment-sum matmul.
    prod = q[None, :, :] * k_nb                                  # (K2, HW, DIM)
    scores = jnp.dot(prod.reshape(K2 * HW, DIM), seg_ref[...],
                     preferred_element_type=jnp.float32).reshape(K2, HW, HEADS)
    scores = scores + bias_ref[...]                              # relative positional bias

    # softmax over the K2 neighborhood slots (leading axis).
    m = jnp.max(scores, axis=0, keepdims=True)
    e = jnp.exp(scores - m)
    denom = jnp.sum(e, axis=0, keepdims=True)
    p = e * pl.reciprocal(denom, approx=True)                    # (K2, HW, HEADS)

    # Expand per-head probabilities across that head's channels and contract
    # against the gathered-V slab: out[n, c] = sum_a p[a, n, head(c)] * v_nb[a, n, c].
    p_full = jnp.dot(p.reshape(K2 * HW, HEADS), exp_ref[...],
                     preferred_element_type=jnp.float32).reshape(K2, HW, DIM)
    oh = jnp.sum(p_full * v_nb, axis=0)                          # (HW, DIM)

    # Single fused output projection.
    attn_out = jnp.dot(oh, wproj_ref[...], preferred_element_type=jnp.float32) + bproj_ref[...]
    x1 = x + attn_out                                            # shortcut + attn(norm1(x))

    # norm2 == Identity. MLP with tanh-GELU, dropout p=0 is a no-op.
    hmid = jnp.dot(x1, wfc1_ref[...], preferred_element_type=jnp.float32) + bfc1_ref[...]
    hmid = _gelu_tanh(hmid)
    y = jnp.dot(hmid, wfc2_ref[...], preferred_element_type=jnp.float32) + bfc2_ref[...]

    o_ref[0] = x1 + y


# ---------------- wrapper ----------------
def natblock2d_forward(x, params):
    wqkv, bqkv, g2d, bias, wproj, bproj, wfc1, bfc1, wfc2, bfc2 = params
    xf = x.reshape(B, HW, DIM)

    # Fold the query scale into the qkv projection (free, host/XLA side).
    wqkv_s = wqkv.at[:, :DIM].multiply(SCALE)
    bqkv_s = bqkv.at[:, :DIM].multiply(SCALE)

    def full_spec(a):
        nd = a.ndim
        return pl.BlockSpec(a.shape, lambda b, _nd=nd: (0,) * _nd)

    out = pl.pallas_call(
        natblock_kernel,
        out_shape=jax.ShapeDtypeStruct((B, HW, DIM), jnp.float32),
        grid=(B,),
        in_specs=[pl.BlockSpec((1, HW, DIM), lambda b: (b, 0, 0)),
                  full_spec(wqkv_s), full_spec(bqkv_s),
                  full_spec(g2d), full_spec(bias),
                  full_spec(SEG_MAT), full_spec(EXP_MAT),
                  full_spec(wproj), full_spec(bproj),
                  full_spec(wfc1), full_spec(bfc1),
                  full_spec(wfc2), full_spec(bfc2)],
        out_specs=pl.BlockSpec((1, HW, DIM), lambda b: (b, 0, 0)),
        compiler_params=pltpu.CompilerParams(dimension_semantics=("parallel",)),
    )(xf, wqkv_s, bqkv_s, g2d, bias, SEG_MAT, EXP_MAT,
      wproj, bproj, wfc1, bfc1, wfc2, bfc2)
    return out.reshape(B, H, W, DIM)


# ---------------- deterministic parameter init (mirrors the module __init__) ----------------
def init_params(key):
    ks = jax.random.split(key, 5)

    def xavier(k, fan_out, fan_in):
        bound = float(np.sqrt(6.0 / (fan_in + fan_out)))
        w = jax.random.uniform(k, (fan_out, fan_in), jnp.float32, -bound, bound)
        return w.T                                  # stored as (in, out) for x @ W

    wqkv = xavier(ks[0], 3 * DIM, DIM)              # attn.qkv: xavier_uniform
    bqkv = jnp.zeros((1, 3 * DIM), jnp.float32)     # attn.qkv.bias zeroed
    wproj = xavier(ks[1], DIM, DIM)                 # attn.proj: xavier_uniform
    bproj = jnp.zeros((1, DIM), jnp.float32)        # attn.proj.bias zeroed
    wfc1 = xavier(ks[2], HIDDEN, DIM)               # mlp.fc1: xavier_uniform, bias 0
    bfc1 = jnp.zeros((1, HIDDEN), jnp.float32)
    wfc2 = xavier(ks[3], DIM, HIDDEN)               # mlp.fc2: xavier_uniform, bias 0
    bfc2 = jnp.zeros((1, DIM), jnp.float32)
    # relative positional bias table (natten init: trunc_normal std=0.02)
    rpb = 0.02 * jax.random.normal(ks[4], (HEADS, 2 * KS - 1, 2 * KS - 1), jnp.float32)
    g2d, bias = build_gather_and_bias(np.asarray(rpb))
    return wqkv, bqkv, g2d, bias, wproj, bproj, wfc1, bfc1, wfc2, bfc2


# ---------------- pure-JAX reference (for validation) ----------------
def ref_forward(x, params):
    wqkv, bqkv, g2d, bias, wproj, bproj, wfc1, bfc1, wfc2, bfc2 = params
    xf = x.reshape(B, HW, DIM)
    qkv = xf @ wqkv + bqkv
    q = (qkv[..., :DIM] * SCALE).reshape(B, HW, HEADS, HD)
    k = qkv[..., DIM:2 * DIM].reshape(B, HW, HEADS, HD)
    v = qkv[..., 2 * DIM:].reshape(B, HW, HEADS, HD)
    G3 = g2d.reshape(K2, HW, HW)
    k_nb = jnp.einsum('anm,bmhd->bnahd', G3, k)
    v_nb = jnp.einsum('anm,bmhd->bnahd', G3, v)
    scores = jnp.einsum('bnhd,bnahd->bnha', q, k_nb) + bias.transpose(1, 2, 0)[None]
    attn = jax.nn.softmax(scores, axis=-1)
    out = jnp.einsum('bnha,bnahd->bnhd', attn, v_nb).reshape(B, HW, DIM)
    out = out @ wproj + bproj
    x1 = xf + out
    y = jax.nn.gelu(x1 @ wfc1 + bfc1, approximate=False) @ wfc2 + bfc2
    return (x1 + y).reshape(B, H, W, DIM)


if __name__ == "__main__":
    key = jax.random.PRNGKey(0)
    kx, kp = jax.random.split(key)
    x = jax.random.normal(kx, (B, H, W, DIM), jnp.float32)
    params = init_params(kp)

    out = natblock2d_forward(x, params)
    out = jax.block_until_ready(out)

    ref = ref_forward(x, params)
    np.testing.assert_allclose(np.asarray(out), np.asarray(ref), rtol=2e-3, atol=2e-3)
    print("KERNEL_OK")
</pallas_src>

<mosaic_0001>
module attributes {stable_mosaic.version = 11 : i64} {
  func.func @natblock_kernel(%arg0: i32, %arg1: memref<1x64x32xf32, #tpu.memory_space<vmem>>, %arg2: memref<32x96xf32, #tpu.memory_space<vmem>>, %arg3: memref<1x96xf32, #tpu.memory_space<vmem>>, %arg4: memref<576x64xf32, #tpu.memory_space<vmem>>, %arg5: memref<9x64x4xf32, #tpu.memory_space<vmem>>, %arg6: memref<32x4xf32, #tpu.memory_space<vmem>>, %arg7: memref<4x32xf32, #tpu.memory_space<vmem>>, %arg8: memref<32x32xf32, #tpu.memory_space<vmem>>, %arg9: memref<1x32xf32, #tpu.memory_space<vmem>>, %arg10: memref<32x128xf32, #tpu.memory_space<vmem>>, %arg11: memref<1x128xf32, #tpu.memory_space<vmem>>, %arg12: memref<128x32xf32, #tpu.memory_space<vmem>>, %arg13: memref<1x32xf32, #tpu.memory_space<vmem>>, %arg14: memref<1x64x32xf32, #tpu.memory_space<vmem>>) attributes {dimension_semantics = [#tpu.dimension_semantics<parallel>], iteration_bounds = array<i64: 2>, scalar_prefetch = 0 : i64, scratch_operands = 0 : i64, tpu.core_type = #tpu.core_type<tc>, window_params = [{transform_indices = @transform_0, window_bounds = array<i64: 1, 64, 32>}, {pipeline_mode = #tpu.pipeline_mode<synchronous>, transform_indices = @transform_1, window_bounds = array<i64: 32, 96>}, {pipeline_mode = #tpu.pipeline_mode<synchronous>, transform_indices = @transform_2, window_bounds = array<i64: 1, 96>}, {pipeline_mode = #tpu.pipeline_mode<synchronous>, transform_indices = @transform_3, window_bounds = array<i64: 576, 64>}, {pipeline_mode = #tpu.pipeline_mode<synchronous>, transform_indices = @transform_4, window_bounds = array<i64: 9, 64, 4>}, {pipeline_mode = #tpu.pipeline_mode<synchronous>, transform_indices = @transform_5, window_bounds = array<i64: 32, 4>}, {pipeline_mode = #tpu.pipeline_mode<synchronous>, transform_indices = @transform_6, window_bounds = array<i64: 4, 32>}, {pipeline_mode = #tpu.pipeline_mode<synchronous>, transform_indices = @transform_7, window_bounds = array<i64: 32, 32>}, {pipeline_mode = #tpu.pipeline_mode<synchronous>, transform_indices = @transform_8, window_bounds = array<i64: 1, 32>}, {pipeline_mode = #tpu.pipeline_mode<synchronous>, transform_indices = @transform_9, window_bounds = array<i64: 32, 128>}, {pipeline_mode = #tpu.pipeline_mode<synchronous>, transform_indices = @transform_10, window_bounds = array<i64: 1, 128>}, {pipeline_mode = #tpu.pipeline_mode<synchronous>, transform_indices = @transform_11, window_bounds = array<i64: 128, 32>}, {pipeline_mode = #tpu.pipeline_mode<synchronous>, transform_indices = @transform_12, window_bounds = array<i64: 1, 32>}, {transform_indices = @transform_13, window_bounds = array<i64: 1, 64, 32>}]} {
    %c0 = arith.constant 0 : index
    %c0_0 = arith.constant 0 : index
    %c0_1 = arith.constant 0 : index
    %0 = vector.load %arg1[%c0, %c0_0, %c0_1] : memref<1x64x32xf32, #tpu.memory_space<vmem>>, vector<1x64x32xf32>
    %1 = vector.shape_cast %0 : vector<1x64x32xf32> to vector<64x32xf32>
    %c0_2 = arith.constant 0 : index
    %c0_3 = arith.constant 0 : index
    %2 = vector.load %arg2[%c0_2, %c0_3] : memref<32x96xf32, #tpu.memory_space<vmem>>, vector<32x96xf32>
    %cst = arith.constant dense<0.000000e+00> : vector<64x96xf32>
    %3 = tpu.matmul %1, %2, %cst {dimension_numbers = #tpu.dot_dimension_numbers<[1], [0], [0], [1], [0, 0, 1, 1], [], []>} : vector<64x32xf32>, vector<32x96xf32>, vector<64x96xf32> -> vector<64x96xf32>
    %c0_4 = arith.constant 0 : index
    %c0_5 = arith.constant 0 : index
    %4 = vector.load %arg3[%c0_4, %c0_5] : memref<1x96xf32, #tpu.memory_space<vmem>>, vector<1x96xf32>
    %5 = vector.broadcast %4 : vector<1x96xf32> to vector<64x96xf32>
    %6 = arith.addf %3, %5 : vector<64x96xf32>
    %7 = vector.extract_strided_slice %6 {offsets = [0, 0], sizes = [64, 32], strides = [1, 1]} : vector<64x96xf32> to vector<64x32xf32>
    %8 = vector.extract_strided_slice %6 {offsets = [0, 32], sizes = [64, 32], strides = [1, 1]} : vector<64x96xf32> to vector<64x32xf32>
    %9 = vector.extract_strided_slice %6 {offsets = [0, 64], sizes = [64, 32], strides = [1, 1]} : vector<64x96xf32> to vector<64x32xf32>
    %c0_6 = arith.constant 0 : index
    %c0_7 = arith.constant 0 : index
    %10 = vector.load %arg4[%c0_6, %c0_7] : memref<576x64xf32, #tpu.memory_space<vmem>>, vector<576x64xf32>
    %cst_8 = arith.constant dense<0.000000e+00> : vector<576x32xf32>
    %11 = tpu.matmul %10, %8, %cst_8 {dimension_numbers = #tpu.dot_dimension_numbers<[1], [0], [0], [1], [0, 0, 1, 1], [], []>} : vector<576x64xf32>, vector<64x32xf32>, vector<576x32xf32> -> vector<576x32xf32>
    %12 = vector.shape_cast %11 : vector<576x32xf32> to vector<9x64x32xf32>
    %cst_9 = arith.constant dense<0.000000e+00> : vector<576x32xf32>
    %13 = tpu.matmul %10, %9, %cst_9 {dimension_numbers = #tpu.dot_dimension_numbers<[1], [0], [0], [1], [0, 0, 1, 1], [], []>} : vector<576x64xf32>, vector<64x32xf32>, vector<576x32xf32> -> vector<576x32xf32>
    %14 = vector.shape_cast %13 : vector<576x32xf32> to vector<9x64x32xf32>
    %15 = vector.shape_cast %7 : vector<64x32xf32> to vector<1x64x32xf32>
    %16 = vector.broadcast %15 : vector<1x64x32xf32> to vector<9x64x32xf32>
    %17 = arith.mulf %16, %12 : vector<9x64x32xf32>
    %18 = vector.shape_cast %17 : vector<9x64x32xf32> to vector<576x32xf32>
    %c0_10 = arith.constant 0 : index
    %c0_11 = arith.constant 0 : index
    %19 = vector.load %arg6[%c0_10, %c0_11] : memref<32x4xf32, #tpu.memory_space<vmem>>, vector<32x4xf32>
    %cst_12 = arith.constant dense<0.000000e+00> : vector<576x4xf32>
    %20 = tpu.matmul %18, %19, %cst_12 {dimension_numbers = #tpu.dot_dimension_numbers<[1], [0], [0], [1], [0, 0, 1, 1], [], []>} : vector<576x32xf32>, vector<32x4xf32>, vector<576x4xf32> -> vector<576x4xf32>
    %21 = vector.shape_cast %20 : vector<576x4xf32> to vector<9x64x4xf32>
    %c0_13 = arith.constant 0 : index
    %c0_14 = arith.constant 0 : index
    %c0_15 = arith.constant 0 : index
    %22 = vector.load %arg5[%c0_13, %c0_14, %c0_15] : memref<9x64x4xf32, #tpu.memory_space<vmem>>, vector<9x64x4xf32>
    %23 = arith.addf %21, %22 : vector<9x64x4xf32>
    %cst_16 = arith.constant dense<0xFF800000> : vector<64x4xf32>
    %24 = vector.multi_reduction <maximumf>, %23, %cst_16 [0] : vector<9x64x4xf32> to vector<64x4xf32>
    %25 = vector.shape_cast %24 : vector<64x4xf32> to vector<1x64x4xf32>
    %26 = vector.broadcast %25 : vector<1x64x4xf32> to vector<9x64x4xf32>
    %27 = arith.subf %23, %26 : vector<9x64x4xf32>
    %28 = math.exp %27 : vector<9x64x4xf32>
    %cst_17 = arith.constant dense<0.000000e+00> : vector<64x4xf32>
    %29 = vector.multi_reduction <add>, %28, %cst_17 [0] : vector<9x64x4xf32> to vector<64x4xf32>
    %30 = vector.shape_cast %29 : vector<64x4xf32> to vector<1x64x4xf32>
    %31 = tpu.reciprocal %30 {approx = true} : vector<1x64x4xf32> -> vector<1x64x4xf32>
    %32 = vector.broadcast %31 : vector<1x64x4xf32> to vector<9x64x4xf32>
    %33 = arith.mulf %28, %32 : vector<9x64x4xf32>
    %34 = vector.shape_cast %33 : vector<9x64x4xf32> to vector<576x4xf32>
    %c0_18 = arith.constant 0 : index
    %c0_19 = arith.constant 0 : index
    %35 = vector.load %arg7[%c0_18, %c0_19] : memref<4x32xf32, #tpu.memory_space<vmem>>, vector<4x32xf32>
    %cst_20 = arith.constant dense<0.000000e+00> : vector<576x32xf32>
    %36 = tpu.matmul %34, %35, %cst_20 {dimension_numbers = #tpu.dot_dimension_numbers<[1], [0], [0], [1], [0, 0, 1, 1], [], []>} : vector<576x4xf32>, vector<4x32xf32>, vector<576x32xf32> -> vector<576x32xf32>
    %37 = vector.shape_cast %36 : vector<576x32xf32> to vector<9x64x32xf32>
    %38 = arith.mulf %37, %14 : vector<9x64x32xf32>
    %cst_21 = arith.constant dense<0.000000e+00> : vector<64x32xf32>
    %39 = vector.multi_reduction <add>, %38, %cst_21 [0] : vector<9x64x32xf32> to vector<64x32xf32>
    %c0_22 = arith.constant 0 : index
    %c0_23 = arith.constant 0 : index
    %40 = vector.load %arg8[%c0_22, %c0_23] : memref<32x32xf32, #tpu.memory_space<vmem>>, vector<32x32xf32>
    %cst_24 = arith.constant dense<0.000000e+00> : vector<64x32xf32>
    %41 = tpu.matmul %39, %40, %cst_24 {dimension_numbers = #tpu.dot_dimension_numbers<[1], [0], [0], [1], [0, 0, 1, 1], [], []>} : vector<64x32xf32>, vector<32x32xf32>, vector<64x32xf32> -> vector<64x32xf32>
    %c0_25 = arith.constant 0 : index
    %c0_26 = arith.constant 0 : index
    %42 = vector.load %arg9[%c0_25, %c0_26] : memref<1x32xf32, #tpu.memory_space<vmem>>, vector<1x32xf32>
    %43 = vector.broadcast %42 : vector<1x32xf32> to vector<64x32xf32>
    %44 = arith.addf %41, %43 : vector<64x32xf32>
    %45 = arith.addf %1, %44 : vector<64x32xf32>
    %c0_27 = arith.constant 0 : index
    %c0_28 = arith.constant 0 : index
    %46 = vector.load %arg10[%c0_27, %c0_28] : memref<32x128xf32, #tpu.memory_space<vmem>>, vector<32x128xf32>
    %cst_29 = arith.constant dense<0.000000e+00> : vector<64x128xf32>
    %47 = tpu.matmul %45, %46, %cst_29 {dimension_numbers = #tpu.dot_dimension_numbers<[1], [0], [0], [1], [0, 0, 1, 1], [], []>} : vector<64x32xf32>, vector<32x128xf32>, vector<64x128xf32> -> vector<64x128xf32>
    %c0_30 = arith.constant 0 : index
    %c0_31 = arith.constant 0 : index
    %48 = vector.load %arg11[%c0_30, %c0_31] : memref<1x128xf32, #tpu.memory_space<vmem>>, vector<1x128xf32>
    %49 = vector.broadcast %48 : vector<1x128xf32> to vector<64x128xf32>
    %50 = arith.addf %47, %49 : vector<64x128xf32>
    %cst_32 = arith.constant 5.000000e-01 : f32
    %51 = vector.broadcast %cst_32 : f32 to vector<64x128xf32>
    %52 = arith.mulf %51, %50 : vector<64x128xf32>
    %cst_33 = arith.constant 4.471500e-02 : f32
    %53 = vector.broadcast %cst_33 : f32 to vector<64x128xf32>
    %54 = arith.mulf %53, %50 : vector<64x128xf32>
    %55 = arith.mulf %54, %50 : vector<64x128xf32>
    %56 = arith.mulf %55, %50 : vector<64x128xf32>
    %57 = arith.addf %50, %56 : vector<64x128xf32>
    %cst_34 = arith.constant 0.797884583 : f32
    %58 = vector.broadcast %cst_34 : f32 to vector<64x128xf32>
    %59 = arith.mulf %58, %57 : vector<64x128xf32>
    %60 = math.tanh %59 : vector<64x128xf32>
    %cst_35 = arith.constant 1.000000e+00 : f32
    %61 = vector.broadcast %cst_35 : f32 to vector<64x128xf32>
    %62 = arith.addf %61, %60 : vector<64x128xf32>
    %63 = arith.mulf %52, %62 : vector<64x128xf32>
    %c0_36 = arith.constant 0 : index
    %c0_37 = arith.constant 0 : index
    %64 = vector.load %arg12[%c0_36, %c0_37] : memref<128x32xf32, #tpu.memory_space<vmem>>, vector<128x32xf32>
    %cst_38 = arith.constant dense<0.000000e+00> : vector<64x32xf32>
    %65 = tpu.matmul %63, %64, %cst_38 {dimension_numbers = #tpu.dot_dimension_numbers<[1], [0], [0], [1], [0, 0, 1, 1], [], []>} : vector<64x128xf32>, vector<128x32xf32>, vector<64x32xf32> -> vector<64x32xf32>
    %c0_39 = arith.constant 0 : index
    %c0_40 = arith.constant 0 : index
    %66 = vector.load %arg13[%c0_39, %c0_40] : memref<1x32xf32, #tpu.memory_space<vmem>>, vector<1x32xf32>
    %67 = vector.broadcast %66 : vector<1x32xf32> to vector<64x32xf32>
    %68 = arith.addf %65, %67 : vector<64x32xf32>
    %69 = arith.addf %45, %68 : vector<64x32xf32>
    %c0_41 = arith.constant 0 : index
    %c0_42 = arith.constant 0 : index
    %c0_43 = arith.constant 0 : index
    %70 = vector.load %arg14[%c0_41, %c0_42, %c0_43] : memref<1x64x32xf32, #tpu.memory_space<vmem>>, vector<1x64x32xf32>
    %71 = vector.shape_cast %70 : vector<1x64x32xf32> to vector<64x32xf32>
    %72 = vector.shape_cast %69 : vector<64x32xf32> to vector<1x64x32xf32>
    tpu.vector_store %arg14[%c0_41, %c0_42, %c0_43], %72 {strides = array<i32>} : memref<1x64x32xf32, #tpu.memory_space<vmem>>, vector<1x64x32xf32>,
    return
  }
  func.func @transform_0(%arg0: i32) -> (i32, i32, i32) {
    %c0_i32 = arith.constant 0 : i32
    %c0_i32_0 = arith.constant 0 : i32
    %c0_i32_1 = arith.constant 0 : i32
    return %arg0, %c0_i32, %c0_i32_0 : i32, i32, i32
  }
  func.func @transform_1(%arg0: i32) -> (i32, i32) {
    %c0_i32 = arith.constant 0 : i32
    %c0_i32_0 = arith.constant 0 : i32
    %c0_i32_1 = arith.constant 0 : i32
    return %c0_i32, %c0_i32_0 : i32, i32
  }
  func.func @transform_2(%arg0: i32) -> (i32, i32) {
    %c0_i32 = arith.constant 0 : i32
    %c0_i32_0 = arith.constant 0 : i32
    %c0_i32_1 = arith.constant 0 : i32
    return %c0_i32, %c0_i32_0 : i32, i32
  }
  func.func @transform_3(%arg0: i32) -> (i32, i32) {
    %c0_i32 = arith.constant 0 : i32
    %c0_i32_0 = arith.constant 0 : i32
    %c0_i32_1 = arith.constant 0 : i32
    return %c0_i32, %c0_i32_0 : i32, i32
  }
  func.func @transform_4(%arg0: i32) -> (i32, i32, i32) {
    %c0_i32 = arith.constant 0 : i32
    %c0_i32_0 = arith.constant 0 : i32
    %c0_i32_1 = arith.constant 0 : i32
    %c0_i32_2 = arith.constant 0 : i32
    return %c0_i32, %c0_i32_0, %c0_i32_1 : i32, i32, i32
  }
  func.func @transform_5(%arg0: i32) -> (i32, i32) {
    %c0_i32 = arith.constant 0 : i32
    %c0_i32_0 = arith.constant 0 : i32
    %c0_i32_1 = arith.constant 0 : i32
    return %c0_i32, %c0_i32_0 : i32, i32
  }
  func.func @transform_6(%arg0: i32) -> (i32, i32) {
    %c0_i32 = arith.constant 0 : i32
    %c0_i32_0 = arith.constant 0 : i32
    %c0_i32_1 = arith.constant 0 : i32
    return %c0_i32, %c0_i32_0 : i32, i32
  }
  func.func @transform_7(%arg0: i32) -> (i32, i32) {
    %c0_i32 = arith.constant 0 : i32
    %c0_i32_0 = arith.constant 0 : i32
    %c0_i32_1 = arith.constant 0 : i32
    return %c0_i32, %c0_i32_0 : i32, i32
  }
  func.func @transform_8(%arg0: i32) -> (i32, i32) {
    %c0_i32 = arith.constant 0 : i32
    %c0_i32_0 = arith.constant 0 : i32
    %c0_i32_1 = arith.constant 0 : i32
    return %c0_i32, %c0_i32_0 : i32, i32
  }
  func.func @transform_9(%arg0: i32) -> (i32, i32) {
    %c0_i32 = arith.constant 0 : i32
    %c0_i32_0 = arith.constant 0 : i32
    %c0_i32_1 = arith.constant 0 : i32
    return %c0_i32, %c0_i32_0 : i32, i32
  }
  func.func @transform_10(%arg0: i32) -> (i32, i32) {
    %c0_i32 = arith.constant 0 : i32
    %c0_i32_0 = arith.constant 0 : i32
    %c0_i32_1 = arith.constant 0 : i32
    return %c0_i32, %c0_i32_0 : i32, i32
  }
  func.func @transform_11(%arg0: i32) -> (i32, i32) {
    %c0_i32 = arith.constant 0 : i32
    %c0_i32_0 = arith.constant 0 : i32
    %c0_i32_1 = arith.constant 0 : i32
    return %c0_i32, %c0_i32_0 : i32, i32
  }
  func.func @transform_12(%arg0: i32) -> (i32, i32) {
    %c0_i32 = arith.constant 0 : i32
    %c0_i32_0 = arith.constant 0 : i32
    %c0_i32_1 = arith.constant 0 : i32
    return %c0_i32, %c0_i32_0 : i32, i32
  }
  func.func @transform_13(%arg0: i32) -> (i32, i32, i32) {
    %c0_i32 = arith.constant 0 : i32
    %c0_i32_0 = arith.constant 0 : i32
    %c0_i32_1 = arith.constant 0 : i32
    return %arg0, %c0_i32, %c0_i32_0 : i32, i32, i32
  }
}

</mosaic_0001>

<llo_original>
// kernel: tpu_custom_call.1
$region0: #{tpu_custom_call.1}
  #allocation0 [shape = 'u32[]', space=smem, size = 0x4, offset = 0x4, fixed_abs, tag = 'smem constant byte address 0x4 - core index']
  #allocation1 [shape = 'u32[144,128]{1,0:T(1,128)}', space=vmem, size = 0x12000, scoped, tag = 'internal scratch']
  %s0 = inlined_call_operand.vmem [shape: f32[2,64,32], index: 0, kind: input, shape index: {}]
  %s1 = inlined_call_operand.vmem [shape: f32[32,96], index: 1, kind: input, shape index: {}]
  %s2 = inlined_call_operand.vmem [shape: f32[1,96], index: 2, kind: input, shape index: {}]
  %s3 = inlined_call_operand.vmem [shape: f32[576,64], index: 3, kind: input, shape index: {}]
  %s4 = inlined_call_operand.vmem [shape: f32[9,64,4], index: 4, kind: input, shape index: {}]
  %s5 = inlined_call_operand.vmem [shape: f32[32,4], index: 5, kind: input, shape index: {}]
  %s6 = inlined_call_operand.vmem [shape: f32[4,32], index: 6, kind: input, shape index: {}]
  %s7 = inlined_call_operand.vmem [shape: f32[32,32], index: 7, kind: input, shape index: {}]
  %s8 = inlined_call_operand.vmem [shape: f32[1,32], index: 8, kind: input, shape index: {}]
  %s9 = inlined_call_operand.vmem [shape: f32[32,128], index: 9, kind: input, shape index: {}]
  %s10 = inlined_call_operand.vmem [shape: f32[1,128], index: 10, kind: input, shape index: {}]
  %s11 = inlined_call_operand.vmem [shape: f32[128,32], index: 11, kind: input, shape index: {}]
  %s12 = inlined_call_operand.vmem [shape: f32[1,32], index: 12, kind: input, shape index: {}]
  %s13 = inlined_call_operand.vmem [shape: f32[2,64,32], index: 13, kind: output, shape index: {}]
  %s14 = sld [smem:[#allocation0]]
  $region85: #{tpu_custom_call.1} parent=0
    _
  %s16 = ssub.s32 1, %s14
  %s17 = scalar_select 0, %s16, %s14
  loop: start=0, step=1, limit=4
  $region2: #{tpu_custom_call.1} parent=0 // loop_pre_header
    _
  $region3: #{tpu_custom_call.1} parent=0 // loop_header
    %s19 = sphi 0, %s23
    %p20 = scmp.ge.s32.totalorder %s19, 4
    %s29 = sphi 0, %s31
    %s32 = sphi 0, %s29
    %s33 = sphi 0, %s32
    %s49 = sphi 0, %s33
    %s53 = sphi 0, %s53
    %s55 = sphi 0, %s53
    %s56 = sphi 0, %s55
    %s70 = sphi 0, %s56
    %s74 = sphi 0, %s74
    %s76 = sphi 0, %s74
    %s77 = sphi 0, %s76
    %s91 = sphi 0, %s77
    %s95 = sphi 0, %s95
    %s97 = sphi 0, %s95
    %s98 = sphi 0, %s97
    %s112 = sphi 0, %s98
    %s116 = sphi 0, %s116
    %s118 = sphi 0, %s116
    %s119 = sphi 0, %s118
    %s133 = sphi 0, %s119
    %s137 = sphi 0, %s137
    %s139 = sphi 0, %s137
    %s140 = sphi 0, %s139
    %s154 = sphi 0, %s140
    %s158 = sphi 0, %s158
    %s160 = sphi 0, %s158
    %s161 = sphi 0, %s160
    %s175 = sphi 0, %s161
    %s179 = sphi 0, %s179
    %s181 = sphi 0, %s179
    %s182 = sphi 0, %s181
    %s196 = sphi 0, %s182
    %s200 = sphi 0, %s200
    %s202 = sphi 0, %s200
    %s203 = sphi 0, %s202
    %s217 = sphi 0, %s203
    %s221 = sphi 0, %s221
    %s223 = sphi 0, %s221
    %s224 = sphi 0, %s223
    %s238 = sphi 0, %s224
    %s242 = sphi 0, %s242
    %s244 = sphi 0, %s242
    %s245 = sphi 0, %s244
    %s259 = sphi 0, %s245
    %s263 = sphi 0, %s263
    %s265 = sphi 0, %s263
    %s266 = sphi 0, %s265
    %s280 = sphi 0, %s266
    %s284 = sphi 0, %s284
    %s286 = sphi 0, %s284
    %s287 = sphi 0, %s286
    %s301 = sphi 0, %s287
    %s307 = sphi 0, %s309
    %s310 = sphi 0, %s307
    %s311 = sphi 0, %s310
    %s327 = sphi 0, %s311
  $region4: #{tpu_custom_call.1} parent=0 // loop_header_branch
    %22 = sbr.rel (%p20) target = $region8
  $region5: #{tpu_custom_call.1} parent=0 // loop_body
    %s24 = ssub.s32 %s19, 1
    %s25 = ssub.s32 %s19, 2
    %s26 = sadd.s32 %s19, 1
    %s27 = ssub.s32 %s19, %s26
    %p28 = scmp.eq.s32.totalorder %s27, 0
    %s30 = sadd.s32 %s29, 1
    %s31 = scalar_select %p28, %s29, %s30
    %p34 = pneg %p28
    %p35 = scmp.eq.s32.totalorder %s19, 1
    %p36 = por %p34, %p35
    %p37 = scmp.ne.s32.totalorder %s29, %s32
    %p38 = scmp.eq.s32.totalorder %s19, 0
    %p39 = por %p37, %p38
    %p40 = scmp.ne.s32.totalorder %s29, %s32
    %p41 = scmp.eq.s32.totalorder %s24, 1
    %p42 = por %p40, %p41
    %p43 = scmp.ne.s32.totalorder %s32, %s33
    %p44 = scmp.eq.s32.totalorder %s24, 0
    %p45 = por %p43, %p44
    %p46 = scmp.ne.s32.totalorder %s32, %s33
    %p47 = scmp.eq.s32.totalorder %s25, 1
    %p48 = por %p46, %p47
    %p50 = scmp.ne.s32.totalorder %s33, %s49
    %p51 = scmp.eq.s32.totalorder %s25, 0
    %p52 = por %p50, %p51
    %s54 = sadd.s32 %s53, 1
    %p57 = scmp.eq.s32.totalorder %s19, 1
    %p58 = scmp.ne.s32.totalorder %s53, %s55
    %p59 = scmp.eq.s32.totalorder %s19, 0
    %p60 = por %p58, %p59
    %p61 = scmp.ne.s32.totalorder %s53, %s55
    %p62 = scmp.eq.s32.totalorder %s24, 1
    %p63 = por %p61, %p62
    %p64 = scmp.ne.s32.totalorder %s55, %s56
    %p65 = scmp.eq.s32.totalorder %s24, 0
    %p66 = por %p64, %p65
    %p67 = scmp.ne.s32.totalorder %s55, %s56
    %p68 = scmp.eq.s32.totalorder %s25, 1
    %p69 = por %p67, %p68
    %p71 = scmp.ne.s32.totalorder %s56, %s70
    %p72 = scmp.eq.s32.totalorder %s25, 0
    %p73 = por %p71, %p72
    %s75 = sadd.s32 %s74, 1
    %p78 = scmp.eq.s32.totalorder %s19, 1
    %p79 = scmp.ne.s32.totalorder %s74, %s76
    %p80 = scmp.eq.s32.totalorder %s19, 0
    %p81 = por %p79, %p80
    %p82 = scmp.ne.s32.totalorder %s74, %s76
    %p83 = scmp.eq.s32.totalorder %s24, 1
    %p84 = por %p82, %p83
    %p85 = scmp.ne.s32.totalorder %s76, %s77
    %p86 = scmp.eq.s32.totalorder %s24, 0
    %p87 = por %p85, %p86
    %p88 = scmp.ne.s32.totalorder %s76, %s77
    %p89 = scmp.eq.s32.totalorder %s25, 1
    %p90 = por %p88, %p89
    %p92 = scmp.ne.s32.totalorder %s77, %s91
    %p93 = scmp.eq.s32.totalorder %s25, 0
    %p94 = por %p92, %p93
    %s96 = sadd.s32 %s95, 1
    %p99 = scmp.eq.s32.totalorder %s19, 1
    %p100 = scmp.ne.s32.totalorder %s95, %s97
    %p101 = scmp.eq.s32.totalorder %s19, 0
    %p102 = por %p100, %p101
    %p103 = scmp.ne.s32.totalorder %s95, %s97
    %p104 = scmp.eq.s32.totalorder %s24, 1
    %p105 = por %p103, %p104
    %p106 = scmp.ne.s32.totalorder %s97, %s98
    %p107 = scmp.eq.s32.totalorder %s24, 0
    %p108 = por %p106, %p107
    %p109 = scmp.ne.s32.totalorder %s97, %s98
    %p110 = scmp.eq.s32.totalorder %s25, 1
    %p111 = por %p109, %p110
    %p113 = scmp.ne.s32.totalorder %s98, %s112
    %p114 = scmp.eq.s32.totalorder %s25, 0
    %p115 = por %p113, %p114
    %s117 = sadd.s32 %s116, 1
    %p120 = scmp.eq.s32.totalorder %s19, 1
    %p121 = scmp.ne.s32.totalorder %s116, %s118
    %p122 = scmp.eq.s32.totalorder %s19, 0
    %p123 = por %p121, %p122
    %p124 = scmp.ne.s32.totalorder %s116, %s118
    %p125 = scmp.eq.s32.totalorder %s24, 1
    %p126 = por %p124, %p125
    %p127 = scmp.ne.s32.totalorder %s118, %s119
    %p128 = scmp.eq.s32.totalorder %s24, 0
    %p129 = por %p127, %p128
    %p130 = scmp.ne.s32.totalorder %s118, %s119
    %p131 = scmp.eq.s32.totalorder %s25, 1
    %p132 = por %p130, %p131
    %p134 = scmp.ne.s32.totalorder %s119, %s133
    %p135 = scmp.eq.s32.totalorder %s25, 0
    %p136 = por %p134, %p135
    %s138 = sadd.s32 %s137, 1
    %p141 = scmp.eq.s32.totalorder %s19, 1
    %p142 = scmp.ne.s32.totalorder %s137, %s139
    %p143 = scmp.eq.s32.totalorder %s19, 0
    %p144 = por %p142, %p143
    %p145 = scmp.ne.s32.totalorder %s137, %s139
    %p146 = scmp.eq.s32.totalorder %s24, 1
    %p147 = por %p145, %p146
    %p148 = scmp.ne.s32.totalorder %s139, %s140
    %p149 = scmp.eq.s32.totalorder %s24, 0
    %p150 = por %p148, %p149
    %p151 = scmp.ne.s32.totalorder %s139, %s140
    %p152 = scmp.eq.s32.totalorder %s25, 1
    %p153 = por %p151, %p152
    %p155 = scmp.ne.s32.totalorder %s140, %s154
    %p156 = scmp.eq.s32.totalorder %s25, 0
    %p157 = por %p155, %p156
    %s159 = sadd.s32 %s158, 1
    %p162 = scmp.eq.s32.totalorder %s19, 1
    %p163 = scmp.ne.s32.totalorder %s158, %s160
    %p164 = scmp.eq.s32.totalorder %s19, 0
    %p165 = por %p163, %p164
    %p166 = scmp.ne.s32.totalorder %s158, %s160
    %p167 = scmp.eq.s32.totalorder %s24, 1
    %p168 = por %p166, %p167
    %p169 = scmp.ne.s32.totalorder %s160, %s161
    %p170 = scmp.eq.s32.totalorder %s24, 0
    %p171 = por %p169, %p170
    %p172 = scmp.ne.s32.totalorder %s160, %s161
    %p173 = scmp.eq.s32.totalorder %s25, 1
    %p174 = por %p172, %p173
    %p176 = scmp.ne.s32.totalorder %s161, %s175
    %p177 = scmp.eq.s32.totalorder %s25, 0
    %p178 = por %p176, %p177
    %s180 = sadd.s32 %s179, 1
    %p183 = scmp.eq.s32.totalorder %s19, 1
    %p184 = scmp.ne.s32.totalorder %s179, %s181
    %p185 = scmp.eq.s32.totalorder %s19, 0
    %p186 = por %p184, %p185
    %p187 = scmp.ne.s32.totalorder %s179, %s181
    %p188 = scmp.eq.s32.totalorder %s24, 1
    %p189 = por %p187, %p188
    %p190 = scmp.ne.s32.totalorder %s181, %s182
    %p191 = scmp.eq.s32.totalorder %s24, 0
    %p192 = por %p190, %p191
    %p193 = scmp.ne.s32.totalorder %s181, %s182
    %p194 = scmp.eq.s32.totalorder %s25, 1
    %p195 = por %p193, %p194
    %p197 = scmp.ne.s32.totalorder %s182, %s196
    %p198 = scmp.eq.s32.totalorder %s25, 0
    %p199 = por %p197, %p198
    %s201 = sadd.s32 %s200, 1
    %p204 = scmp.eq.s32.totalorder %s19, 1
    %p205 = scmp.ne.s32.totalorder %s200, %s202
    %p206 = scmp.eq.s32.totalorder %s19, 0
    %p207 = por %p205, %p206
    %p208 = scmp.ne.s32.totalorder %s200, %s202
    %p209 = scmp.eq.s32.totalorder %s24, 1
    %p210 = por %p208, %p209
    %p211 = scmp.ne.s32.totalorder %s202, %s203
    %p212 = scmp.eq.s32.totalorder %s24, 0
    %p213 = por %p211, %p212
    %p214 = scmp.ne.s32.totalorder %s202, %s203
    %p215 = scmp.eq.s32.totalorder %s25, 1
    %p216 = por %p214, %p215
    %p218 = scmp.ne.s32.totalorder %s203, %s217
    %p219 = scmp.eq.s32.totalorder %s25, 0
    %p220 = por %p218, %p219
    %s222 = sadd.s32 %s221, 1
    %p225 = scmp.eq.s32.totalorder %s19, 1
    %p226 = scmp.ne.s32.totalorder %s221, %s223
    %p227 = scmp.eq.s32.totalorder %s19, 0
    %p228 = por %p226, %p227
    %p229 = scmp.ne.s32.totalorder %s221, %s223
    %p230 = scmp.eq.s32.totalorder %s24, 1
    %p231 = por %p229, %p230
    %p232 = scmp.ne.s32.totalorder %s223, %s224
    %p233 = scmp.eq.s32.totalorder %s24, 0
    %p234 = por %p232, %p233
    %p235 = scmp.ne.s32.totalorder %s223, %s224
    %p236 = scmp.eq.s32.totalorder %s25, 1
    %p237 = por %p235, %p236
    %p239 = scmp.ne.s32.totalorder %s224, %s238
    %p240 = scmp.eq.s32.totalorder %s25, 0
    %p241 = por %p239, %p240
    %s243 = sadd.s32 %s242, 1
    %p246 = scmp.eq.s32.totalorder %s19, 1
    %p247 = scmp.ne.s32.totalorder %s242, %s244
    %p248 = scmp.eq.s32.totalorder %s19, 0
    %p249 = por %p247, %p248
    %p250 = scmp.ne.s32.totalorder %s242, %s244
    %p251 = scmp.eq.s32.totalorder %s24, 1
    %p252 = por %p250, %p251
    %p253 = scmp.ne.s32.totalorder %s244, %s245
    %p254 = scmp.eq.s32.totalorder %s24, 0
    %p255 = por %p253, %p254
    %p256 = scmp.ne.s32.totalorder %s244, %s245
    %p257 = scmp.eq.s32.totalorder %s25, 1
    %p258 = por %p256, %p257
    %p260 = scmp.ne.s32.totalorder %s245, %s259
    %p261 = scmp.eq.s32.totalorder %s25, 0
    %p262 = por %p260, %p261
    %s264 = sadd.s32 %s263, 1
    %p267 = scmp.eq.s32.totalorder %s19, 1
    %p268 = scmp.ne.s32.totalorder %s263, %s265
    %p269 = scmp.eq.s32.totalorder %s19, 0
    %p270 = por %p268, %p269
    %p271 = scmp.ne.s32.totalorder %s263, %s265
    %p272 = scmp.eq.s32.totalorder %s24, 1
    %p273 = por %p271, %p272
    %p274 = scmp.ne.s32.totalorder %s265, %s266
    %p275 = scmp.eq.s32.totalorder %s24, 0
    %p276 = por %p274, %p275
    %p277 = scmp.ne.s32.totalorder %s265, %s266
    %p278 = scmp.eq.s32.totalorder %s25, 1
    %p279 = por %p277, %p278
    %p281 = scmp.ne.s32.totalorder %s266, %s280
    %p282 = scmp.eq.s32.totalorder %s25, 0
    %p283 = por %p281, %p282
    %s285 = sadd.s32 %s284, 1
    %p288 = scmp.eq.s32.totalorder %s19, 1
    %p289 = scmp.ne.s32.totalorder %s284, %s286
    %p290 = scmp.eq.s32.totalorder %s19, 0
    %p291 = por %p289, %p290
    %p292 = scmp.ne.s32.totalorder %s284, %s286
    %p293 = scmp.eq.s32.totalorder %s24, 1
    %p294 = por %p292, %p293
    %p295 = scmp.ne.s32.totalorder %s286, %s287
    %p296 = scmp.eq.s32.totalorder %s24, 0
    %p297 = por %p295, %p296
    %p298 = scmp.ne.s32.totalorder %s286, %s287
    %p299 = scmp.eq.s32.totalorder %s25, 1
    %p300 = por %p298, %p299
    %p302 = scmp.ne.s32.totalorder %s287, %s301
    %p303 = scmp.eq.s32.totalorder %s25, 0
    %p304 = por %p302, %p303
    %s305 = ssub.s32 %s19, %s26
    %p306 = scmp.eq.s32.totalorder %s305, 0
    %s308 = sadd.s32 %s307, 1
    %s309 = scalar_select %p306, %s307, %s308
    %p312 = pneg %p306
    %p313 = scmp.eq.s32.totalorder %s19, 1
    %p314 = por %p312, %p313
    %p315 = scmp.ne.s32.totalorder %s307, %s310
    %p316 = scmp.eq.s32.totalorder %s19, 0
    %p317 = por %p315, %p316
    %p318 = scmp.ne.s32.totalorder %s307, %s310
    %p319 = scmp.eq.s32.totalorder %s24, 1
    %p320 = por %p318, %p319
    %p321 = scmp.ne.s32.totalorder %s310, %s311
    %p322 = scmp.eq.s32.totalorder %s24, 0
    %p323 = por %p321, %p322
    %p324 = scmp.ne.s32.totalorder %s310, %s311
    %p325 = scmp.eq.s32.totalorder %s25, 1
    %p326 = por %p324, %p325
    %p328 = scmp.ne.s32.totalorder %s311, %s327
    %p329 = scmp.eq.s32.totalorder %s25, 0
    %p330 = por %p328, %p329
    %p331 = scmp.le.s32.totalorder 1, %s19
    %p332 = scmp.lt.s32.totalorder %s19, 3
    %p333 = pnand %p331, %p332
    %p334 = pneg %p333
    // Predicated region
    $region9: #{tpu_custom_call.1} parent=5 // pred_check
      _
    $region10: #{tpu_custom_call.1} parent=5 // pred_check_branch
      %336 = sbr.rel (%p333) target = $region12
    $region11: #{tpu_custom_call.1} parent=5 // pred_region
      %s337 = ssub.s32 %s19, 1
      // Predicated region
      $region13: #{tpu_custom_call.1} parent=11 // pred_check
        %p338 = pneg %p66
      $region14: #{tpu_custom_call.1} parent=11 // pred_check_branch
        %340 = sbr.rel (%p338) target = $region16
      $region15: #{tpu_custom_call.1} parent=11 // pred_region
        _
      $region16: #{tpu_custom_call.1} parent=11 // pred_fallthru
        _
      // Predicated region
      $region17: #{tpu_custom_call.1} parent=11 // pred_check
        %p341 = pneg %p87
      $region18: #{tpu_custom_call.1} parent=11 // pred_check_branch
        %343 = sbr.rel (%p341) target = $region20
      $region19: #{tpu_custom_call.1} parent=11 // pred_region
        _
      $region20: #{tpu_custom_call.1} parent=11 // pred_fallthru
        _
      // Predicated region
      $region21: #{tpu_custom_call.1} parent=11 // pred_check
        %p344 = pneg %p108
      $region22: #{tpu_custom_call.1} parent=11 // pred_check_branch
        %346 = sbr.rel (%p344) target = $region24
      $region23: #{tpu_custom_call.1} parent=11 // pred_region
        _
      $region24: #{tpu_custom_call.1} parent=11 // pred_fallthru
        _
      // Predicated region
      $region25: #{tpu_custom_call.1} parent=11 // pred_check
        %p347 = pneg %p129
      $region26: #{tpu_custom_call.1} parent=11 // pred_check_branch
        %349 = sbr.rel (%p347) target = $region28
      $region27: #{tpu_custom_call.1} parent=11 // pred_region
        _
      $region28: #{tpu_custom_call.1} parent=11 // pred_fallthru
        _
      // Predicated region
      $region29: #{tpu_custom_call.1} parent=11 // pred_check
        %p350 = pneg %p150
      $region30: #{tpu_custom_call.1} parent=11 // pred_check_branch
        %352 = sbr.rel (%p350) target = $region32
      $region31: #{tpu_custom_call.1} parent=11 // pred_region
        _
      $region32: #{tpu_custom_call.1} parent=11 // pred_fallthru
        _
      // Predicated region
      $region33: #{tpu_custom_call.1} parent=11 // pred_check
        %p353 = pneg %p171
      $region34: #{tpu_custom_call.1} parent=11 // pred_check_branch
        %355 = sbr.rel (%p353) target = $region36
      $region35: #{tpu_custom_call.1} parent=11 // pred_region
        _
      $region36: #{tpu_custom_call.1} parent=11 // pred_fallthru
        _
      // Predicated region
      $region37: #{tpu_custom_call.1} parent=11 // pred_check
        %p356 = pneg %p192
      $region38: #{tpu_custom_call.1} parent=11 // pred_check_branch
        %358 = sbr.rel (%p356) target = $region40
      $region39: #{tpu_custom_call.1} parent=11 // pred_region
        _
      $region40: #{tpu_custom_call.1} parent=11 // pred_fallthru
        _
      // Predicated region
      $region41: #{tpu_custom_call.1} parent=11 // pred_check
        %p359 = pneg %p213
      $region42: #{tpu_custom_call.1} parent=11 // pred_check_branch
        %361 = sbr.rel (%p359) target = $region44
      $region43: #{tpu_custom_call.1} parent=11 // pred_region
        _
      $region44: #{tpu_custom_call.1} parent=11 // pred_fallthru
        _
      // Predicated region
      $region45: #{tpu_custom_call.1} parent=11 // pred_check
        %p362 = pneg %p234
      $region46: #{tpu_custom_call.1} parent=11 // pred_check_branch
        %364 = sbr.rel (%p362) target = $region48
      $region47: #{tpu_custom_call.1} parent=11 // pred_region
        _
      $region48: #{tpu_custom_call.1} parent=11 // pred_fallthru
        _
      // Predicated region
      $region49: #{tpu_custom_call.1} parent=11 // pred_check
        %p365 = pneg %p255
      $region50: #{tpu_custom_call.1} parent=11 // pred_check_branch
        %367 = sbr.rel (%p365) target = $region52
      $region51: #{tpu_custom_call.1} parent=11 // pred_region
        _
      $region52: #{tpu_custom_call.1} parent=11 // pred_fallthru
        _
      // Predicated region
      $region53: #{tpu_custom_call.1} parent=11 // pred_check
        %p368 = pneg %p276
      $region54: #{tpu_custom_call.1} parent=11 // pred_check_branch
        %370 = sbr.rel (%p368) target = $region56
      $region55: #{tpu_custom_call.1} parent=11 // pred_region
        _
      $region56: #{tpu_custom_call.1} parent=11 // pred_fallthru
        _
      // Predicated region
      $region57: #{tpu_custom_call.1} parent=11 // pred_check
        %p371 = pneg %p297
      $region58: #{tpu_custom_call.1} parent=11 // pred_check_branch
        %373 = sbr.rel (%p371) target = $region60
      $region59: #{tpu_custom_call.1} parent=11 // pred_region
        _
      $region60: #{tpu_custom_call.1} parent=11 // pred_fallthru
        _
    $region12: #{tpu_custom_call.1} parent=5 // pred_fallthru
      _
    %p374 = scmp.lt.s32.totalorder %s19, 2
    // Predicated region
    $region61: #{tpu_custom_call.1} parent=5 // pred_check
      %p375 = pneg %p374
    $region62: #{tpu_custom_call.1} parent=5 // pred_check_branch
      %377 = sbr.rel (%p375) target = $region64
    $region63: #{tpu_custom_call.1} parent=5 // pred_region
      // Predicated region
      $region65: #{tpu_custom_call.1} parent=63 // pred_check
        %p378 = pneg %p39
      $region66: #{tpu_custom_call.1} parent=63 // pred_check_branch
        %380 = sbr.rel (%p378) target = $region68
      $region67: #{tpu_custom_call.1} parent=63 // pred_region
        %p381 = scmp.lt.s32.totalorder %s19, 1
        %s382 = scalar_select %p381, %s19, 1
        %s383 = smul.addr %s382, 8
        %s384 = smul.addr %s383, 8
        %s385 = scalar_lea.vmem %s0, %s384
      $region68: #{tpu_custom_call.1} parent=63 // pred_fallthru
        _
    $region64: #{tpu_custom_call.1} parent=5 // pred_fallthru
      _
    %p386 = scmp.le.s32.totalorder 1, %s19
    %p387 = scmp.lt.s32.totalorder %s19, 3
    %p388 = pnand %p386, %p387
    %p389 = pneg %p388
    // Predicated region
    $region69: #{tpu_custom_call.1} parent=5 // pred_check
      _
    $region70: #{tpu_custom_call.1} parent=5 // pred_check_branch
      %391 = sbr.rel (%p388) target = $region72
    $region71: #{tpu_custom_call.1} parent=5 // pred_region
      %s392 = ssub.s32 %s19, 1
      %p393 = scmp.lt.s32.totalorder %s24, 1
      %s394 = scalar_select %p393, %s24, 1
      %s395 = smul.addr %s394, 8
      %s396 = smul.addr %s395, 8
      %s397 = scalar_lea.vmem %s0, %s396
      %p398 = pneg %p45
      %p399 = pneg %p42
      %p400 = pneg %p66
      %p401 = pneg %p63
      %p402 = pneg %p87
      %p403 = pneg %p84
      %p404 = pneg %p108
      %p405 = pneg %p105
      %p406 = pneg %p129
      %p407 = pneg %p126
      %p408 = pneg %p150
      %p409 = pneg %p147
      %p410 = pneg %p171
      %p411 = pneg %p168
      %p412 = pneg %p192
      %p413 = pneg %p189
      %p414 = pneg %p213
      %p415 = pneg %p210
      %p416 = pneg %p234
      %p417 = pneg %p231
      %p418 = pneg %p255
      %p419 = pneg %p252
      %p420 = pneg %p276
      %p421 = pneg %p273
      %p422 = pneg %p297
      %p423 = pneg %p294
      %p424 = pneg %p323
      %p425 = pneg %p320
      %p426 = scmp.lt.s32.totalorder %s24, 1
      %s427 = scalar_select %p426, %s24, 1
      %s428 = smul.addr %s427, 8
      %s429 = smul.addr %s428, 8
      %s430 = scalar_lea.vmem %s13, %s429
      %p431 = scmp.lt.s32.totalorder %s24, 1
      %s432 = scalar_select %p431, %s24, 1
      %s433 = smul.addr %s432, 8
      %s434 = smul.addr %s433, 8
      %s435 = scalar_lea.vmem %s0, %s434
      %p436 = scmp.lt.s32.totalorder %s24, 1
      %s437 = scalar_select %p436, %s24, 1
      %s438 = smul.addr %s437, 8
      %s439 = smul.addr %s438, 8
      %s440 = scalar_lea.vmem %s13, %s439
      %v441 = vld [vmem:[%s435] sm:$0xff]
      %v442 = vld [vmem:[%s435 + $0x8] sm:$0xff]
      %v443 = vld [vmem:[%s435 + $0x10] sm:$0xff]
      %v444 = vld [vmem:[%s435 + $0x18] sm:$0xff]
      %v445 = vld [vmem:[%s435 + $0x20] sm:$0xff]
      %v446 = vld [vmem:[%s435 + $0x28] sm:$0xff]
      %v447 = vld [vmem:[%s435 + $0x30] sm:$0xff]
      %v448 = vld [vmem:[%s435 + $0x38] sm:$0xff]
      %v449 = vld [vmem:[%s1] sm:$0xff]
      %v450 = vld [vmem:[%s1 + $0x8] sm:$0xff]
      %v451 = vld [vmem:[%s1 + $0x10] sm:$0xff]
      %v452 = vld [vmem:[%s1 + $0x18] sm:$0xff]
      %v453 = vld [vmem:[%s2] sm:$0x1]
      %v455 = vlaneseq
      %v456 = vshrl.u32 %v455, 7
      %v457 = vsub.s32 0, %v456
      %v458 = vrot.slane %v453, %v457
      %vm460 = vcmask 261120
      %v462 = vsel %vm460, %v441, 0
      %v465 = vsel %vm460, %v442, 0
      %v468 = vsel %vm460, %v443, 0
      %v471 = vsel %vm460, %v444, 0
      %v474 = vsel %vm460, %v445, 0
      %v477 = vsel %vm460, %v446, 0
      %v480 = vsel %vm460, %v447, 0
      %v483 = vsel %vm460, %v448, 0
      %485 = vmatprep.subr.mxu0 0.0
      %486 = vmatpush1.msra.mxu0 0.0
      %487 = vmatprep.subr.mxu0 0.0
      %488 = vmatpush1.msra.mxu0 0.0
      %489 = vmatprep.subr.mxu0 0.0
      %490 = vmatpush1.msra.mxu0 0.0
      %491 = vmatprep.subr.mxu0 0.0
      %492 = vmatpush1.msra.mxu0 0.0
      %493 = vmatprep.subr.mxu0 0.0
      %494 = vmatpush1.msra.mxu0 0.0
      %495 = vmatprep.subr.mxu0 0.0
      %496 = vmatpush1.msra.mxu0 0.0
      %497 = vmatprep.subr.mxu0 0.0
      %498 = vmatpush1.msra.mxu0 0.0
      %499 = vmatprep.subr.mxu0 0.0
      %500 = vmatpush1.msra.mxu0 0.0
      %501 = vmatprep.subr.mxu0 0.0
      %502 = vmatpush1.msra.mxu0 0.0
      %503 = vmatprep.subr.mxu0 0.0
      %504 = vmatpush1.msra.mxu0 0.0
      %505 = vmatprep.subr.mxu0 0.0
      %506 = vmatpush1.msra.mxu0 0.0
      %507 = vmatprep.subr.mxu0 0.0
      %508 = vmatpush1.msra.mxu0 0.0
      %509 = vmatprep.subr.mxu0 0.0
      %510 = vmatpush1.msra.mxu0 %v452
      %511 = vmatprep.subr.mxu0 0.0
      %512 = vmatpush1.msra.mxu0 %v451
      %513 = vmatprep.subr.mxu0 0.0
      %514 = vmatpush1.msra.mxu0 %v450
      %515 = vmatprep.subr.mxu0 0.0
      %516 = vmatpush1.msra.mxu0 %v449
      %517 = vmatprep.subr.mxu0 0.0
      %518 = vmatpush2.msra.mxu0 0.0
      %519 = vmatprep.subr.mxu0 0.0
      %520 = vmatpush2.msra.mxu0 0.0
      %521 = vmatprep.subr.mxu0 0.0
      %522 = vmatpush2.msra.mxu0 0.0
      %523 = vmatprep.subr.mxu0 0.0
      %524 = vmatpush2.msra.mxu0 0.0
      %525 = vmatprep.subr.mxu0 0.0
      %526 = vmatpush2.msra.mxu0 0.0
      %527 = vmatprep.subr.mxu0 0.0
      %528 = vmatpush2.msra.mxu0 0.0
      %529 = vmatprep.subr.mxu0 0.0
      %530 = vmatpush2.msra.mxu0 0.0
      %531 = vmatprep.subr.mxu0 0.0
      %532 = vmatpush2.msra.mxu0 0.0
      %533 = vmatprep.subr.mxu0 0.0
      %534 = vmatpush2.msra.mxu0 0.0
      %535 = vmatprep.subr.mxu0 0.0
      %536 = vmatpush2.msra.mxu0 0.0
      %537 = vmatprep.subr.mxu0 0.0
      %538 = vmatpush2.msra.mxu0 0.0
      %539 = vmatprep.subr.mxu0 0.0
      %540 = vmatpush2.msra.mxu0 0.0
      %541 = vmatprep.subr.mxu0 0.0
      %542 = vmatpush2.msra.mxu0 0.0
      %543 = vmatprep.subr.mxu0 0.0
      %544 = vmatpush2.msra.mxu0 0.0
      %545 = vmatprep.subr.mxu0 0.0
      %546 = vmatpush2.msra.mxu0 0.0
      %547 = vmatprep.subr.mxu0 0.0
      %548 = vmatpush2.msra.mxu0 0.0
      %549 = vmatprep.mubr.f32.mxu0 0.0
      %550 = vmatmul.mubr.f32.gmra.mxu0 %v462
      %v551 = vpop.f32.mrf.mxu0
      %v552 = vadd.f32 %v458, %v551
      %v553 = vpop.f32.mrf.mxu0
      %554 = vmatprep.mubr.f32.mxu0 0.0
      %555 = vmatmul.mubr.f32.gmra.mxu0 %v465
      %v556 = vpop.f32.mrf.mxu0
      %v557 = vadd.f32 %v458, %v556
      %v558 = vpop.f32.mrf.mxu0
      %559 = vmatprep.mubr.f32.mxu0 0.0
      %560 = vmatmul.mubr.f32.gmra.mxu0 %v468
      %v561 = vpop.f32.mrf.mxu0
      %v562 = vadd.f32 %v458, %v561
      %v563 = vpop.f32.mrf.mxu0
      %564 = vmatprep.mubr.f32.mxu0 0.0
      %565 = vmatmul.mubr.f32.gmra.mxu0 %v471
      %v566 = vpop.f32.mrf.mxu0
      %v567 = vadd.f32 %v458, %v566
      %v568 = vpop.f32.mrf.mxu0
      %569 = vmatprep.mubr.f32.mxu0 0.0
      %570 = vmatmul.mubr.f32.gmra.mxu0 %v474
      %v571 = vpop.f32.mrf.mxu0
      %v572 = vadd.f32 %v458, %v571
      %v573 = vpop.f32.mrf.mxu0
      %574 = vmatprep.mubr.f32.mxu0 0.0
      %575 = vmatmul.mubr.f32.gmra.mxu0 %v477
      %v576 = vpop.f32.mrf.mxu0
      %v577 = vadd.f32 %v458, %v576
      %v578 = vpop.f32.mrf.mxu0
      %579 = vmatprep.mubr.f32.mxu0 0.0
      %580 = vmatmul.mubr.f32.gmra.mxu0 %v480
      %v581 = vpop.f32.mrf.mxu0
      %v582 = vadd.f32 %v458, %v581
      %v583 = vpop.f32.mrf.mxu0
      %584 = vmatprep.mubr.f32.mxu0 0.0
      %585 = vmatmul.mubr.f32.gmra.mxu0 %v483
      %v586 = vpop.f32.mrf.mxu0
      %v587 = vadd.f32 %v458, %v586
      %v588 = vpop.f32.mrf.mxu0
      %589 = vdwg.mxu0
      %v590 = vld [vmem:[%s3] sm:$0xff]
      %v591 = vld [vmem:[%s3 + $0x8] sm:$0xff]
      %v592 = vld [vmem:[%s3 + $0x10] sm:$0xff]
      %v593 = vld [vmem:[%s3 + $0x18] sm:$0xff]
      %v594 = vld [vmem:[%s3 + $0x20] sm:$0xff]
      %v595 = vld [vmem:[%s3 + $0x28] sm:$0xff]
      %v596 = vld [vmem:[%s3 + $0x30] sm:$0xff]
      %v597 = vld [vmem:[%s3 + $0x38] sm:$0xff]
      %v598 = vld [vmem:[%s3 + $0x40] sm:$0xff]
      %v599 = vld [vmem:[%s3 + $0x48] sm:$0xff]
      %v600 = vld [vmem:[%s3 + $0x50] sm:$0xff]
      %v601 = vld [vmem:[%s3 + $0x58] sm:$0xff]
      %v602 = vld [vmem:[%s3 + $0x60] sm:$0xff]
      %v603 = vld [vmem:[%s3 + $0x68] sm:$0xff]
      %v604 = vld [vmem:[%s3 + $0x70] sm:$0xff]
      %v605 = vld [vmem:[%s3 + $0x78] sm:$0xff]
      %v606 = vld [vmem:[%s3 + $0x80] sm:$0xff]
      %v607 = vld [vmem:[%s3 + $0x88] sm:$0xff]
      %v608 = vld [vmem:[%s3 + $0x90] sm:$0xff]
      %v609 = vld [vmem:[%s3 + $0x98] sm:$0xff]
      %v610 = vld [vmem:[%s3 + $0xa0] sm:$0xff]
      %v611 = vld [vmem:[%s3 + $0xa8] sm:$0xff]
      %v612 = vld [vmem:[%s3 + $0xb0] sm:$0xff]
      %v613 = vld [vmem:[%s3 + $0xb8] sm:$0xff]
      %v614 = vld [vmem:[%s3 + $0xc0] sm:$0xff]
      %v615 = vld [vmem:[%s3 + $0xc8] sm:$0xff]
      %v616 = vld [vmem:[%s3 + $0xd0] sm:$0xff]
      %v617 = vld [vmem:[%s3 + $0xd8] sm:$0xff]
      %v618 = vld [vmem:[%s3 + $0xe0] sm:$0xff]
      %v619 = vld [vmem:[%s3 + $0xe8] sm:$0xff]
      %v620 = vld [vmem:[%s3 + $0xf0] sm:$0xff]
      %v621 = vld [vmem:[%s3 + $0xf8] sm:$0xff]
      %v622 = vld [vmem:[%s3 + $0x100] sm:$0xff]
      %v623 = vld [vmem:[%s3 + $0x108] sm:$0xff]
      %v624 = vld [vmem:[%s3 + $0x110] sm:$0xff]
      %v625 = vld [vmem:[%s3 + $0x118] sm:$0xff]
      %v626 = vld [vmem:[%s3 + $0x120] sm:$0xff]
      %v627 = vld [vmem:[%s3 + $0x128] sm:$0xff]
      %v628 = vld [vmem:[%s3 + $0x130] sm:$0xff]
      %v629 = vld [vmem:[%s3 + $0x138] sm:$0xff]
      %v630 = vld [vmem:[%s3 + $0x140] sm:$0xff]
      %v631 = vld [vmem:[%s3 + $0x148] sm:$0xff]
      %v632 = vld [vmem:[%s3 + $0x150] sm:$0xff]
      %v633 = vld [vmem:[%s3 + $0x158] sm:$0xff]
      %v634 = vld [vmem:[%s3 + $0x160] sm:$0xff]
      %v635 = vld [vmem:[%s3 + $0x168] sm:$0xff]
      %v636 = vld [vmem:[%s3 + $0x170] sm:$0xff]
      %v637 = vld [vmem:[%s3 + $0x178] sm:$0xff]
      %v638 = vld [vmem:[%s3 + $0x180] sm:$0xff]
      %v639 = vld [vmem:[%s3 + $0x188] sm:$0xff]
      %v640 = vld [vmem:[%s3 + $0x190] sm:$0xff]
      %v641 = vld [vmem:[%s3 + $0x198] sm:$0xff]
      %v642 = vld [vmem:[%s3 + $0x1a0] sm:$0xff]
      %v643 = vld [vmem:[%s3 + $0x1a8] sm:$0xff]
      %v644 = vld [vmem:[%s3 + $0x1b0] sm:$0xff]
      %v645 = vld [vmem:[%s3 + $0x1b8] sm:$0xff]
      %v646 = vld [vmem:[%s3 + $0x1c0] sm:$0xff]
      %v647 = vld [vmem:[%s3 + $0x1c8] sm:$0xff]
      %v648 = vld [vmem:[%s3 + $0x1d0] sm:$0xff]
      %v649 = vld [vmem:[%s3 + $0x1d8] sm:$0xff]
      %v650 = vld [vmem:[%s3 + $0x1e0] sm:$0xff]
      %v651 = vld [vmem:[%s3 + $0x1e8] sm:$0xff]
      %v652 = vld [vmem:[%s3 + $0x1f0] sm:$0xff]
      %v653 = vld [vmem:[%s3 + $0x1f8] sm:$0xff]
      %v654 = vld [vmem:[%s3 + $0x200] sm:$0xff]
      %v655 = vld [vmem:[%s3 + $0x208] sm:$0xff]
      %v656 = vld [vmem:[%s3 + $0x210] sm:$0xff]
      %v657 = vld [vmem:[%s3 + $0x218] sm:$0xff]
      %v658 = vld [vmem:[%s3 + $0x220] sm:$0xff]
      %v659 = vld [vmem:[%s3 + $0x228] sm:$0xff]
      %v660 = vld [vmem:[%s3 + $0x230] sm:$0xff]
      %v661 = vld [vmem:[%s3 + $0x238] sm:$0xff]
      %670 = vrot.lane.b32.xlu0 %v552, 96
      %v671 = vpop.permute.xlu0 %670
      %672 = vrot.lane.b32.xlu0 %v557, 96
      %v673 = vpop.permute.xlu0 %672
      %674 = vrot.lane.b32.xlu0 %v562, 96
      %v675 = vpop.permute.xlu0 %674
      %676 = vrot.lane.b32.xlu0 %v567, 96
      %v677 = vpop.permute.xlu0 %676
      %678 = vrot.lane.b32.xlu0 %v572, 96
      %v679 = vpop.permute.xlu0 %678
      %680 = vrot.lane.b32.xlu0 %v577, 96
      %v681 = vpop.permute.xlu0 %680
      %682 = vrot.lane.b32.xlu0 %v582, 96
      %v683 = vpop.permute.xlu0 %682
      %684 = vrot.lane.b32.xlu0 %v587, 96
      %v685 = vpop.permute.xlu0 %684
      %vm694 = vcmask 523264
      %v696 = vsel %vm694, %v590, 0
      %v699 = vsel %vm694, %v591, 0
      %v702 = vsel %vm694, %v592, 0
      %v705 = vsel %vm694, %v593, 0
      %v708 = vsel %vm694, %v594, 0
      %v711 = vsel %vm694, %v595, 0
      %v714 = vsel %vm694, %v596, 0
      %v717 = vsel %vm694, %v597, 0
      %v720 = vsel %vm694, %v598, 0
      %v723 = vsel %vm694, %v599, 0
      %v726 = vsel %vm694, %v600, 0
      %v729 = vsel %vm694, %v601, 0
      %v732 = vsel %vm694, %v602, 0
      %v735 = vsel %vm694, %v603, 0
      %v738 = vsel %vm694, %v604, 0
      %v741 = vsel %vm694, %v605, 0
      %v744 = vsel %vm694, %v606, 0
      %v747 = vsel %vm694, %v607, 0
      %v750 = vsel %vm694, %v608, 0
      %v753 = vsel %vm694, %v609, 0
      %v756 = vsel %vm694, %v610, 0
      %v759 = vsel %vm694, %v611, 0
      %v762 = vsel %vm694, %v612, 0
      %v765 = vsel %vm694, %v613, 0
      %v768 = vsel %vm694, %v614, 0
      %v771 = vsel %vm694, %v615, 0
      %v774 = vsel %vm694, %v616, 0
      %v777 = vsel %vm694, %v617, 0
      %v780 = vsel %vm694, %v618, 0
      %v783 = vsel %vm694, %v619, 0
      %v786 = vsel %vm694, %v620, 0
      %v789 = vsel %vm694, %v621, 0
      %v792 = vsel %vm694, %v622, 0
      %v795 = vsel %vm694, %v623, 0
      %v798 = vsel %vm694, %v624, 0
      %v801 = vsel %vm694, %v625, 0
      %v804 = vsel %vm694, %v626, 0
      %v807 = vsel %vm694, %v627, 0
      %v810 = vsel %vm694, %v628, 0
      %v813 = vsel %vm694, %v629, 0
      %v816 = vsel %vm694, %v630, 0
      %v819 = vsel %vm694, %v631, 0
      %v822 = vsel %vm694, %v632, 0
      %v825 = vsel %vm694, %v633, 0
      %v828 = vsel %vm694, %v634, 0
      %v831 = vsel %vm694, %v635, 0
      %v834 = vsel %vm694, %v636, 0
      %v837 = vsel %vm694, %v637, 0
      %v840 = vsel %vm694, %v638, 0
      %v843 = vsel %vm694, %v639, 0
      %v846 = vsel %vm694, %v640, 0
      %v849 = vsel %vm694, %v641, 0
      %v852 = vsel %vm694, %v642, 0
      %v855 = vsel %vm694, %v643, 0
      %v858 = vsel %vm694, %v644, 0
      %v861 = vsel %vm694, %v645, 0
      %v864 = vsel %vm694, %v646, 0
      %v867 = vsel %vm694, %v647, 0
      %v870 = vsel %vm694, %v648, 0
      %v873 = vsel %vm694, %v649, 0
      %v876 = vsel %vm694, %v650, 0
      %v879 = vsel %vm694, %v651, 0
      %v882 = vsel %vm694, %v652, 0
      %v885 = vsel %vm694, %v653, 0
      %v888 = vsel %vm694, %v654, 0
      %v891 = vsel %vm694, %v655, 0
      %v894 = vsel %vm694, %v656, 0
      %v897 = vsel %vm694, %v657, 0
      %v900 = vsel %vm694, %v658, 0
      %v903 = vsel %vm694, %v659, 0
      %v906 = vsel %vm694, %v660, 0
      %v909 = vsel %vm694, %v661, 0
      %911 = vmatprep.subr.mxu0 0.0
      %912 = vmatpush1.msra.mxu0 0.0
      %913 = vmatprep.subr.mxu0 0.0
      %914 = vmatpush1.msra.mxu0 0.0
      %915 = vmatprep.subr.mxu0 0.0
      %916 = vmatpush1.msra.mxu0 0.0
      %917 = vmatprep.subr.mxu0 0.0
      %918 = vmatpush1.msra.mxu0 0.0
      %919 = vmatprep.subr.mxu0 0.0
      %920 = vmatpush1.msra.mxu0 0.0
      %921 = vmatprep.subr.mxu0 0.0
      %922 = vmatpush1.msra.mxu0 0.0
      %923 = vmatprep.subr.mxu0 0.0
      %924 = vmatpush1.msra.mxu0 0.0
      %925 = vmatprep.subr.mxu0 0.0
      %926 = vmatpush1.msra.mxu0 0.0
      %927 = vmatprep.subr.mxu0 0.0
      %928 = vmatpush1.msra.mxu0 %v685
      %929 = vmatprep.subr.mxu0 0.0
      %930 = vmatpush1.msra.mxu0 %v683
      %931 = vmatprep.subr.mxu0 0.0
      %932 = vmatpush1.msra.mxu0 %v681
      %933 = vmatprep.subr.mxu0 0.0
      %934 = vmatpush1.msra.mxu0 %v679
      %935 = vmatprep.subr.mxu0 0.0
      %936 = vmatpush1.msra.mxu0 %v677
      %937 = vmatprep.subr.mxu0 0.0
      %938 = vmatpush1.msra.mxu0 %v675
      %939 = vmatprep.subr.mxu0 0.0
      %940 = vmatpush1.msra.mxu0 %v673
      %941 = vmatprep.subr.mxu0 0.0
      %942 = vmatpush1.msra.mxu0 %v671
      %943 = vmatprep.subr.mxu0 0.0
      %944 = vmatpush2.msra.mxu0 0.0
      %945 = vmatprep.subr.mxu0 0.0
      %946 = vmatpush2.msra.mxu0 0.0
      %947 = vmatprep.subr.mxu0 0.0
      %948 = vmatpush2.msra.mxu0 0.0
      %949 = vmatprep.subr.mxu0 0.0
      %950 = vmatpush2.msra.mxu0 0.0
      %951 = vmatprep.subr.mxu0 0.0
      %952 = vmatpush2.msra.mxu0 0.0
      %953 = vmatprep.subr.mxu0 0.0
      %954 = vmatpush2.msra.mxu0 0.0
      %955 = vmatprep.subr.mxu0 0.0
      %956 = vmatpush2.msra.mxu0 0.0
      %957 = vmatprep.subr.mxu0 0.0
      %958 = vmatpush2.msra.mxu0 0.0
      %959 = vmatprep.subr.mxu0 0.0
      %960 = vmatpush2.msra.mxu0 0.0
      %961 = vmatprep.subr.mxu0 0.0
      %962 = vmatpush2.msra.mxu0 0.0
      %963 = vmatprep.subr.mxu0 0.0
      %964 = vmatpush2.msra.mxu0 0.0
      %965 = vmatprep.subr.mxu0 0.0
      %966 = vmatpush2.msra.mxu0 0.0
      %967 = vmatprep.subr.mxu0 0.0
      %968 = vmatpush2.msra.mxu0 0.0
      %969 = vmatprep.subr.mxu0 0.0
      %970 = vmatpush2.msra.mxu0 0.0
      %971 = vmatprep.subr.mxu0 0.0
      %972 = vmatpush2.msra.mxu0 0.0
      %973 = vmatprep.subr.mxu0 0.0
      %974 = vmatpush2.msra.mxu0 0.0
      %975 = vmatprep.mubr.f32.mxu0 0.0
      %976 = vmatmul.mubr.f32.gmra.mxu0 %v696
      %v977 = vpop.f32.mrf.mxu0
      %v978 = vadd.f32 0.0, %v977
      %v979 = vpop.f32.mrf.mxu0
      %980 = vmatprep.mubr.f32.mxu0 0.0
      %981 = vmatmul.mubr.f32.gmra.mxu0 %v699
      %v982 = vpop.f32.mrf.mxu0
      %v983 = vadd.f32 0.0, %v982
      %v984 = vpop.f32.mrf.mxu0
      %985 = vmatprep.mubr.f32.mxu0 0.0
      %986 = vmatmul.mubr.f32.gmra.mxu0 %v702
      %v987 = vpop.f32.mrf.mxu0
      %v988 = vadd.f32 0.0, %v987
      %v989 = vpop.f32.mrf.mxu0
      %990 = vmatprep.mubr.f32.mxu0 0.0
      %991 = vmatmul.mubr.f32.gmra.mxu0 %v705
      %v992 = vpop.f32.mrf.mxu0
      %v993 = vadd.f32 0.0, %v992
      %v994 = vpop.f32.mrf.mxu0
      %995 = vmatprep.mubr.f32.mxu0 0.0
      %996 = vmatmul.mubr.f32.gmra.mxu0 %v708
      %v997 = vpop.f32.mrf.mxu0
      %v998 = vadd.f32 0.0, %v997
      %v999 = vpop.f32.mrf.mxu0
      %1000 = vmatprep.mubr.f32.mxu0 0.0
      %1001 = vmatmul.mubr.f32.gmra.mxu0 %v711
      %v1002 = vpop.f32.mrf.mxu0
      %v1003 = vadd.f32 0.0, %v1002
      %v1004 = vpop.f32.mrf.mxu0
      %1005 = vmatprep.mubr.f32.mxu0 0.0
      %1006 = vmatmul.mubr.f32.gmra.mxu0 %v714
      %v1007 = vpop.f32.mrf.mxu0
      %v1008 = vadd.f32 0.0, %v1007
      %v1009 = vpop.f32.mrf.mxu0
      %1010 = vmatprep.mubr.f32.mxu0 0.0
      %1011 = vmatmul.mubr.f32.gmra.mxu0 %v717
      %v1012 = vpop.f32.mrf.mxu0
      %v1013 = vadd.f32 0.0, %v1012
      %v1014 = vpop.f32.mrf.mxu0
      %1015 = vmatprep.mubr.f32.mxu0 0.0
      %1016 = vmatmul.mubr.f32.gmra.mxu0 %v720
      %v1017 = vpop.f32.mrf.mxu0
      %v1018 = vadd.f32 0.0, %v1017
      %v1019 = vpop.f32.mrf.mxu0
      %1020 = vmatprep.mubr.f32.mxu0 0.0
      %1021 = vmatmul.mubr.f32.gmra.mxu0 %v723
      %v1022 = vpop.f32.mrf.mxu0
      %v1023 = vadd.f32 0.0, %v1022
      %v1024 = vpop.f32.mrf.mxu0
      %1025 = vmatprep.mubr.f32.mxu0 0.0
      %1026 = vmatmul.mubr.f32.gmra.mxu0 %v726
      %v1027 = vpop.f32.mrf.mxu0
      %v1028 = vadd.f32 0.0, %v1027
      %v1029 = vpop.f32.mrf.mxu0
      %1030 = vmatprep.mubr.f32.mxu0 0.0
      %1031 = vmatmul.mubr.f32.gmra.mxu0 %v729
      %v1032 = vpop.f32.mrf.mxu0
      %v1033 = vadd.f32 0.0, %v1032
      %v1034 = vpop.f32.mrf.mxu0
      %1035 = vmatprep.mubr.f32.mxu0 0.0
      %1036 = vmatmul.mubr.f32.gmra.mxu0 %v732
      %v1037 = vpop.f32.mrf.mxu0
      %v1038 = vadd.f32 0.0, %v1037
      %v1039 = vpop.f32.mrf.mxu0
      %1040 = vmatprep.mubr.f32.mxu0 0.0
      %1041 = vmatmul.mubr.f32.gmra.mxu0 %v735
      %v1042 = vpop.f32.mrf.mxu0
      %v1043 = vadd.f32 0.0, %v1042
      %v1044 = vpop.f32.mrf.mxu0
      %1045 = vmatprep.mubr.f32.mxu0 0.0
      %1046 = vmatmul.mubr.f32.gmra.mxu0 %v738
      %v1047 = vpop.f32.mrf.mxu0
      %v1048 = vadd.f32 0.0, %v1047
      %v1049 = vpop.f32.mrf.mxu0
      %1050 = vmatprep.mubr.f32.mxu0 0.0
      %1051 = vmatmul.mubr.f32.gmra.mxu0 %v741
      %v1052 = vpop.f32.mrf.mxu0
      %v1053 = vadd.f32 0.0, %v1052
      %v1054 = vpop.f32.mrf.mxu0
      %1055 = vmatprep.mubr.f32.mxu0 0.0
      %1056 = vmatmul.mubr.f32.gmra.mxu0 %v744
      %v1057 = vpop.f32.mrf.mxu0
      %v1058 = vadd.f32 0.0, %v1057
      %v1059 = vpop.f32.mrf.mxu0
      %1060 = vmatprep.mubr.f32.mxu0 0.0
      %1061 = vmatmul.mubr.f32.gmra.mxu0 %v747
      %v1062 = vpop.f32.mrf.mxu0
      %v1063 = vadd.f32 0.0, %v1062
      %v1064 = vpop.f32.mrf.mxu0
      %1065 = vmatprep.mubr.f32.mxu0 0.0
      %1066 = vmatmul.mubr.f32.gmra.mxu0 %v750
      %v1067 = vpop.f32.mrf.mxu0
      %v1068 = vadd.f32 0.0, %v1067
      %v1069 = vpop.f32.mrf.mxu0
      %1070 = vmatprep.mubr.f32.mxu0 0.0
      %1071 = vmatmul.mubr.f32.gmra.mxu0 %v753
      %v1072 = vpop.f32.mrf.mxu0
      %v1073 = vadd.f32 0.0, %v1072
      %v1074 = vpop.f32.mrf.mxu0
      %1075 = vmatprep.mubr.f32.mxu0 0.0
      %1076 = vmatmul.mubr.f32.gmra.mxu0 %v756
      %v1077 = vpop.f32.mrf.mxu0
      %v1078 = vadd.f32 0.0, %v1077
      %v1079 = vpop.f32.mrf.mxu0
      %1080 = vmatprep.mubr.f32.mxu0 0.0
      %1081 = vmatmul.mubr.f32.gmra.mxu0 %v759
      %v1082 = vpop.f32.mrf.mxu0
      %v1083 = vadd.f32 0.0, %v1082
      %v1084 = vpop.f32.mrf.mxu0
      %1085 = vmatprep.mubr.f32.mxu0 0.0
      %1086 = vmatmul.mubr.f32.gmra.mxu0 %v762
      %v1087 = vpop.f32.mrf.mxu0
      %v1088 = vadd.f32 0.0, %v1087
      %v1089 = vpop.f32.mrf.mxu0
      %1090 = vmatprep.mubr.f32.mxu0 0.0
      %1091 = vmatmul.mubr.f32.gmra.mxu0 %v765
      %v1092 = vpop.f32.mrf.mxu0
      %v1093 = vadd.f32 0.0, %v1092
      %v1094 = vpop.f32.mrf.mxu0
      %1095 = vmatprep.mubr.f32.mxu0 0.0
      %1096 = vmatmul.mubr.f32.gmra.mxu0 %v768
      %v1097 = vpop.f32.mrf.mxu0
      %v1098 = vadd.f32 0.0, %v1097
      %v1099 = vpop.f32.mrf.mxu0
      %1100 = vmatprep.mubr.f32.mxu0 0.0
      %1101 = vmatmul.mubr.f32.gmra.mxu0 %v771
      %v1102 = vpop.f32.mrf.mxu0
      %v1103 = vadd.f32 0.0, %v1102
      %v1104 = vpop.f32.mrf.mxu0
      %1105 = vmatprep.mubr.f32.mxu0 0.0
      %1106 = vmatmul.mubr.f32.gmra.mxu0 %v774
      %v1107 = vpop.f32.mrf.mxu0
      %v1108 = vadd.f32 0.0, %v1107
      %v1109 = vpop.f32.mrf.mxu0
      %1110 = vmatprep.mubr.f32.mxu0 0.0
      %1111 = vmatmul.mubr.f32.gmra.mxu0 %v777
      %v1112 = vpop.f32.mrf.mxu0
      %v1113 = vadd.f32 0.0, %v1112
      %v1114 = vpop.f32.mrf.mxu0
      %1115 = vmatprep.mubr.f32.mxu0 0.0
      %1116 = vmatmul.mubr.f32.gmra.mxu0 %v780
      %v1117 = vpop.f32.mrf.mxu0
      %v1118 = vadd.f32 0.0, %v1117
      %v1119 = vpop.f32.mrf.mxu0
      %1120 = vmatprep.mubr.f32.mxu0 0.0
      %1121 = vmatmul.mubr.f32.gmra.mxu0 %v783
      %v1122 = vpop.f32.mrf.mxu0
      %v1123 = vadd.f32 0.0, %v1122
      %v1124 = vpop.f32.mrf.mxu0
      %1125 = vmatprep.mubr.f32.mxu0 0.0
      %1126 = vmatmul.mubr.f32.gmra.mxu0 %v786
      %v1127 = vpop.f32.mrf.mxu0
      %v1128 = vadd.f32 0.0, %v1127
      %v1129 = vpop.f32.mrf.mxu0
      %1130 = vmatprep.mubr.f32.mxu0 0.0
      %1131 = vmatmul.mubr.f32.gmra.mxu0 %v789
      %v1132 = vpop.f32.mrf.mxu0
      %v1133 = vadd.f32 0.0, %v1132
      %v1134 = vpop.f32.mrf.mxu0
      %1135 = vmatprep.mubr.f32.mxu0 0.0
      %1136 = vmatmul.mubr.f32.gmra.mxu0 %v792
      %v1137 = vpop.f32.mrf.mxu0
      %v1138 = vadd.f32 0.0, %v1137
      %v1139 = vpop.f32.mrf.mxu0
      %1140 = vmatprep.mubr.f32.mxu0 0.0
      %1141 = vmatmul.mubr.f32.gmra.mxu0 %v795
      %v1142 = vpop.f32.mrf.mxu0
      %v1143 = vadd.f32 0.0, %v1142
      %v1144 = vpop.f32.mrf.mxu0
      %1145 = vmatprep.mubr.f32.mxu0 0.0
      %1146 = vmatmul.mubr.f32.gmra.mxu0 %v798
      %v1147 = vpop.f32.mrf.mxu0
      %v1148 = vadd.f32 0.0, %v1147
      %v1149 = vpop.f32.mrf.mxu0
      %1150 = vmatprep.mubr.f32.mxu0 0.0
      %1151 = vmatmul.mubr.f32.gmra.mxu0 %v801
      %v1152 = vpop.f32.mrf.mxu0
      %v1153 = vadd.f32 0.0, %v1152
      %v1154 = vpop.f32.mrf.mxu0
      %1155 = vmatprep.mubr.f32.mxu0 0.0
      %1156 = vmatmul.mubr.f32.gmra.mxu0 %v804
      %v1157 = vpop.f32.mrf.mxu0
      %v1158 = vadd.f32 0.0, %v1157
      %v1159 = vpop.f32.mrf.mxu0
      %1160 = vmatprep.mubr.f32.mxu0 0.0
      %1161 = vmatmul.mubr.f32.gmra.mxu0 %v807
      %v1162 = vpop.f32.mrf.mxu0
      %v1163 = vadd.f32 0.0, %v1162
      %v1164 = vpop.f32.mrf.mxu0
      %1165 = vmatprep.mubr.f32.mxu0 0.0
      %1166 = vmatmul.mubr.f32.gmra.mxu0 %v810
      %v1167 = vpop.f32.mrf.mxu0
      %v1168 = vadd.f32 0.0, %v1167
      %v1169 = vpop.f32.mrf.mxu0
      %1170 = vmatprep.mubr.f32.mxu0 0.0
      %1171 = vmatmul.mubr.f32.gmra.mxu0 %v813
      %v1172 = vpop.f32.mrf.mxu0
      %v1173 = vadd.f32 0.0, %v1172
      %v1174 = vpop.f32.mrf.mxu0
      %1175 = vmatprep.mubr.f32.mxu0 0.0
      %1176 = vmatmul.mubr.f32.gmra.mxu0 %v816
      %v1177 = vpop.f32.mrf.mxu0
      %v1178 = vadd.f32 0.0, %v1177
      %v1179 = vpop.f32.mrf.mxu0
      %1180 = vmatprep.mubr.f32.mxu0 0.0
      %1181 = vmatmul.mubr.f32.gmra.mxu0 %v819
      %v1182 = vpop.f32.mrf.mxu0
      %v1183 = vadd.f32 0.0, %v1182
      %v1184 = vpop.f32.mrf.mxu0
      %1185 = vmatprep.mubr.f32.mxu0 0.0
      %1186 = vmatmul.mubr.f32.gmra.mxu0 %v822
      %v1187 = vpop.f32.mrf.mxu0
      %v1188 = vadd.f32 0.0, %v1187
      %v1189 = vpop.f32.mrf.mxu0
      %1190 = vmatprep.mubr.f32.mxu0 0.0
      %1191 = vmatmul.mubr.f32.gmra.mxu0 %v825
      %v1192 = vpop.f32.mrf.mxu0
      %v1193 = vadd.f32 0.0, %v1192
      %v1194 = vpop.f32.mrf.mxu0
      %1195 = vmatprep.mubr.f32.mxu0 0.0
      %1196 = vmatmul.mubr.f32.gmra.mxu0 %v828
      %v1197 = vpop.f32.mrf.mxu0
      %v1198 = vadd.f32 0.0, %v1197
      %v1199 = vpop.f32.mrf.mxu0
      %1200 = vmatprep.mubr.f32.mxu0 0.0
      %1201 = vmatmul.mubr.f32.gmra.mxu0 %v831
      %v1202 = vpop.f32.mrf.mxu0
      %v1203 = vadd.f32 0.0, %v1202
      %v1204 = vpop.f32.mrf.mxu0
      %1205 = vmatprep.mubr.f32.mxu0 0.0
      %1206 = vmatmul.mubr.f32.gmra.mxu0 %v834
      %v1207 = vpop.f32.mrf.mxu0
      %v1208 = vadd.f32 0.0, %v1207
      %v1209 = vpop.f32.mrf.mxu0
      %1210 = vmatprep.mubr.f32.mxu0 0.0
      %1211 = vmatmul.mubr.f32.gmra.mxu0 %v837
      %v1212 = vpop.f32.mrf.mxu0
      %v1213 = vadd.f32 0.0, %v1212
      %v1214 = vpop.f32.mrf.mxu0
      %1215 = vmatprep.mubr.f32.mxu0 0.0
      %1216 = vmatmul.mubr.f32.gmra.mxu0 %v840
      %v1217 = vpop.f32.mrf.mxu0
      %v1218 = vadd.f32 0.0, %v1217
      %v1219 = vpop.f32.mrf.mxu0
      %1220 = vmatprep.mubr.f32.mxu0 0.0
      %1221 = vmatmul.mubr.f32.gmra.mxu0 %v843
      %v1222 = vpop.f32.mrf.mxu0
      %v1223 = vadd.f32 0.0, %v1222
      %v1224 = vpop.f32.mrf.mxu0
      %1225 = vmatprep.mubr.f32.mxu0 0.0
      %1226 = vmatmul.mubr.f32.gmra.mxu0 %v846
      %v1227 = vpop.f32.mrf.mxu0
      %v1228 = vadd.f32 0.0, %v1227
      %v1229 = vpop.f32.mrf.mxu0
      %1230 = vmatprep.mubr.f32.mxu0 0.0
      %1231 = vmatmul.mubr.f32.gmra.mxu0 %v849
      %v1232 = vpop.f32.mrf.mxu0
      %v1233 = vadd.f32 0.0, %v1232
      %v1234 = vpop.f32.mrf.mxu0
      %1235 = vmatprep.mubr.f32.mxu0 0.0
      %1236 = vmatmul.mubr.f32.gmra.mxu0 %v852
      %v1237 = vpop.f32.mrf.mxu0
      %v1238 = vadd.f32 0.0, %v1237
      %v1239 = vpop.f32.mrf.mxu0
      %1240 = vmatprep.mubr.f32.mxu0 0.0
      %1241 = vmatmul.mubr.f32.gmra.mxu0 %v855
      %v1242 = vpop.f32.mrf.mxu0
      %v1243 = vadd.f32 0.0, %v1242
      %v1244 = vpop.f32.mrf.mxu0
      %1245 = vmatprep.mubr.f32.mxu0 0.0
      %1246 = vmatmul.mubr.f32.gmra.mxu0 %v858
      %v1247 = vpop.f32.mrf.mxu0
      %v1248 = vadd.f32 0.0, %v1247
      %v1249 = vpop.f32.mrf.mxu0
      %1250 = vmatprep.mubr.f32.mxu0 0.0
      %1251 = vmatmul.mubr.f32.gmra.mxu0 %v861
      %v1252 = vpop.f32.mrf.mxu0
      %v1253 = vadd.f32 0.0, %v1252
      %v1254 = vpop.f32.mrf.mxu0
      %1255 = vmatprep.mubr.f32.mxu0 0.0
      %1256 = vmatmul.mubr.f32.gmra.mxu0 %v864
      %v1257 = vpop.f32.mrf.mxu0
      %v1258 = vadd.f32 0.0, %v1257
      %v1259 = vpop.f32.mrf.mxu0
      %1260 = vmatprep.mubr.f32.mxu0 0.0
      %1261 = vmatmul.mubr.f32.gmra.mxu0 %v867
      %v1262 = vpop.f32.mrf.mxu0
      %v1263 = vadd.f32 0.0, %v1262
      %v1264 = vpop.f32.mrf.mxu0
      %1265 = vmatprep.mubr.f32.mxu0 0.0
      %1266 = vmatmul.mubr.f32.gmra.mxu0 %v870
      %v1267 = vpop.f32.mrf.mxu0
      %v1268 = vadd.f32 0.0, %v1267
      %v1269 = vpop.f32.mrf.mxu0
      %1270 = vmatprep.mubr.f32.mxu0 0.0
      %1271 = vmatmul.mubr.f32.gmra.mxu0 %v873
      %v1272 = vpop.f32.mrf.mxu0
      %v1273 = vadd.f32 0.0, %v1272
      %v1274 = vpop.f32.mrf.mxu0
      %1275 = vmatprep.mubr.f32.mxu0 0.0
      %1276 = vmatmul.mubr.f32.gmra.mxu0 %v876
      %v1277 = vpop.f32.mrf.mxu0
      %v1278 = vadd.f32 0.0, %v1277
      %v1279 = vpop.f32.mrf.mxu0
      %1280 = vmatprep.mubr.f32.mxu0 0.0
      %1281 = vmatmul.mubr.f32.gmra.mxu0 %v879
      %v1282 = vpop.f32.mrf.mxu0
      %v1283 = vadd.f32 0.0, %v1282
      %v1284 = vpop.f32.mrf.mxu0
      %1285 = vmatprep.mubr.f32.mxu0 0.0
      %1286 = vmatmul.mubr.f32.gmra.mxu0 %v882
      %v1287 = vpop.f32.mrf.mxu0
      %v1288 = vadd.f32 0.0, %v1287
      %v1289 = vpop.f32.mrf.mxu0
      %1290 = vmatprep.mubr.f32.mxu0 0.0
      %1291 = vmatmul.mubr.f32.gmra.mxu0 %v885
      %v1292 = vpop.f32.mrf.mxu0
      %v1293 = vadd.f32 0.0, %v1292
      %v1294 = vpop.f32.mrf.mxu0
      %1295 = vmatprep.mubr.f32.mxu0 0.0
      %1296 = vmatmul.mubr.f32.gmra.mxu0 %v888
      %v1297 = vpop.f32.mrf.mxu0
      %v1298 = vadd.f32 0.0, %v1297
      %v1299 = vpop.f32.mrf.mxu0
      %1300 = vmatprep.mubr.f32.mxu0 0.0
      %1301 = vmatmul.mubr.f32.gmra.mxu0 %v891
      %v1302 = vpop.f32.mrf.mxu0
      %v1303 = vadd.f32 0.0, %v1302
      %v1304 = vpop.f32.mrf.mxu0
      %1305 = vmatprep.mubr.f32.mxu0 0.0
      %1306 = vmatmul.mubr.f32.gmra.mxu0 %v894
      %v1307 = vpop.f32.mrf.mxu0
      %v1308 = vadd.f32 0.0, %v1307
      %v1309 = vpop.f32.mrf.mxu0
      %1310 = vmatprep.mubr.f32.mxu0 0.0
      %1311 = vmatmul.mubr.f32.gmra.mxu0 %v897
      %v1312 = vpop.f32.mrf.mxu0
      %v1313 = vadd.f32 0.0, %v1312
      %v1314 = vpop.f32.mrf.mxu0
      %1315 = vmatprep.mubr.f32.mxu0 0.0
      %1316 = vmatmul.mubr.f32.gmra.mxu0 %v900
      %v1317 = vpop.f32.mrf.mxu0
      %v1318 = vadd.f32 0.0, %v1317
      %v1319 = vpop.f32.mrf.mxu0
      %1320 = vmatprep.mubr.f32.mxu0 0.0
      %1321 = vmatmul.mubr.f32.gmra.mxu0 %v903
      %v1322 = vpop.f32.mrf.mxu0
      %v1323 = vadd.f32 0.0, %v1322
      %v1324 = vpop.f32.mrf.mxu0
      %1325 = vmatprep.mubr.f32.mxu0 0.0
      %1326 = vmatmul.mubr.f32.gmra.mxu0 %v906
      %v1327 = vpop.f32.mrf.mxu0
      %v1328 = vadd.f32 0.0, %v1327
      %v1329 = vpop.f32.mrf.mxu0
      %1330 = vmatprep.mubr.f32.mxu0 0.0
      %1331 = vmatmul.mubr.f32.gmra.mxu0 %v909
      %v1332 = vpop.f32.mrf.mxu0
      %v1333 = vadd.f32 0.0, %v1332
      %v1334 = vpop.f32.mrf.mxu0
      %1335 = vdwg.mxu0
      %1336 = vrot.lane.b32.xlu0 %v552, 64
      %v1337 = vpop.permute.xlu0 %1336
      %1338 = vrot.lane.b32.xlu0 %v557, 64
      %v1339 = vpop.permute.xlu0 %1338
      %1340 = vrot.lane.b32.xlu0 %v562, 64
      %v1341 = vpop.permute.xlu0 %1340
      %1342 = vrot.lane.b32.xlu0 %v567, 64
      %v1343 = vpop.permute.xlu0 %1342
      %1344 = vrot.lane.b32.xlu0 %v572, 64
      %v1345 = vpop.permute.xlu0 %1344
      %1346 = vrot.lane.b32.xlu0 %v577, 64
      %v1347 = vpop.permute.xlu0 %1346
      %1348 = vrot.lane.b32.xlu0 %v582, 64
      %v1349 = vpop.permute.xlu0 %1348
      %1350 = vrot.lane.b32.xlu0 %v587, 64
      %v1351 = vpop.permute.xlu0 %1350
      %1360 = vmatprep.subr.mxu0 0.0
      %1361 = vmatpush1.msra.mxu0 0.0
      %1362 = vmatprep.subr.mxu0 0.0
      %1363 = vmatpush1.msra.mxu0 0.0
      %1364 = vmatprep.subr.mxu0 0.0
      %1365 = vmatpush1.msra.mxu0 0.0
      %1366 = vmatprep.subr.mxu0 0.0
      %1367 = vmatpush1.msra.mxu0 0.0
      %1368 = vmatprep.subr.mxu0 0.0
      %1369 = vmatpush1.msra.mxu0 0.0
      %1370 = vmatprep.subr.mxu0 0.0
      %1371 = vmatpush1.msra.mxu0 0.0
      %1372 = vmatprep.subr.mxu0 0.0
      %1373 = vmatpush1.msra.mxu0 0.0
      %1374 = vmatprep.subr.mxu0 0.0
      %1375 = vmatpush1.msra.mxu0 0.0
      %1376 = vmatprep.subr.mxu0 0.0
      %1377 = vmatpush1.msra.mxu0 %v1351
      %1378 = vmatprep.subr.mxu0 0.0
      %1379 = vmatpush1.msra.mxu0 %v1349
      %1380 = vmatprep.subr.mxu0 0.0
      %1381 = vmatpush1.msra.mxu0 %v1347
      %1382 = vmatprep.subr.mxu0 0.0
      %1383 = vmatpush1.msra.mxu0 %v1345
      %1384 = vmatprep.subr.mxu0 0.0
      %1385 = vmatpush1.msra.mxu0 %v1343
      %1386 = vmatprep.subr.mxu0 0.0
      %1387 = vmatpush1.msra.mxu0 %v1341
      %1388 = vmatprep.subr.mxu0 0.0
      %1389 = vmatpush1.msra.mxu0 %v1339
      %1390 = vmatprep.subr.mxu0 0.0
      %1391 = vmatpush1.msra.mxu0 %v1337
      %1392 = vmatprep.subr.mxu0 0.0
      %1393 = vmatpush2.msra.mxu0 0.0
      %1394 = vmatprep.subr.mxu0 0.0
      %1395 = vmatpush2.msra.mxu0 0.0
      %1396 = vmatprep.subr.mxu0 0.0
      %1397 = vmatpush2.msra.mxu0 0.0
      %1398 = vmatprep.subr.mxu0 0.0
      %1399 = vmatpush2.msra.mxu0 0.0
      %1400 = vmatprep.subr.mxu0 0.0
      %1401 = vmatpush2.msra.mxu0 0.0
      %1402 = vmatprep.subr.mxu0 0.0
      %1403 = vmatpush2.msra.mxu0 0.0
      %1404 = vmatprep.subr.mxu0 0.0
      %1405 = vmatpush2.msra.mxu0 0.0
      %1406 = vmatprep.subr.mxu0 0.0
      %1407 = vmatpush2.msra.mxu0 0.0
      %1408 = vmatprep.subr.mxu0 0.0
      %1409 = vmatpush2.msra.mxu0 0.0
      %1410 = vmatprep.subr.mxu0 0.0
      %1411 = vmatpush2.msra.mxu0 0.0
      %1412 = vmatprep.subr.mxu0 0.0
      %1413 = vmatpush2.msra.mxu0 0.0
      %1414 = vmatprep.subr.mxu0 0.0
      %1415 = vmatpush2.msra.mxu0 0.0
      %1416 = vmatprep.subr.mxu0 0.0
      %1417 = vmatpush2.msra.mxu0 0.0
      %1418 = vmatprep.subr.mxu0 0.0
      %1419 = vmatpush2.msra.mxu0 0.0
      %1420 = vmatprep.subr.mxu0 0.0
      %1421 = vmatpush2.msra.mxu0 0.0
      %1422 = vmatprep.subr.mxu0 0.0
      %1423 = vmatpush2.msra.mxu0 0.0
      %1424 = vmatprep.mubr.f32.mxu0 0.0
      %1425 = vmatmul.mubr.f32.gmra.mxu0 %v696
      %v1426 = vpop.f32.mrf.mxu0
      %v1427 = vadd.f32 0.0, %v1426
      %v1428 = vpop.f32.mrf.mxu0
      %1429 = vmatprep.mubr.f32.mxu0 0.0
      %1430 = vmatmul.mubr.f32.gmra.mxu0 %v699
      %v1431 = vpop.f32.mrf.mxu0
      %v1432 = vadd.f32 0.0, %v1431
      %v1433 = vpop.f32.mrf.mxu0
      %1434 = vmatprep.mubr.f32.mxu0 0.0
      %1435 = vmatmul.mubr.f32.gmra.mxu0 %v702
      %v1436 = vpop.f32.mrf.mxu0
      %v1437 = vadd.f32 0.0, %v1436
      %v1438 = vpop.f32.mrf.mxu0
      %1439 = vmatprep.mubr.f32.mxu0 0.0
      %1440 = vmatmul.mubr.f32.gmra.mxu0 %v705
      %v1441 = vpop.f32.mrf.mxu0
      %v1442 = vadd.f32 0.0, %v1441
      %v1443 = vpop.f32.mrf.mxu0
      %1444 = vmatprep.mubr.f32.mxu0 0.0
      %1445 = vmatmul.mubr.f32.gmra.mxu0 %v708
      %v1446 = vpop.f32.mrf.mxu0
      %v1447 = vadd.f32 0.0, %v1446
      %v1448 = vpop.f32.mrf.mxu0
      %1449 = vmatprep.mubr.f32.mxu0 0.0
      %1450 = vmatmul.mubr.f32.gmra.mxu0 %v711
      %v1451 = vpop.f32.mrf.mxu0
      %v1452 = vadd.f32 0.0, %v1451
      %v1453 = vpop.f32.mrf.mxu0
      %1454 = vmatprep.mubr.f32.mxu0 0.0
      %1455 = vmatmul.mubr.f32.gmra.mxu0 %v714
      %v1456 = vpop.f32.mrf.mxu0
      %v1457 = vadd.f32 0.0, %v1456
      %v1458 = vpop.f32.mrf.mxu0
      %1459 = vmatprep.mubr.f32.mxu0 0.0
      %1460 = vmatmul.mubr.f32.gmra.mxu0 %v717
      %v1461 = vpop.f32.mrf.mxu0
      %v1462 = vadd.f32 0.0, %v1461
      %v1463 = vpop.f32.mrf.mxu0
      %1464 = vmatprep.mubr.f32.mxu0 0.0
      %1465 = vmatmul.mubr.f32.gmra.mxu0 %v720
      %v1466 = vpop.f32.mrf.mxu0
      %v1467 = vadd.f32 0.0, %v1466
      %v1468 = vpop.f32.mrf.mxu0
      %1469 = vmatprep.mubr.f32.mxu0 0.0
      %1470 = vmatmul.mubr.f32.gmra.mxu0 %v723
      %v1471 = vpop.f32.mrf.mxu0
      %v1472 = vadd.f32 0.0, %v1471
      %v1473 = vpop.f32.mrf.mxu0
      %1474 = vmatprep.mubr.f32.mxu0 0.0
      %1475 = vmatmul.mubr.f32.gmra.mxu0 %v726
      %v1476 = vpop.f32.mrf.mxu0
      %v1477 = vadd.f32 0.0, %v1476
      %v1478 = vpop.f32.mrf.mxu0
      %1479 = vmatprep.mubr.f32.mxu0 0.0
      %1480 = vmatmul.mubr.f32.gmra.mxu0 %v729
      %v1481 = vpop.f32.mrf.mxu0
      %v1482 = vadd.f32 0.0, %v1481
      %v1483 = vpop.f32.mrf.mxu0
      %1484 = vmatprep.mubr.f32.mxu0 0.0
      %1485 = vmatmul.mubr.f32.gmra.mxu0 %v732
      %v1486 = vpop.f32.mrf.mxu0
      %v1487 = vadd.f32 0.0, %v1486
      %v1488 = vpop.f32.mrf.mxu0
      %1489 = vmatprep.mubr.f32.mxu0 0.0
      %1490 = vmatmul.mubr.f32.gmra.mxu0 %v735
      %v1491 = vpop.f32.mrf.mxu0
      %v1492 = vadd.f32 0.0, %v1491
      %v1493 = vpop.f32.mrf.mxu0
      %1494 = vmatprep.mubr.f32.mxu0 0.0
      %1495 = vmatmul.mubr.f32.gmra.mxu0 %v738
      %v1496 = vpop.f32.mrf.mxu0
      %v1497 = vadd.f32 0.0, %v1496
      %v1498 = vpop.f32.mrf.mxu0
      %1499 = vmatprep.mubr.f32.mxu0 0.0
      %1500 = vmatmul.mubr.f32.gmra.mxu0 %v741
      %v1501 = vpop.f32.mrf.mxu0
      %v1502 = vadd.f32 0.0, %v1501
      %v1503 = vpop.f32.mrf.mxu0
      %1504 = vmatprep.mubr.f32.mxu0 0.0
      %1505 = vmatmul.mubr.f32.gmra.mxu0 %v744
      %v1506 = vpop.f32.mrf.mxu0
      %v1507 = vadd.f32 0.0, %v1506
      %v1508 = vpop.f32.mrf.mxu0
      %1509 = vmatprep.mubr.f32.mxu0 0.0
      %1510 = vmatmul.mubr.f32.gmra.mxu0 %v747
      %v1511 = vpop.f32.mrf.mxu0
      %v1512 = vadd.f32 0.0, %v1511
      %v1513 = vpop.f32.mrf.mxu0
      %1514 = vmatprep.mubr.f32.mxu0 0.0
      %1515 = vmatmul.mubr.f32.gmra.mxu0 %v750
      %v1516 = vpop.f32.mrf.mxu0
      %v1517 = vadd.f32 0.0, %v1516
      %v1518 = vpop.f32.mrf.mxu0
      %1519 = vmatprep.mubr.f32.mxu0 0.0
      %1520 = vmatmul.mubr.f32.gmra.mxu0 %v753
      %v1521 = vpop.f32.mrf.mxu0
      %v1522 = vadd.f32 0.0, %v1521
      %v1523 = vpop.f32.mrf.mxu0
      %1524 = vmatprep.mubr.f32.mxu0 0.0
      %1525 = vmatmul.mubr.f32.gmra.mxu0 %v756
      %v1526 = vpop.f32.mrf.mxu0
      %v1527 = vadd.f32 0.0, %v1526
      %v1528 = vpop.f32.mrf.mxu0
      %1529 = vmatprep.mubr.f32.mxu0 0.0
      %1530 = vmatmul.mubr.f32.gmra.mxu0 %v759
      %v1531 = vpop.f32.mrf.mxu0
      %v1532 = vadd.f32 0.0, %v1531
      %v1533 = vpop.f32.mrf.mxu0
      %1534 = vmatprep.mubr.f32.mxu0 0.0
      %1535 = vmatmul.mubr.f32.gmra.mxu0 %v762
      %v1536 = vpop.f32.mrf.mxu0
      %v1537 = vadd.f32 0.0, %v1536
      %v1538 = vpop.f32.mrf.mxu0
      %1539 = vmatprep.mubr.f32.mxu0 0.0
      %1540 = vmatmul.mubr.f32.gmra.mxu0 %v765
      %v1541 = vpop.f32.mrf.mxu0
      %v1542 = vadd.f32 0.0, %v1541
      %v1543 = vpop.f32.mrf.mxu0
      %1544 = vmatprep.mubr.f32.mxu0 0.0
      %1545 = vmatmul.mubr.f32.gmra.mxu0 %v768
      %v1546 = vpop.f32.mrf.mxu0
      %v1547 = vadd.f32 0.0, %v1546
      %v1548 = vpop.f32.mrf.mxu0
      %1549 = vmatprep.mubr.f32.mxu0 0.0
      %1550 = vmatmul.mubr.f32.gmra.mxu0 %v771
      %v1551 = vpop.f32.mrf.mxu0
      %v1552 = vadd.f32 0.0, %v1551
      %v1553 = vpop.f32.mrf.mxu0
      %1554 = vmatprep.mubr.f32.mxu0 0.0
      %1555 = vmatmul.mubr.f32.gmra.mxu0 %v774
      %v1556 = vpop.f32.mrf.mxu0
      %v1557 = vadd.f32 0.0, %v1556
      %v1558 = vpop.f32.mrf.mxu0
      %1559 = vmatprep.mubr.f32.mxu0 0.0
      %1560 = vmatmul.mubr.f32.gmra.mxu0 %v777
      %v1561 = vpop.f32.mrf.mxu0
      %v1562 = vadd.f32 0.0, %v1561
      %v1563 = vpop.f32.mrf.mxu0
      %1564 = vmatprep.mubr.f32.mxu0 0.0
      %1565 = vmatmul.mubr.f32.gmra.mxu0 %v780
      %v1566 = vpop.f32.mrf.mxu0
      %v1567 = vadd.f32 0.0, %v1566
      %v1568 = vpop.f32.mrf.mxu0
      %1569 = vmatprep.mubr.f32.mxu0 0.0
      %1570 = vmatmul.mubr.f32.gmra.mxu0 %v783
      %v1571 = vpop.f32.mrf.mxu0
      %v1572 = vadd.f32 0.0, %v1571
      %v1573 = vpop.f32.mrf.mxu0
      %1574 = vmatprep.mubr.f32.mxu0 0.0
      %1575 = vmatmul.mubr.f32.gmra.mxu0 %v786
      %v1576 = vpop.f32.mrf.mxu0
      %v1577 = vadd.f32 0.0, %v1576
      %v1578 = vpop.f32.mrf.mxu0
      %1579 = vmatprep.mubr.f32.mxu0 0.0
      %1580 = vmatmul.mubr.f32.gmra.mxu0 %v789
      %v1581 = vpop.f32.mrf.mxu0
      %v1582 = vadd.f32 0.0, %v1581
      %v1583 = vpop.f32.mrf.mxu0
      %1584 = vmatprep.mubr.f32.mxu0 0.0
      %1585 = vmatmul.mubr.f32.gmra.mxu0 %v792
      %v1586 = vpop.f32.mrf.mxu0
      %v1587 = vadd.f32 0.0, %v1586
      %v1588 = vpop.f32.mrf.mxu0
      %1589 = vmatprep.mubr.f32.mxu0 0.0
      %1590 = vmatmul.mubr.f32.gmra.mxu0 %v795
      %v1591 = vpop.f32.mrf.mxu0
      %v1592 = vadd.f32 0.0, %v1591
      %v1593 = vpop.f32.mrf.mxu0
      %1594 = vmatprep.mubr.f32.mxu0 0.0
      %1595 = vmatmul.mubr.f32.gmra.mxu0 %v798
      %v1596 = vpop.f32.mrf.mxu0
      %v1597 = vadd.f32 0.0, %v1596
      %v1598 = vpop.f32.mrf.mxu0
      %1599 = vmatprep.mubr.f32.mxu0 0.0
      %1600 = vmatmul.mubr.f32.gmra.mxu0 %v801
      %v1601 = vpop.f32.mrf.mxu0
      %v1602 = vadd.f32 0.0, %v1601
      %v1603 = vpop.f32.mrf.mxu0
      %1604 = vmatprep.mubr.f32.mxu0 0.0
      %1605 = vmatmul.mubr.f32.gmra.mxu0 %v804
      %v1606 = vpop.f32.mrf.mxu0
      %v1607 = vadd.f32 0.0, %v1606
      %v1608 = vpop.f32.mrf.mxu0
      %1609 = vmatprep.mubr.f32.mxu0 0.0
      %1610 = vmatmul.mubr.f32.gmra.mxu0 %v807
      %v1611 = vpop.f32.mrf.mxu0
      %v1612 = vadd.f32 0.0, %v1611
      %v1613 = vpop.f32.mrf.mxu0
      %1614 = vmatprep.mubr.f32.mxu0 0.0
      %1615 = vmatmul.mubr.f32.gmra.mxu0 %v810
      %v1616 = vpop.f32.mrf.mxu0
      %v1617 = vadd.f32 0.0, %v1616
      %v1618 = vpop.f32.mrf.mxu0
      %1619 = vmatprep.mubr.f32.mxu0 0.0
      %1620 = vmatmul.mubr.f32.gmra.mxu0 %v813
      %v1621 = vpop.f32.mrf.mxu0
      %v1622 = vadd.f32 0.0, %v1621
      %v1623 = vpop.f32.mrf.mxu0
      %1624 = vmatprep.mubr.f32.mxu0 0.0
      %1625 = vmatmul.mubr.f32.gmra.mxu0 %v816
      %v1626 = vpop.f32.mrf.mxu0
      %v1627 = vadd.f32 0.0, %v1626
      %v1628 = vpop.f32.mrf.mxu0
      %1629 = vmatprep.mubr.f32.mxu0 0.0
      %1630 = vmatmul.mubr.f32.gmra.mxu0 %v819
      %v1631 = vpop.f32.mrf.mxu0
      %v1632 = vadd.f32 0.0, %v1631
      %v1633 = vpop.f32.mrf.mxu0
      %1634 = vmatprep.mubr.f32.mxu0 0.0
      %1635 = vmatmul.mubr.f32.gmra.mxu0 %v822
      %v1636 = vpop.f32.mrf.mxu0
      %v1637 = vadd.f32 0.0, %v1636
      %v1638 = vpop.f32.mrf.mxu0
      %1639 = vmatprep.mubr.f32.mxu0 0.0
      %1640 = vmatmul.mubr.f32.gmra.mxu0 %v825
      %v1641 = vpop.f32.mrf.mxu0
      %v1642 = vadd.f32 0.0, %v1641
      %v1643 = vpop.f32.mrf.mxu0
      %1644 = vmatprep.mubr.f32.mxu0 0.0
      %1645 = vmatmul.mubr.f32.gmra.mxu0 %v828
      %v1646 = vpop.f32.mrf.mxu0
      %v1647 = vadd.f32 0.0, %v1646
      %v1648 = vpop.f32.mrf.mxu0
      %1649 = vmatprep.mubr.f32.mxu0 0.0
      %1650 = vmatmul.mubr.f32.gmra.mxu0 %v831
      %v1651 = vpop.f32.mrf.mxu0
      %v1652 = vadd.f32 0.0, %v1651
      %v1653 = vpop.f32.mrf.mxu0
      %1654 = vmatprep.mubr.f32.mxu0 0.0
      %1655 = vmatmul.mubr.f32.gmra.mxu0 %v834
      %v1656 = vpop.f32.mrf.mxu0
      %v1657 = vadd.f32 0.0, %v1656
      %v1658 = vpop.f32.mrf.mxu0
      %1659 = vmatprep.mubr.f32.mxu0 0.0
      %1660 = vmatmul.mubr.f32.gmra.mxu0 %v837
      %v1661 = vpop.f32.mrf.mxu0
      %v1662 = vadd.f32 0.0, %v1661
      %v1663 = vpop.f32.mrf.mxu0
      %1664 = vmatprep.mubr.f32.mxu0 0.0
      %1665 = vmatmul.mubr.f32.gmra.mxu0 %v840
      %v1666 = vpop.f32.mrf.mxu0
      %v1667 = vadd.f32 0.0, %v1666
      %v1668 = vpop.f32.mrf.mxu0
      %1669 = vmatprep.mubr.f32.mxu0 0.0
      %1670 = vmatmul.mubr.f32.gmra.mxu0 %v843
      %v1671 = vpop.f32.mrf.mxu0
      %v1672 = vadd.f32 0.0, %v1671
      %v1673 = vpop.f32.mrf.mxu0
      %1674 = vmatprep.mubr.f32.mxu0 0.0
      %1675 = vmatmul.mubr.f32.gmra.mxu0 %v846
      %v1676 = vpop.f32.mrf.mxu0
      %v1677 = vadd.f32 0.0, %v1676
      %v1678 = vpop.f32.mrf.mxu0
      %1679 = vmatprep.mubr.f32.mxu0 0.0
      %1680 = vmatmul.mubr.f32.gmra.mxu0 %v849
      %v1681 = vpop.f32.mrf.mxu0
      %v1682 = vadd.f32 0.0, %v1681
      %v1683 = vpop.f32.mrf.mxu0
      %1684 = vmatprep.mubr.f32.mxu0 0.0
      %1685 = vmatmul.mubr.f32.gmra.mxu0 %v852
      %v1686 = vpop.f32.mrf.mxu0
      %v1687 = vadd.f32 0.0, %v1686
      %v1688 = vpop.f32.mrf.mxu0
      %1689 = vmatprep.mubr.f32.mxu0 0.0
      %1690 = vmatmul.mubr.f32.gmra.mxu0 %v855
      %v1691 = vpop.f32.mrf.mxu0
      %v1692 = vadd.f32 0.0, %v1691
      %v1693 = vpop.f32.mrf.mxu0
      %1694 = vmatprep.mubr.f32.mxu0 0.0
      %1695 = vmatmul.mubr.f32.gmra.mxu0 %v858
      %v1696 = vpop.f32.mrf.mxu0
      %v1697 = vadd.f32 0.0, %v1696
      %v1698 = vpop.f32.mrf.mxu0
      %1699 = vmatprep.mubr.f32.mxu0 0.0
      %1700 = vmatmul.mubr.f32.gmra.mxu0 %v861
      %v1701 = vpop.f32.mrf.mxu0
      %v1702 = vadd.f32 0.0, %v1701
      %v1703 = vpop.f32.mrf.mxu0
      %1704 = vmatprep.mubr.f32.mxu0 0.0
      %1705 = vmatmul.mubr.f32.gmra.mxu0 %v864
      %v1706 = vpop.f32.mrf.mxu0
      %v1707 = vadd.f32 0.0, %v1706
      %v1708 = vpop.f32.mrf.mxu0
      %1709 = vmatprep.mubr.f32.mxu0 0.0
      %1710 = vmatmul.mubr.f32.gmra.mxu0 %v867
      %v1711 = vpop.f32.mrf.mxu0
      %v1712 = vadd.f32 0.0, %v1711
      %v1713 = vpop.f32.mrf.mxu0
      %1714 = vmatprep.mubr.f32.mxu0 0.0
      %1715 = vmatmul.mubr.f32.gmra.mxu0 %v870
      %v1716 = vpop.f32.mrf.mxu0
      %v1717 = vadd.f32 0.0, %v1716
      %v1718 = vpop.f32.mrf.mxu0
      %1719 = vmatprep.mubr.f32.mxu0 0.0
      %1720 = vmatmul.mubr.f32.gmra.mxu0 %v873
      %v1721 = vpop.f32.mrf.mxu0
      %v1722 = vadd.f32 0.0, %v1721
      %v1723 = vpop.f32.mrf.mxu0
      %1724 = vmatprep.mubr.f32.mxu0 0.0
      %1725 = vmatmul.mubr.f32.gmra.mxu0 %v876
      %v1726 = vpop.f32.mrf.mxu0
      %v1727 = vadd.f32 0.0, %v1726
      %v1728 = vpop.f32.mrf.mxu0
      %1729 = vmatprep.mubr.f32.mxu0 0.0
      %1730 = vmatmul.mubr.f32.gmra.mxu0 %v879
      %v1731 = vpop.f32.mrf.mxu0
      %v1732 = vadd.f32 0.0, %v1731
      %v1733 = vpop.f32.mrf.mxu0
      %1734 = vmatprep.mubr.f32.mxu0 0.0
      %1735 = vmatmul.mubr.f32.gmra.mxu0 %v882
      %v1736 = vpop.f32.mrf.mxu0
      %v1737 = vadd.f32 0.0, %v1736
      %v1738 = vpop.f32.mrf.mxu0
      %1739 = vmatprep.mubr.f32.mxu0 0.0
      %1740 = vmatmul.mubr.f32.gmra.mxu0 %v885
      %v1741 = vpop.f32.mrf.mxu0
      %v1742 = vadd.f32 0.0, %v1741
      %v1743 = vpop.f32.mrf.mxu0
      %1744 = vmatprep.mubr.f32.mxu0 0.0
      %1745 = vmatmul.mubr.f32.gmra.mxu0 %v888
      %v1746 = vpop.f32.mrf.mxu0
      %v1747 = vadd.f32 0.0, %v1746
      %v1748 = vpop.f32.mrf.mxu0
      %1749 = vmatprep.mubr.f32.mxu0 0.0
      %1750 = vmatmul.mubr.f32.gmra.mxu0 %v891
      %v1751 = vpop.f32.mrf.mxu0
      %v1752 = vadd.f32 0.0, %v1751
      %v1753 = vpop.f32.mrf.mxu0
      %1754 = vmatprep.mubr.f32.mxu0 0.0
      %1755 = vmatmul.mubr.f32.gmra.mxu0 %v894
      %v1756 = vpop.f32.mrf.mxu0
      %v1757 = vadd.f32 0.0, %v1756
      %v1758 = vpop.f32.mrf.mxu0
      %1759 = vmatprep.mubr.f32.mxu0 0.0
      %1760 = vmatmul.mubr.f32.gmra.mxu0 %v897
      %v1761 = vpop.f32.mrf.mxu0
      %v1762 = vadd.f32 0.0, %v1761
      %v1763 = vpop.f32.mrf.mxu0
      %1764 = vmatprep.mubr.f32.mxu0 0.0
      %1765 = vmatmul.mubr.f32.gmra.mxu0 %v900
      %v1766 = vpop.f32.mrf.mxu0
      %v1767 = vadd.f32 0.0, %v1766
      %v1768 = vpop.f32.mrf.mxu0
      %1769 = vmatprep.mubr.f32.mxu0 0.0
      %1770 = vmatmul.mubr.f32.gmra.mxu0 %v903
      %v1771 = vpop.f32.mrf.mxu0
      %v1772 = vadd.f32 0.0, %v1771
      %v1773 = vpop.f32.mrf.mxu0
      %1774 = vmatprep.mubr.f32.mxu0 0.0
      %1775 = vmatmul.mubr.f32.gmra.mxu0 %v906
      %v1776 = vpop.f32.mrf.mxu0
      %v1777 = vadd.f32 0.0, %v1776
      %v1778 = vpop.f32.mrf.mxu0
      %1779 = vmatprep.mubr.f32.mxu0 0.0
      %1780 = vmatmul.mubr.f32.gmra.mxu0 %v909
      %v1781 = vpop.f32.mrf.mxu0
      %v1782 = vadd.f32 0.0, %v1781
      %v1783 = vpop.f32.mrf.mxu0
      %1784 = vdwg.mxu0
      %v1785 = vmul.f32 %v552, %v978
      %v1786 = vmul.f32 %v557, %v983
      %v1787 = vmul.f32 %v562, %v988
      %v1788 = vmul.f32 %v567, %v993
      %v1789 = vmul.f32 %v572, %v998
      %v1790 = vmul.f32 %v577, %v1003
      %v1791 = vmul.f32 %v582, %v1008
      %v1792 = vmul.f32 %v587, %v1013
      %v1793 = vmul.f32 %v552, %v1018
      %v1794 = vmul.f32 %v557, %v1023
      %v1795 = vmul.f32 %v562, %v1028
      %v1796 = vmul.f32 %v567, %v1033
      %v1797 = vmul.f32 %v572, %v1038
      %v1798 = vmul.f32 %v577, %v1043
      %v1799 = vmul.f32 %v582, %v1048
      %v1800 = vmul.f32 %v587, %v1053
      %v1801 = vmul.f32 %v552, %v1058
      %v1802 = vmul.f32 %v557, %v1063
      %v1803 = vmul.f32 %v562, %v1068
      %v1804 = vmul.f32 %v567, %v1073
      %v1805 = vmul.f32 %v572, %v1078
      %v1806 = vmul.f32 %v577, %v1083
      %v1807 = vmul.f32 %v582, %v1088
      %v1808 = vmul.f32 %v587, %v1093
      %v1809 = vmul.f32 %v552, %v1098
      %v1810 = vmul.f32 %v557, %v1103
      %v1811 = vmul.f32 %v562, %v1108
      %v1812 = vmul.f32 %v567, %v1113
      %v1813 = vmul.f32 %v572, %v1118
      %v1814 = vmul.f32 %v577, %v1123
      %v1815 = vmul.f32 %v582, %v1128
      %v1816 = vmul.f32 %v587, %v1133
      %v1817 = vmul.f32 %v552, %v1138
      %v1818 = vmul.f32 %v557, %v1143
      %v1819 = vmul.f32 %v562, %v1148
      %v1820 = vmul.f32 %v567, %v1153
      %v1821 = vmul.f32 %v572, %v1158
      %v1822 = vmul.f32 %v577, %v1163
      %v1823 = vmul.f32 %v582, %v1168
      %v1824 = vmul.f32 %v587, %v1173
      %v1825 = vmul.f32 %v552, %v1178
      %v1826 = vmul.f32 %v557, %v1183
      %v1827 = vmul.f32 %v562, %v1188
      %v1828 = vmul.f32 %v567, %v1193
      %v1829 = vmul.f32 %v572, %v1198
      %v1830 = vmul.f32 %v577, %v1203
      %v1831 = vmul.f32 %v582, %v1208
      %v1832 = vmul.f32 %v587, %v1213
      %v1833 = vmul.f32 %v552, %v1218
      %v1834 = vmul.f32 %v557, %v1223
      %v1835 = vmul.f32 %v562, %v1228
      %v1836 = vmul.f32 %v567, %v1233
      %v1837 = vmul.f32 %v572, %v1238
      %v1838 = vmul.f32 %v577, %v1243
      %v1839 = vmul.f32 %v582, %v1248
      %v1840 = vmul.f32 %v587, %v1253
      %v1841 = vmul.f32 %v552, %v1258
      %v1842 = vmul.f32 %v557, %v1263
      %v1843 = vmul.f32 %v562, %v1268
      %v1844 = vmul.f32 %v567, %v1273
      %v1845 = vmul.f32 %v572, %v1278
      %v1846 = vmul.f32 %v577, %v1283
      %v1847 = vmul.f32 %v582, %v1288
      %v1848 = vmul.f32 %v587, %v1293
      %v1849 = vmul.f32 %v552, %v1298
      %v1850 = vmul.f32 %v557, %v1303
      %v1851 = vmul.f32 %v562, %v1308
      %v1852 = vmul.f32 %v567, %v1313
      %v1853 = vmul.f32 %v572, %v1318
      %v1854 = vmul.f32 %v577, %v1323
      %v1855 = vmul.f32 %v582, %v1328
      %v1856 = vmul.f32 %v587, %v1333
      %v1857 = vld [vmem:[%s5] sm:$0xff]
      %v1858 = vld [vmem:[%s5 + $0x8] sm:$0xff]
      %v1859 = vld [vmem:[%s5 + $0x10] sm:$0xff]
      %v1860 = vld [vmem:[%s5 + $0x18] sm:$0xff]
      %v1862 = vsel %vm460, %v1785, 0
      %v1865 = vsel %vm460, %v1786, 0
      %v1868 = vsel %vm460, %v1787, 0
      %v1871 = vsel %vm460, %v1788, 0
      %v1874 = vsel %vm460, %v1789, 0
      %v1877 = vsel %vm460, %v1790, 0
      %v1880 = vsel %vm460, %v1791, 0
      %v1883 = vsel %vm460, %v1792, 0
      %v1886 = vsel %vm460, %v1793, 0
      %v1889 = vsel %vm460, %v1794, 0
      %v1892 = vsel %vm460, %v1795, 0
      %v1895 = vsel %vm460, %v1796, 0
      %v1898 = vsel %vm460, %v1797, 0
      %v1901 = vsel %vm460, %v1798, 0
      %v1904 = vsel %vm460, %v1799, 0
      %v1907 = vsel %vm460, %v1800, 0
      %v1910 = vsel %vm460, %v1801, 0
      %v1913 = vsel %vm460, %v1802, 0
      %v1916 = vsel %vm460, %v1803, 0
      %v1919 = vsel %vm460, %v1804, 0
      %v1922 = vsel %vm460, %v1805, 0
      %v1925 = vsel %vm460, %v1806, 0
      %v1928 = vsel %vm460, %v1807, 0
      %v1931 = vsel %vm460, %v1808, 0
      %v1934 = vsel %vm460, %v1809, 0
      %v1937 = vsel %vm460, %v1810, 0
      %v1940 = vsel %vm460, %v1811, 0
      %v1943 = vsel %vm460, %v1812, 0
      %v1946 = vsel %vm460, %v1813, 0
      %v1949 = vsel %vm460, %v1814, 0
      %v1952 = vsel %vm460, %v1815, 0
      %v1955 = vsel %vm460, %v1816, 0
      %v1958 = vsel %vm460, %v1817, 0
      %v1961 = vsel %vm460, %v1818, 0
      %v1964 = vsel %vm460, %v1819, 0
      %v1967 = vsel %vm460, %v1820, 0
      %v1970 = vsel %vm460, %v1821, 0
      %v1973 = vsel %vm460, %v1822, 0
      %v1976 = vsel %vm460, %v1823, 0
      %v1979 = vsel %vm460, %v1824, 0
      %v1982 = vsel %vm460, %v1825, 0
      %v1985 = vsel %vm460, %v1826, 0
      %v1988 = vsel %vm460, %v1827, 0
      %v1991 = vsel %vm460, %v1828, 0
      %v1994 = vsel %vm460, %v1829, 0
      %v1997 = vsel %vm460, %v1830, 0
      %v2000 = vsel %vm460, %v1831, 0
      %v2003 = vsel %vm460, %v1832, 0
      %v2006 = vsel %vm460, %v1833, 0
      %v2009 = vsel %vm460, %v1834, 0
      %v2012 = vsel %vm460, %v1835, 0
      %v2015 = vsel %vm460, %v1836, 0
      %v2018 = vsel %vm460, %v1837, 0
      %v2021 = vsel %vm460, %v1838, 0
      %v2024 = vsel %vm460, %v1839, 0
      %v2027 = vsel %vm460, %v1840, 0
      %v2030 = vsel %vm460, %v1841, 0
      %v2033 = vsel %vm460, %v1842, 0
      %v2036 = vsel %vm460, %v1843, 0
      %v2039 = vsel %vm460, %v1844, 0
      %v2042 = vsel %vm460, %v1845, 0
      %v2045 = vsel %vm460, %v1846, 0
      %v2048 = vsel %vm460, %v1847, 0
      %v2051 = vsel %vm460, %v1848, 0
      %v2054 = vsel %vm460, %v1849, 0
      %v2057 = vsel %vm460, %v1850, 0
      %v2060 = vsel %vm460, %v1851, 0
      %v2063 = vsel %vm460, %v1852, 0
      %v2066 = vsel %vm460, %v1853, 0
      %v2069 = vsel %vm460, %v1854, 0
      %v2072 = vsel %vm460, %v1855, 0
      %v2075 = vsel %vm460, %v1856, 0
      %2077 = vmatprep.subr.mxu0 0.0
      %2078 = vmatpush1.msra.mxu0 0.0
      %2079 = vmatprep.subr.mxu0 0.0
      %2080 = vmatpush1.msra.mxu0 0.0
      %2081 = vmatprep.subr.mxu0 0.0
      %2082 = vmatpush1.msra.mxu0 0.0
      %2083 = vmatprep.subr.mxu0 0.0
      %2084 = vmatpush1.msra.mxu0 0.0
      %2085 = vmatprep.subr.mxu0 0.0
      %2086 = vmatpush1.msra.mxu0 0.0
      %2087 = vmatprep.subr.mxu0 0.0
      %2088 = vmatpush1.msra.mxu0 0.0
      %2089 = vmatprep.subr.mxu0 0.0
      %2090 = vmatpush1.msra.mxu0 0.0
      %2091 = vmatprep.subr.mxu0 0.0
      %2092 = vmatpush1.msra.mxu0 0.0
      %2093 = vmatprep.subr.mxu0 0.0
      %2094 = vmatpush1.msra.mxu0 0.0
      %2095 = vmatprep.subr.mxu0 0.0
      %2096 = vmatpush1.msra.mxu0 0.0
      %2097 = vmatprep.subr.mxu0 0.0
      %2098 = vmatpush1.msra.mxu0 0.0
      %2099 = vmatprep.subr.mxu0 0.0
      %2100 = vmatpush1.msra.mxu0 0.0
      %2101 = vmatprep.subr.mxu0 0.0
      %2102 = vmatpush1.msra.mxu0 %v1860
      %2103 = vmatprep.subr.mxu0 0.0
      %2104 = vmatpush1.msra.mxu0 %v1859
      %2105 = vmatprep.subr.mxu0 0.0
      %2106 = vmatpush1.msra.mxu0 %v1858
      %2107 = vmatprep.subr.mxu0 0.0
      %2108 = vmatpush1.msra.mxu0 %v1857
      %2109 = vmatprep.subr.mxu0 0.0
      %2110 = vmatpush2.msra.mxu0 0.0
      %2111 = vmatprep.subr.mxu0 0.0
      %2112 = vmatpush2.msra.mxu0 0.0
      %2113 = vmatprep.subr.mxu0 0.0
      %2114 = vmatpush2.msra.mxu0 0.0
      %2115 = vmatprep.subr.mxu0 0.0
      %2116 = vmatpush2.msra.mxu0 0.0
      %2117 = vmatprep.subr.mxu0 0.0
      %2118 = vmatpush2.msra.mxu0 0.0
      %2119 = vmatprep.subr.mxu0 0.0
      %2120 = vmatpush2.msra.mxu0 0.0
      %2121 = vmatprep.subr.mxu0 0.0
      %2122 = vmatpush2.msra.mxu0 0.0
      %2123 = vmatprep.subr.mxu0 0.0
      %2124 = vmatpush2.msra.mxu0 0.0
      %2125 = vmatprep.subr.mxu0 0.0
      %2126 = vmatpush2.msra.mxu0 0.0
      %2127 = vmatprep.subr.mxu0 0.0
      %2128 = vmatpush2.msra.mxu0 0.0
      %2129 = vmatprep.subr.mxu0 0.0
      %2130 = vmatpush2.msra.mxu0 0.0
      %2131 = vmatprep.subr.mxu0 0.0
      %2132 = vmatpush2.msra.mxu0 0.0
      %2133 = vmatprep.subr.mxu0 0.0
      %2134 = vmatpush2.msra.mxu0 0.0
      %2135 = vmatprep.subr.mxu0 0.0
      %2136 = vmatpush2.msra.mxu0 0.0
      %2137 = vmatprep.subr.mxu0 0.0
      %2138 = vmatpush2.msra.mxu0 0.0
      %2139 = vmatprep.subr.mxu0 0.0
      %2140 = vmatpush2.msra.mxu0 0.0
      %2141 = vmatprep.mubr.f32.mxu0 0.0
      %2142 = vmatmul.mubr.f32.gmra.mxu0 %v1862
      %v2143 = vpop.f32.mrf.mxu0
      %v2144 = vadd.f32 0.0, %v2143
      %v2145 = vpop.f32.mrf.mxu0
      %2146 = vmatprep.mubr.f32.mxu0 0.0
      %2147 = vmatmul.mubr.f32.gmra.mxu0 %v1865
      %v2148 = vpop.f32.mrf.mxu0
      %v2149 = vadd.f32 0.0, %v2148
      %v2150 = vpop.f32.mrf.mxu0
      %2151 = vmatprep.mubr.f32.mxu0 0.0
      %2152 = vmatmul.mubr.f32.gmra.mxu0 %v1868
      %v2153 = vpop.f32.mrf.mxu0
      %v2154 = vadd.f32 0.0, %v2153
      %v2155 = vpop.f32.mrf.mxu0
      %2156 = vmatprep.mubr.f32.mxu0 0.0
      %2157 = vmatmul.mubr.f32.gmra.mxu0 %v1871
      %v2158 = vpop.f32.mrf.mxu0
      %v2159 = vadd.f32 0.0, %v2158
      %v2160 = vpop.f32.mrf.mxu0
      %2161 = vmatprep.mubr.f32.mxu0 0.0
      %2162 = vmatmul.mubr.f32.gmra.mxu0 %v1874
      %v2163 = vpop.f32.mrf.mxu0
      %v2164 = vadd.f32 0.0, %v2163
      %v2165 = vpop.f32.mrf.mxu0
      %2166 = vmatprep.mubr.f32.mxu0 0.0
      %2167 = vmatmul.mubr.f32.gmra.mxu0 %v1877
      %v2168 = vpop.f32.mrf.mxu0
      %v2169 = vadd.f32 0.0, %v2168
      %v2170 = vpop.f32.mrf.mxu0
      %2171 = vmatprep.mubr.f32.mxu0 0.0
      %2172 = vmatmul.mubr.f32.gmra.mxu0 %v1880
      %v2173 = vpop.f32.mrf.mxu0
      %v2174 = vadd.f32 0.0, %v2173
      %v2175 = vpop.f32.mrf.mxu0
      %2176 = vmatprep.mubr.f32.mxu0 0.0
      %2177 = vmatmul.mubr.f32.gmra.mxu0 %v1883
      %v2178 = vpop.f32.mrf.mxu0
      %v2179 = vadd.f32 0.0, %v2178
      %v2180 = vpop.f32.mrf.mxu0
      %2181 = vmatprep.mubr.f32.mxu0 0.0
      %2182 = vmatmul.mubr.f32.gmra.mxu0 %v1886
      %v2183 = vpop.f32.mrf.mxu0
      %v2184 = vadd.f32 0.0, %v2183
      %v2185 = vpop.f32.mrf.mxu0
      %2186 = vmatprep.mubr.f32.mxu0 0.0
      %2187 = vmatmul.mubr.f32.gmra.mxu0 %v1889
      %v2188 = vpop.f32.mrf.mxu0
      %v2189 = vadd.f32 0.0, %v2188
      %v2190 = vpop.f32.mrf.mxu0
      %2191 = vmatprep.mubr.f32.mxu0 0.0
      %2192 = vmatmul.mubr.f32.gmra.mxu0 %v1892
      %v2193 = vpop.f32.mrf.mxu0
      %v2194 = vadd.f32 0.0, %v2193
      %v2195 = vpop.f32.mrf.mxu0
      %2196 = vmatprep.mubr.f32.mxu0 0.0
      %2197 = vmatmul.mubr.f32.gmra.mxu0 %v1895
      %v2198 = vpop.f32.mrf.mxu0
      %v2199 = vadd.f32 0.0, %v2198
      %v2200 = vpop.f32.mrf.mxu0
      %2201 = vmatprep.mubr.f32.mxu0 0.0
      %2202 = vmatmul.mubr.f32.gmra.mxu0 %v1898
      %v2203 = vpop.f32.mrf.mxu0
      %v2204 = vadd.f32 0.0, %v2203
      %v2205 = vpop.f32.mrf.mxu0
      %2206 = vmatprep.mubr.f32.mxu0 0.0
      %2207 = vmatmul.mubr.f32.gmra.mxu0 %v1901
      %v2208 = vpop.f32.mrf.mxu0
      %v2209 = vadd.f32 0.0, %v2208
      %v2210 = vpop.f32.mrf.mxu0
      %2211 = vmatprep.mubr.f32.mxu0 0.0
      %2212 = vmatmul.mubr.f32.gmra.mxu0 %v1904
      %v2213 = vpop.f32.mrf.mxu0
      %v2214 = vadd.f32 0.0, %v2213
      %v2215 = vpop.f32.mrf.mxu0
      %2216 = vmatprep.mubr.f32.mxu0 0.0
      %2217 = vmatmul.mubr.f32.gmra.mxu0 %v1907
      %v2218 = vpop.f32.mrf.mxu0
      %v2219 = vadd.f32 0.0, %v2218
      %v2220 = vpop.f32.mrf.mxu0
      %2221 = vmatprep.mubr.f32.mxu0 0.0
      %2222 = vmatmul.mubr.f32.gmra.mxu0 %v1910
      %v2223 = vpop.f32.mrf.mxu0
      %v2224 = vadd.f32 0.0, %v2223
      %v2225 = vpop.f32.mrf.mxu0
      %2226 = vmatprep.mubr.f32.mxu0 0.0
      %2227 = vmatmul.mubr.f32.gmra.mxu0 %v1913
      %v2228 = vpop.f32.mrf.mxu0
      %v2229 = vadd.f32 0.0, %v2228
      %v2230 = vpop.f32.mrf.mxu0
      %2231 = vmatprep.mubr.f32.mxu0 0.0
      %2232 = vmatmul.mubr.f32.gmra.mxu0 %v1916
      %v2233 = vpop.f32.mrf.mxu0
      %v2234 = vadd.f32 0.0, %v2233
      %v2235 = vpop.f32.mrf.mxu0
      %2236 = vmatprep.mubr.f32.mxu0 0.0
      %2237 = vmatmul.mubr.f32.gmra.mxu0 %v1919
      %v2238 = vpop.f32.mrf.mxu0
      %v2239 = vadd.f32 0.0, %v2238
      %v2240 = vpop.f32.mrf.mxu0
      %2241 = vmatprep.mubr.f32.mxu0 0.0
      %2242 = vmatmul.mubr.f32.gmra.mxu0 %v1922
      %v2243 = vpop.f32.mrf.mxu0
      %v2244 = vadd.f32 0.0, %v2243
      %v2245 = vpop.f32.mrf.mxu0
      %2246 = vmatprep.mubr.f32.mxu0 0.0
      %2247 = vmatmul.mubr.f32.gmra.mxu0 %v1925
      %v2248 = vpop.f32.mrf.mxu0
      %v2249 = vadd.f32 0.0, %v2248
      %v2250 = vpop.f32.mrf.mxu0
      %2251 = vmatprep.mubr.f32.mxu0 0.0
      %2252 = vmatmul.mubr.f32.gmra.mxu0 %v1928
      %v2253 = vpop.f32.mrf.mxu0
      %v2254 = vadd.f32 0.0, %v2253
      %v2255 = vpop.f32.mrf.mxu0
      %2256 = vmatprep.mubr.f32.mxu0 0.0
      %2257 = vmatmul.mubr.f32.gmra.mxu0 %v1931
      %v2258 = vpop.f32.mrf.mxu0
      %v2259 = vadd.f32 0.0, %v2258
      %v2260 = vpop.f32.mrf.mxu0
      %2261 = vmatprep.mubr.f32.mxu0 0.0
      %2262 = vmatmul.mubr.f32.gmra.mxu0 %v1934
      %v2263 = vpop.f32.mrf.mxu0
      %v2264 = vadd.f32 0.0, %v2263
      %v2265 = vpop.f32.mrf.mxu0
      %2266 = vmatprep.mubr.f32.mxu0 0.0
      %2267 = vmatmul.mubr.f32.gmra.mxu0 %v1937
      %v2268 = vpop.f32.mrf.mxu0
      %v2269 = vadd.f32 0.0, %v2268
      %v2270 = vpop.f32.mrf.mxu0
      %2271 = vmatprep.mubr.f32.mxu0 0.0
      %2272 = vmatmul.mubr.f32.gmra.mxu0 %v1940
      %v2273 = vpop.f32.mrf.mxu0
      %v2274 = vadd.f32 0.0, %v2273
      %v2275 = vpop.f32.mrf.mxu0
      %2276 = vmatprep.mubr.f32.mxu0 0.0
      %2277 = vmatmul.mubr.f32.gmra.mxu0 %v1943
      %v2278 = vpop.f32.mrf.mxu0
      %v2279 = vadd.f32 0.0, %v2278
      %v2280 = vpop.f32.mrf.mxu0
      %2281 = vmatprep.mubr.f32.mxu0 0.0
      %2282 = vmatmul.mubr.f32.gmra.mxu0 %v1946
      %v2283 = vpop.f32.mrf.mxu0
      %v2284 = vadd.f32 0.0, %v2283
      %v2285 = vpop.f32.mrf.mxu0
      %2286 = vmatprep.mubr.f32.mxu0 0.0
      %2287 = vmatmul.mubr.f32.gmra.mxu0 %v1949
      %v2288 = vpop.f32.mrf.mxu0
      %v2289 = vadd.f32 0.0, %v2288
      %v2290 = vpop.f32.mrf.mxu0
      %2291 = vmatprep.mubr.f32.mxu0 0.0
      %2292 = vmatmul.mubr.f32.gmra.mxu0 %v1952
      %v2293 = vpop.f32.mrf.mxu0
      %v2294 = vadd.f32 0.0, %v2293
      %v2295 = vpop.f32.mrf.mxu0
      %2296 = vmatprep.mubr.f32.mxu0 0.0
      %2297 = vmatmul.mubr.f32.gmra.mxu0 %v1955
      %v2298 = vpop.f32.mrf.mxu0
      %v2299 = vadd.f32 0.0, %v2298
      %v2300 = vpop.f32.mrf.mxu0
      %2301 = vmatprep.mubr.f32.mxu0 0.0
      %2302 = vmatmul.mubr.f32.gmra.mxu0 %v1958
      %v2303 = vpop.f32.mrf.mxu0
      %v2304 = vadd.f32 0.0, %v2303
      %v2305 = vpop.f32.mrf.mxu0
      %2306 = vmatprep.mubr.f32.mxu0 0.0
      %2307 = vmatmul.mubr.f32.gmra.mxu0 %v1961
      %v2308 = vpop.f32.mrf.mxu0
      %v2309 = vadd.f32 0.0, %v2308
      %v2310 = vpop.f32.mrf.mxu0
      %2311 = vmatprep.mubr.f32.mxu0 0.0
      %2312 = vmatmul.mubr.f32.gmra.mxu0 %v1964
      %v2313 = vpop.f32.mrf.mxu0
      %v2314 = vadd.f32 0.0, %v2313
      %v2315 = vpop.f32.mrf.mxu0
      %2316 = vmatprep.mubr.f32.mxu0 0.0
      %2317 = vmatmul.mubr.f32.gmra.mxu0 %v1967
      %v2318 = vpop.f32.mrf.mxu0
      %v2319 = vadd.f32 0.0, %v2318
      %v2320 = vpop.f32.mrf.mxu0
      %2321 = vmatprep.mubr.f32.mxu0 0.0
      %2322 = vmatmul.mubr.f32.gmra.mxu0 %v1970
      %v2323 = vpop.f32.mrf.mxu0
      %v2324 = vadd.f32 0.0, %v2323
      %v2325 = vpop.f32.mrf.mxu0
      %2326 = vmatprep.mubr.f32.mxu0 0.0
      %2327 = vmatmul.mubr.f32.gmra.mxu0 %v1973
      %v2328 = vpop.f32.mrf.mxu0
      %v2329 = vadd.f32 0.0, %v2328
      %v2330 = vpop.f32.mrf.mxu0
      %2331 = vmatprep.mubr.f32.mxu0 0.0
      %2332 = vmatmul.mubr.f32.gmra.mxu0 %v1976
      %v2333 = vpop.f32.mrf.mxu0
      %v2334 = vadd.f32 0.0, %v2333
      %v2335 = vpop.f32.mrf.mxu0
      %2336 = vmatprep.mubr.f32.mxu0 0.0
      %2337 = vmatmul.mubr.f32.gmra.mxu0 %v1979
      %v2338 = vpop.f32.mrf.mxu0
      %v2339 = vadd.f32 0.0, %v2338
      %v2340 = vpop.f32.mrf.mxu0
      %2341 = vmatprep.mubr.f32.mxu0 0.0
      %2342 = vmatmul.mubr.f32.gmra.mxu0 %v1982
      %v2343 = vpop.f32.mrf.mxu0
      %v2344 = vadd.f32 0.0, %v2343
      %v2345 = vpop.f32.mrf.mxu0
      %2346 = vmatprep.mubr.f32.mxu0 0.0
      %2347 = vmatmul.mubr.f32.gmra.mxu0 %v1985
      %v2348 = vpop.f32.mrf.mxu0
      %v2349 = vadd.f32 0.0, %v2348
      %v2350 = vpop.f32.mrf.mxu0
      %2351 = vmatprep.mubr.f32.mxu0 0.0
      %2352 = vmatmul.mubr.f32.gmra.mxu0 %v1988
      %v2353 = vpop.f32.mrf.mxu0
      %v2354 = vadd.f32 0.0, %v2353
      %v2355 = vpop.f32.mrf.mxu0
      %2356 = vmatprep.mubr.f32.mxu0 0.0
      %2357 = vmatmul.mubr.f32.gmra.mxu0 %v1991
      %v2358 = vpop.f32.mrf.mxu0
      %v2359 = vadd.f32 0.0, %v2358
      %v2360 = vpop.f32.mrf.mxu0
      %2361 = vmatprep.mubr.f32.mxu0 0.0
      %2362 = vmatmul.mubr.f32.gmra.mxu0 %v1994
      %v2363 = vpop.f32.mrf.mxu0
      %v2364 = vadd.f32 0.0, %v2363
      %v2365 = vpop.f32.mrf.mxu0
      %2366 = vmatprep.mubr.f32.mxu0 0.0
      %2367 = vmatmul.mubr.f32.gmra.mxu0 %v1997
      %v2368 = vpop.f32.mrf.mxu0
      %v2369 = vadd.f32 0.0, %v2368
      %v2370 = vpop.f32.mrf.mxu0
      %2371 = vmatprep.mubr.f32.mxu0 0.0
      %2372 = vmatmul.mubr.f32.gmra.mxu0 %v2000
      %v2373 = vpop.f32.mrf.mxu0
      %v2374 = vadd.f32 0.0, %v2373
      %v2375 = vpop.f32.mrf.mxu0
      %2376 = vmatprep.mubr.f32.mxu0 0.0
      %2377 = vmatmul.mubr.f32.gmra.mxu0 %v2003
      %v2378 = vpop.f32.mrf.mxu0
      %v2379 = vadd.f32 0.0, %v2378
      %v2380 = vpop.f32.mrf.mxu0
      %2381 = vmatprep.mubr.f32.mxu0 0.0
      %2382 = vmatmul.mubr.f32.gmra.mxu0 %v2006
      %v2383 = vpop.f32.mrf.mxu0
      %v2384 = vadd.f32 0.0, %v2383
      %v2385 = vpop.f32.mrf.mxu0
      %2386 = vmatprep.mubr.f32.mxu0 0.0
      %2387 = vmatmul.mubr.f32.gmra.mxu0 %v2009
      %v2388 = vpop.f32.mrf.mxu0
      %v2389 = vadd.f32 0.0, %v2388
      %v2390 = vpop.f32.mrf.mxu0
      %2391 = vmatprep.mubr.f32.mxu0 0.0
      %2392 = vmatmul.mubr.f32.gmra.mxu0 %v2012
      %v2393 = vpop.f32.mrf.mxu0
      %v2394 = vadd.f32 0.0, %v2393
      %v2395 = vpop.f32.mrf.mxu0
      %2396 = vmatprep.mubr.f32.mxu0 0.0
      %2397 = vmatmul.mubr.f32.gmra.mxu0 %v2015
      %v2398 = vpop.f32.mrf.mxu0
      %v2399 = vadd.f32 0.0, %v2398
      %v2400 = vpop.f32.mrf.mxu0
      %2401 = vmatprep.mubr.f32.mxu0 0.0
      %2402 = vmatmul.mubr.f32.gmra.mxu0 %v2018
      %v2403 = vpop.f32.mrf.mxu0
      %v2404 = vadd.f32 0.0, %v2403
      %v2405 = vpop.f32.mrf.mxu0
      %2406 = vmatprep.mubr.f32.mxu0 0.0
      %2407 = vmatmul.mubr.f32.gmra.mxu0 %v2021
      %v2408 = vpop.f32.mrf.mxu0
      %v2409 = vadd.f32 0.0, %v2408
      %v2410 = vpop.f32.mrf.mxu0
      %2411 = vmatprep.mubr.f32.mxu0 0.0
      %2412 = vmatmul.mubr.f32.gmra.mxu0 %v2024
      %v2413 = vpop.f32.mrf.mxu0
      %v2414 = vadd.f32 0.0, %v2413
      %v2415 = vpop.f32.mrf.mxu0
      %2416 = vmatprep.mubr.f32.mxu0 0.0
      %2417 = vmatmul.mubr.f32.gmra.mxu0 %v2027
      %v2418 = vpop.f32.mrf.mxu0
      %v2419 = vadd.f32 0.0, %v2418
      %v2420 = vpop.f32.mrf.mxu0
      %2421 = vmatprep.mubr.f32.mxu0 0.0
      %2422 = vmatmul.mubr.f32.gmra.mxu0 %v2030
      %v2423 = vpop.f32.mrf.mxu0
      %v2424 = vadd.f32 0.0, %v2423
      %v2425 = vpop.f32.mrf.mxu0
      %2426 = vmatprep.mubr.f32.mxu0 0.0
      %2427 = vmatmul.mubr.f32.gmra.mxu0 %v2033
      %v2428 = vpop.f32.mrf.mxu0
      %v2429 = vadd.f32 0.0, %v2428
      %v2430 = vpop.f32.mrf.mxu0
      %2431 = vmatprep.mubr.f32.mxu0 0.0
      %2432 = vmatmul.mubr.f32.gmra.mxu0 %v2036
      %v2433 = vpop.f32.mrf.mxu0
      %v2434 = vadd.f32 0.0, %v2433
      %v2435 = vpop.f32.mrf.mxu0
      %2436 = vmatprep.mubr.f32.mxu0 0.0
      %2437 = vmatmul.mubr.f32.gmra.mxu0 %v2039
      %v2438 = vpop.f32.mrf.mxu0
      %v2439 = vadd.f32 0.0, %v2438
      %v2440 = vpop.f32.mrf.mxu0
      %2441 = vmatprep.mubr.f32.mxu0 0.0
      %2442 = vmatmul.mubr.f32.gmra.mxu0 %v2042
      %v2443 = vpop.f32.mrf.mxu0
      %v2444 = vadd.f32 0.0, %v2443
      %v2445 = vpop.f32.mrf.mxu0
      %2446 = vmatprep.mubr.f32.mxu0 0.0
      %2447 = vmatmul.mubr.f32.gmra.mxu0 %v2045
      %v2448 = vpop.f32.mrf.mxu0
      %v2449 = vadd.f32 0.0, %v2448
      %v2450 = vpop.f32.mrf.mxu0
      %2451 = vmatprep.mubr.f32.mxu0 0.0
      %2452 = vmatmul.mubr.f32.gmra.mxu0 %v2048
      %v2453 = vpop.f32.mrf.mxu0
      %v2454 = vadd.f32 0.0, %v2453
      %v2455 = vpop.f32.mrf.mxu0
      %2456 = vmatprep.mubr.f32.mxu0 0.0
      %2457 = vmatmul.mubr.f32.gmra.mxu0 %v2051
      %v2458 = vpop.f32.mrf.mxu0
      %v2459 = vadd.f32 0.0, %v2458
      %v2460 = vpop.f32.mrf.mxu0
      %2461 = vmatprep.mubr.f32.mxu0 0.0
      %2462 = vmatmul.mubr.f32.gmra.mxu0 %v2054
      %v2463 = vpop.f32.mrf.mxu0
      %v2464 = vadd.f32 0.0, %v2463
      %v2465 = vpop.f32.mrf.mxu0
      %2466 = vmatprep.mubr.f32.mxu0 0.0
      %2467 = vmatmul.mubr.f32.gmra.mxu0 %v2057
      %v2468 = vpop.f32.mrf.mxu0
      %v2469 = vadd.f32 0.0, %v2468
      %v2470 = vpop.f32.mrf.mxu0
      %2471 = vmatprep.mubr.f32.mxu0 0.0
      %2472 = vmatmul.mubr.f32.gmra.mxu0 %v2060
      %v2473 = vpop.f32.mrf.mxu0
      %v2474 = vadd.f32 0.0, %v2473
      %v2475 = vpop.f32.mrf.mxu0
      %2476 = vmatprep.mubr.f32.mxu0 0.0
      %2477 = vmatmul.mubr.f32.gmra.mxu0 %v2063
      %v2478 = vpop.f32.mrf.mxu0
      %v2479 = vadd.f32 0.0, %v2478
      %v2480 = vpop.f32.mrf.mxu0
      %2481 = vmatprep.mubr.f32.mxu0 0.0
      %2482 = vmatmul.mubr.f32.gmra.mxu0 %v2066
      %v2483 = vpop.f32.mrf.mxu0
      %v2484 = vadd.f32 0.0, %v2483
      %v2485 = vpop.f32.mrf.mxu0
      %2486 = vmatprep.mubr.f32.mxu0 0.0
      %2487 = vmatmul.mubr.f32.gmra.mxu0 %v2069
      %v2488 = vpop.f32.mrf.mxu0
      %v2489 = vadd.f32 0.0, %v2488
      %v2490 = vpop.f32.mrf.mxu0
      %2491 = vmatprep.mubr.f32.mxu0 0.0
      %2492 = vmatmul.mubr.f32.gmra.mxu0 %v2072
      %v2493 = vpop.f32.mrf.mxu0
      %v2494 = vadd.f32 0.0, %v2493
      %v2495 = vpop.f32.mrf.mxu0
      %2496 = vmatprep.mubr.f32.mxu0 0.0
      %2497 = vmatmul.mubr.f32.gmra.mxu0 %v2075
      %v2498 = vpop.f32.mrf.mxu0
      %v2499 = vadd.f32 0.0, %v2498
      %v2500 = vpop.f32.mrf.mxu0
      %2501 = vdwg.mxu0
      %v2502 = vld [vmem:[%s4] sm:$0xff]
      %v2503 = vld [vmem:[%s4 + $0x8] sm:$0xff]
      %v2504 = vld [vmem:[%s4 + $0x10] sm:$0xff]
      %v2505 = vld [vmem:[%s4 + $0x18] sm:$0xff]
      %v2506 = vld [vmem:[%s4 + $0x20] sm:$0xff]
      %v2507 = vld [vmem:[%s4 + $0x28] sm:$0xff]
      %v2508 = vld [vmem:[%s4 + $0x30] sm:$0xff]
      %v2509 = vld [vmem:[%s4 + $0x38] sm:$0xff]
      %v2510 = vld [vmem:[%s4 + $0x40] sm:$0xff]
      %v2511 = vld [vmem:[%s4 + $0x48] sm:$0xff]
      %v2512 = vld [vmem:[%s4 + $0x50] sm:$0xff]
      %v2513 = vld [vmem:[%s4 + $0x58] sm:$0xff]
      %v2514 = vld [vmem:[%s4 + $0x60] sm:$0xff]
      %v2515 = vld [vmem:[%s4 + $0x68] sm:$0xff]
      %v2516 = vld [vmem:[%s4 + $0x70] sm:$0xff]
      %v2517 = vld [vmem:[%s4 + $0x78] sm:$0xff]
      %v2518 = vld [vmem:[%s4 + $0x80] sm:$0xff]
      %v2519 = vld [vmem:[%s4 + $0x88] sm:$0xff]
      %v2520 = vld [vmem:[%s4 + $0x90] sm:$0xff]
      %v2521 = vld [vmem:[%s4 + $0x98] sm:$0xff]
      %v2522 = vld [vmem:[%s4 + $0xa0] sm:$0xff]
      %v2523 = vld [vmem:[%s4 + $0xa8] sm:$0xff]
      %v2524 = vld [vmem:[%s4 + $0xb0] sm:$0xff]
      %v2525 = vld [vmem:[%s4 + $0xb8] sm:$0xff]
      %v2526 = vld [vmem:[%s4 + $0xc0] sm:$0xff]
      %v2527 = vld [vmem:[%s4 + $0xc8] sm:$0xff]
      %v2528 = vld [vmem:[%s4 + $0xd0] sm:$0xff]
      %v2529 = vld [vmem:[%s4 + $0xd8] sm:$0xff]
      %v2530 = vld [vmem:[%s4 + $0xe0] sm:$0xff]
      %v2531 = vld [vmem:[%s4 + $0xe8] sm:$0xff]
      %v2532 = vld [vmem:[%s4 + $0xf0] sm:$0xff]
      %v2533 = vld [vmem:[%s4 + $0xf8] sm:$0xff]
      %v2534 = vld [vmem:[%s4 + $0x100] sm:$0xff]
      %v2535 = vld [vmem:[%s4 + $0x108] sm:$0xff]
      %v2536 = vld [vmem:[%s4 + $0x110] sm:$0xff]
      %v2537 = vld [vmem:[%s4 + $0x118] sm:$0xff]
      %v2538 = vld [vmem:[%s4 + $0x120] sm:$0xff]
      %v2539 = vld [vmem:[%s4 + $0x128] sm:$0xff]
      %v2540 = vld [vmem:[%s4 + $0x130] sm:$0xff]
      %v2541 = vld [vmem:[%s4 + $0x138] sm:$0xff]
      %v2542 = vld [vmem:[%s4 + $0x140] sm:$0xff]
      %v2543 = vld [vmem:[%s4 + $0x148] sm:$0xff]
      %v2544 = vld [vmem:[%s4 + $0x150] sm:$0xff]
      %v2545 = vld [vmem:[%s4 + $0x158] sm:$0xff]
      %v2546 = vld [vmem:[%s4 + $0x160] sm:$0xff]
      %v2547 = vld [vmem:[%s4 + $0x168] sm:$0xff]
      %v2548 = vld [vmem:[%s4 + $0x170] sm:$0xff]
      %v2549 = vld [vmem:[%s4 + $0x178] sm:$0xff]
      %v2550 = vld [vmem:[%s4 + $0x180] sm:$0xff]
      %v2551 = vld [vmem:[%s4 + $0x188] sm:$0xff]
      %v2552 = vld [vmem:[%s4 + $0x190] sm:$0xff]
      %v2553 = vld [vmem:[%s4 + $0x198] sm:$0xff]
      %v2554 = vld [vmem:[%s4 + $0x1a0] sm:$0xff]
      %v2555 = vld [vmem:[%s4 + $0x1a8] sm:$0xff]
      %v2556 = vld [vmem:[%s4 + $0x1b0] sm:$0xff]
      %v2557 = vld [vmem:[%s4 + $0x1b8] sm:$0xff]
      %v2558 = vld [vmem:[%s4 + $0x1c0] sm:$0xff]
      %v2559 = vld [vmem:[%s4 + $0x1c8] sm:$0xff]
      %v2560 = vld [vmem:[%s4 + $0x1d0] sm:$0xff]
      %v2561 = vld [vmem:[%s4 + $0x1d8] sm:$0xff]
      %v2562 = vld [vmem:[%s4 + $0x1e0] sm:$0xff]
      %v2563 = vld [vmem:[%s4 + $0x1e8] sm:$0xff]
      %v2564 = vld [vmem:[%s4 + $0x1f0] sm:$0xff]
      %v2565 = vld [vmem:[%s4 + $0x1f8] sm:$0xff]
      %v2566 = vld [vmem:[%s4 + $0x200] sm:$0xff]
      %v2567 = vld [vmem:[%s4 + $0x208] sm:$0xff]
      %v2568 = vld [vmem:[%s4 + $0x210] sm:$0xff]
      %v2569 = vld [vmem:[%s4 + $0x218] sm:$0xff]
      %v2570 = vld [vmem:[%s4 + $0x220] sm:$0xff]
      %v2571 = vld [vmem:[%s4 + $0x228] sm:$0xff]
      %v2572 = vld [vmem:[%s4 + $0x230] sm:$0xff]
      %v2573 = vld [vmem:[%s4 + $0x238] sm:$0xff]
      %v2574 = vadd.f32 %v2144, %v2502
      %v2575 = vadd.f32 %v2149, %v2503
      %v2576 = vadd.f32 %v2154, %v2504
      %v2577 = vadd.f32 %v2159, %v2505
      %v2578 = vadd.f32 %v2164, %v2506
      %v2579 = vadd.f32 %v2169, %v2507
      %v2580 = vadd.f32 %v2174, %v2508
      %v2581 = vadd.f32 %v2179, %v2509
      %v2582 = vadd.f32 %v2184, %v2510
      %v2583 = vadd.f32 %v2189, %v2511
      %v2584 = vadd.f32 %v2194, %v2512
      %v2585 = vadd.f32 %v2199, %v2513
      %v2586 = vadd.f32 %v2204, %v2514
      %v2587 = vadd.f32 %v2209, %v2515
      %v2588 = vadd.f32 %v2214, %v2516
      %v2589 = vadd.f32 %v2219, %v2517
      %v2590 = vadd.f32 %v2224, %v2518
      %v2591 = vadd.f32 %v2229, %v2519
      %v2592 = vadd.f32 %v2234, %v2520
      %v2593 = vadd.f32 %v2239, %v2521
      %v2594 = vadd.f32 %v2244, %v2522
      %v2595 = vadd.f32 %v2249, %v2523
      %v2596 = vadd.f32 %v2254, %v2524
      %v2597 = vadd.f32 %v2259, %v2525
      %v2598 = vadd.f32 %v2264, %v2526
      %v2599 = vadd.f32 %v2269, %v2527
      %v2600 = vadd.f32 %v2274, %v2528
      %v2601 = vadd.f32 %v2279, %v2529
      %v2602 = vadd.f32 %v2284, %v2530
      %v2603 = vadd.f32 %v2289, %v2531
      %v2604 = vadd.f32 %v2294, %v2532
      %v2605 = vadd.f32 %v2299, %v2533
      %v2606 = vadd.f32 %v2304, %v2534
      %v2607 = vadd.f32 %v2309, %v2535
      %v2608 = vadd.f32 %v2314, %v2536
      %v2609 = vadd.f32 %v2319, %v2537
      %v2610 = vadd.f32 %v2324, %v2538
      %v2611 = vadd.f32 %v2329, %v2539
      %v2612 = vadd.f32 %v2334, %v2540
      %v2613 = vadd.f32 %v2339, %v2541
      %v2614 = vadd.f32 %v2344, %v2542
      %v2615 = vadd.f32 %v2349, %v2543
      %v2616 = vadd.f32 %v2354, %v2544
      %v2617 = vadd.f32 %v2359, %v2545
      %v2618 = vadd.f32 %v2364, %v2546
      %v2619 = vadd.f32 %v2369, %v2547
      %v2620 = vadd.f32 %v2374, %v2548
      %v2621 = vadd.f32 %v2379, %v2549
      %v2622 = vadd.f32 %v2384, %v2550
      %v2623 = vadd.f32 %v2389, %v2551
      %v2624 = vadd.f32 %v2394, %v2552
      %v2625 = vadd.f32 %v2399, %v2553
      %v2626 = vadd.f32 %v2404, %v2554
      %v2627 = vadd.f32 %v2409, %v2555
      %v2628 = vadd.f32 %v2414, %v2556
      %v2629 = vadd.f32 %v2419, %v2557
      %v2630 = vadd.f32 %v2424, %v2558
      %v2631 = vadd.f32 %v2429, %v2559
      %v2632 = vadd.f32 %v2434, %v2560
      %v2633 = vadd.f32 %v2439, %v2561
      %v2634 = vadd.f32 %v2444, %v2562
      %v2635 = vadd.f32 %v2449, %v2563
      %v2636 = vadd.f32 %v2454, %v2564
      %v2637 = vadd.f32 %v2459, %v2565
      %v2638 = vadd.f32 %v2464, %v2566
      %v2639 = vadd.f32 %v2469, %v2567
      %v2640 = vadd.f32 %v2474, %v2568
      %v2641 = vadd.f32 %v2479, %v2569
      %v2642 = vadd.f32 %v2484, %v2570
      %v2643 = vadd.f32 %v2489, %v2571
      %v2644 = vadd.f32 %v2494, %v2572
      %v2645 = vadd.f32 %v2499, %v2573
      %vm2646 = vcmask 31744
      %v2647 = vsel %vm2646, %v2574, -inf
      %v2648 = vsel %vm2646, %v2582, -inf
      %v2649 = vmax.f32 %v2647, %v2648
      %v2650 = vsel %vm2646, %v2590, -inf
      %v2651 = vmax.f32 %v2649, %v2650
      %v2652 = vsel %vm2646, %v2598, -inf
      %v2653 = vmax.f32 %v2651, %v2652
      %v2654 = vsel %vm2646, %v2606, -inf
      %v2655 = vmax.f32 %v2653, %v2654
      %v2656 = vsel %vm2646, %v2614, -inf
      %v2657 = vmax.f32 %v2655, %v2656
      %v2658 = vsel %vm2646, %v2622, -inf
      %v2659 = vmax.f32 %v2657, %v2658
      %v2660 = vsel %vm2646, %v2630, -inf
      %v2661 = vmax.f32 %v2659, %v2660
      %v2662 = vsel %vm2646, %v2638, -inf
      %v2663 = vmax.f32 %v2661, %v2662
      %v2664 = vsel %vm2646, %v2575, -inf
      %v2665 = vsel %vm2646, %v2583, -inf
      %v2666 = vmax.f32 %v2664, %v2665
      %v2667 = vsel %vm2646, %v2591, -inf
      %v2668 = vmax.f32 %v2666, %v2667
      %v2669 = vsel %vm2646, %v2599, -inf
      %v2670 = vmax.f32 %v2668, %v2669
      %v2671 = vsel %vm2646, %v2607, -inf
      %v2672 = vmax.f32 %v2670, %v2671
      %v2673 = vsel %vm2646, %v2615, -inf
      %v2674 = vmax.f32 %v2672, %v2673
      %v2675 = vsel %vm2646, %v2623, -inf
      %v2676 = vmax.f32 %v2674, %v2675
      %v2677 = vsel %vm2646, %v2631, -inf
      %v2678 = vmax.f32 %v2676, %v2677
      %v2679 = vsel %vm2646, %v2639, -inf
      %v2680 = vmax.f32 %v2678, %v2679
      %v2681 = vsel %vm2646, %v2576, -inf
      %v2682 = vsel %vm2646, %v2584, -inf
      %v2683 = vmax.f32 %v2681, %v2682
      %v2684 = vsel %vm2646, %v2592, -inf
      %v2685 = vmax.f32 %v2683, %v2684
      %v2686 = vsel %vm2646, %v2600, -inf
      %v2687 = vmax.f32 %v2685, %v2686
      %v2688 = vsel %vm2646, %v2608, -inf
      %v2689 = vmax.f32 %v2687, %v2688
      %v2690 = vsel %vm2646, %v2616, -inf
      %v2691 = vmax.f32 %v2689, %v2690
      %v2692 = vsel %vm2646, %v2624, -inf
      %v2693 = vmax.f32 %v2691, %v2692
      %v2694 = vsel %vm2646, %v2632, -inf
      %v2695 = vmax.f32 %v2693, %v2694
      %v2696 = vsel %vm2646, %v2640, -inf
      %v2697 = vmax.f32 %v2695, %v2696
      %v2698 = vsel %vm2646, %v2577, -inf
      %v2699 = vsel %vm2646, %v2585, -inf
      %v2700 = vmax.f32 %v2698, %v2699
      %v2701 = vsel %vm2646, %v2593, -inf
      %v2702 = vmax.f32 %v2700, %v2701
      %v2703 = vsel %vm2646, %v2601, -inf
      %v2704 = vmax.f32 %v2702, %v2703
      %v2705 = vsel %vm2646, %v2609, -inf
      %v2706 = vmax.f32 %v2704, %v2705
      %v2707 = vsel %vm2646, %v2617, -inf
      %v2708 = vmax.f32 %v2706, %v2707
      %v2709 = vsel %vm2646, %v2625, -inf
      %v2710 = vmax.f32 %v2708, %v2709
      %v2711 = vsel %vm2646, %v2633, -inf
      %v2712 = vmax.f32 %v2710, %v2711
      %v2713 = vsel %vm2646, %v2641, -inf
      %v2714 = vmax.f32 %v2712, %v2713
      %v2715 = vsel %vm2646, %v2578, -inf
      %v2716 = vsel %vm2646, %v2586, -inf
      %v2717 = vmax.f32 %v2715, %v2716
      %v2718 = vsel %vm2646, %v2594, -inf
      %v2719 = vmax.f32 %v2717, %v2718
      %v2720 = vsel %vm2646, %v2602, -inf
      %v2721 = vmax.f32 %v2719, %v2720
      %v2722 = vsel %vm2646, %v2610, -inf
      %v2723 = vmax.f32 %v2721, %v2722
      %v2724 = vsel %vm2646, %v2618, -inf
      %v2725 = vmax.f32 %v2723, %v2724
      %v2726 = vsel %vm2646, %v2626, -inf
      %v2727 = vmax.f32 %v2725, %v2726
      %v2728 = vsel %vm2646, %v2634, -inf
      %v2729 = vmax.f32 %v2727, %v2728
      %v2730 = vsel %vm2646, %v2642, -inf
      %v2731 = vmax.f32 %v2729, %v2730
      %v2732 = vsel %vm2646, %v2579, -inf
      %v2733 = vsel %vm2646, %v2587, -inf
      %v2734 = vmax.f32 %v2732, %v2733
      %v2735 = vsel %vm2646, %v2595, -inf
      %v2736 = vmax.f32 %v2734, %v2735
      %v2737 = vsel %vm2646, %v2603, -inf
      %v2738 = vmax.f32 %v2736, %v2737
      %v2739 = vsel %vm2646, %v2611, -inf
      %v2740 = vmax.f32 %v2738, %v2739
      %v2741 = vsel %vm2646, %v2619, -inf
      %v2742 = vmax.f32 %v2740, %v2741
      %v2743 = vsel %vm2646, %v2627, -inf
      %v2744 = vmax.f32 %v2742, %v2743
      %v2745 = vsel %vm2646, %v2635, -inf
      %v2746 = vmax.f32 %v2744, %v2745
      %v2747 = vsel %vm2646, %v2643, -inf
      %v2748 = vmax.f32 %v2746, %v2747
      %v2749 = vsel %vm2646, %v2580, -inf
      %v2750 = vsel %vm2646, %v2588, -inf
      %v2751 = vmax.f32 %v2749, %v2750
      %v2752 = vsel %vm2646, %v2596, -inf
      %v2753 = vmax.f32 %v2751, %v2752
      %v2754 = vsel %vm2646, %v2604, -inf
      %v2755 = vmax.f32 %v2753, %v2754
      %v2756 = vsel %vm2646, %v2612, -inf
      %v2757 = vmax.f32 %v2755, %v2756
      %v2758 = vsel %vm2646, %v2620, -inf
      %v2759 = vmax.f32 %v2757, %v2758
      %v2760 = vsel %vm2646, %v2628, -inf
      %v2761 = vmax.f32 %v2759, %v2760
      %v2762 = vsel %vm2646, %v2636, -inf
      %v2763 = vmax.f32 %v2761, %v2762
      %v2764 = vsel %vm2646, %v2644, -inf
      %v2765 = vmax.f32 %v2763, %v2764
      %v2766 = vsel %vm2646, %v2581, -inf
      %v2767 = vsel %vm2646, %v2589, -inf
      %v2768 = vmax.f32 %v2766, %v2767
      %v2769 = vsel %vm2646, %v2597, -inf
      %v2770 = vmax.f32 %v2768, %v2769
      %v2771 = vsel %vm2646, %v2605, -inf
      %v2772 = vmax.f32 %v2770, %v2771
      %v2773 = vsel %vm2646, %v2613, -inf
      %v2774 = vmax.f32 %v2772, %v2773
      %v2775 = vsel %vm2646, %v2621, -inf
      %v2776 = vmax.f32 %v2774, %v2775
      %v2777 = vsel %vm2646, %v2629, -inf
      %v2778 = vmax.f32 %v2776, %v2777
      %v2779 = vsel %vm2646, %v2637, -inf
      %v2780 = vmax.f32 %v2778, %v2779
      %v2781 = vsel %vm2646, %v2645, -inf
      %v2782 = vmax.f32 %v2780, %v2781
      %v2783 = vsub.f32 %v2574, %v2663
      %v2784 = vsub.f32 %v2575, %v2680
      %v2785 = vsub.f32 %v2576, %v2697
      %v2786 = vsub.f32 %v2577, %v2714
      %v2787 = vsub.f32 %v2578, %v2731
      %v2788 = vsub.f32 %v2579, %v2748
      %v2789 = vsub.f32 %v2580, %v2765
      %v2790 = vsub.f32 %v2581, %v2782
      %v2791 = vsub.f32 %v2582, %v2663
      %v2792 = vsub.f32 %v2583, %v2680
      %v2793 = vsub.f32 %v2584, %v2697
      %v2794 = vsub.f32 %v2585, %v2714
      %v2795 = vsub.f32 %v2586, %v2731
      %v2796 = vsub.f32 %v2587, %v2748
      %v2797 = vsub.f32 %v2588, %v2765
      %v2798 = vsub.f32 %v2589, %v2782
      %v2799 = vsub.f32 %v2590, %v2663
      %v2800 = vsub.f32 %v2591, %v2680
      %v2801 = vsub.f32 %v2592, %v2697
      %v2802 = vsub.f32 %v2593, %v2714
      %v2803 = vsub.f32 %v2594, %v2731
      %v2804 = vsub.f32 %v2595, %v2748
      %v2805 = vsub.f32 %v2596, %v2765
      %v2806 = vsub.f32 %v2597, %v2782
      %v2807 = vsub.f32 %v2598, %v2663
      %v2808 = vsub.f32 %v2599, %v2680
      %v2809 = vsub.f32 %v2600, %v2697
      %v2810 = vsub.f32 %v2601, %v2714
      %v2811 = vsub.f32 %v2602, %v2731
      %v2812 = vsub.f32 %v2603, %v2748
      %v2813 = vsub.f32 %v2604, %v2765
      %v2814 = vsub.f32 %v2605, %v2782
      %v2815 = vsub.f32 %v2606, %v2663
      %v2816 = vsub.f32 %v2607, %v2680
      %v2817 = vsub.f32 %v2608, %v2697
      %v2818 = vsub.f32 %v2609, %v2714
      %v2819 = vsub.f32 %v2610, %v2731
      %v2820 = vsub.f32 %v2611, %v2748
      %v2821 = vsub.f32 %v2612, %v2765
      %v2822 = vsub.f32 %v2613, %v2782
      %v2823 = vsub.f32 %v2614, %v2663
      %v2824 = vsub.f32 %v2615, %v2680
      %v2825 = vsub.f32 %v2616, %v2697
      %v2826 = vsub.f32 %v2617, %v2714
      %v2827 = vsub.f32 %v2618, %v2731
      %v2828 = vsub.f32 %v2619, %v2748
      %v2829 = vsub.f32 %v2620, %v2765
      %v2830 = vsub.f32 %v2621, %v2782
      %v2831 = vsub.f32 %v2622, %v2663
      %v2832 = vsub.f32 %v2623, %v2680
      %v2833 = vsub.f32 %v2624, %v2697
      %v2834 = vsub.f32 %v2625, %v2714
      %v2835 = vsub.f32 %v2626, %v2731
      %v2836 = vsub.f32 %v2627, %v2748
      %v2837 = vsub.f32 %v2628, %v2765
      %v2838 = vsub.f32 %v2629, %v2782
      %v2839 = vsub.f32 %v2630, %v2663
      %v2840 = vsub.f32 %v2631, %v2680
      %v2841 = vsub.f32 %v2632, %v2697
      %v2842 = vsub.f32 %v2633, %v2714
      %v2843 = vsub.f32 %v2634, %v2731
      %v2844 = vsub.f32 %v2635, %v2748
      %v2845 = vsub.f32 %v2636, %v2765
      %v2846 = vsub.f32 %v2637, %v2782
      %v2847 = vsub.f32 %v2638, %v2663
      %v2848 = vsub.f32 %v2639, %v2680
      %v2849 = vsub.f32 %v2640, %v2697
      %v2850 = vsub.f32 %v2641, %v2714
      %v2851 = vsub.f32 %v2642, %v2731
      %v2852 = vsub.f32 %v2643, %v2748
      %v2853 = vsub.f32 %v2644, %v2765
      %v2854 = vsub.f32 %v2645, %v2782
      %v2855 = vmul.f32 %v2783, 1.442695
      %v2856 = vpow.pop %v2855
      %v2857 = vmul.f32 %v2784, 1.442695
      %v2858 = vpow.pop %v2857
      %v2859 = vmul.f32 %v2785, 1.442695
      %v2860 = vpow.pop %v2859
      %v2861 = vmul.f32 %v2786, 1.442695
      %v2862 = vpow.pop %v2861
      %v2863 = vmul.f32 %v2787, 1.442695
      %v2864 = vpow.pop %v2863
      %v2865 = vmul.f32 %v2788, 1.442695
      %v2866 = vpow.pop %v2865
      %v2867 = vmul.f32 %v2789, 1.442695
      %v2868 = vpow.pop %v2867
      %v2869 = vmul.f32 %v2790, 1.442695
      %v2870 = vpow.pop %v2869
      %v2871 = vmul.f32 %v2791, 1.442695
      %v2872 = vpow.pop %v2871
      %v2873 = vmul.f32 %v2792, 1.442695
      %v2874 = vpow.pop %v2873
      %v2875 = vmul.f32 %v2793, 1.442695
      %v2876 = vpow.pop %v2875
      %v2877 = vmul.f32 %v2794, 1.442695
      %v2878 = vpow.pop %v2877
      %v2879 = vmul.f32 %v2795, 1.442695
      %v2880 = vpow.pop %v2879
      %v2881 = vmul.f32 %v2796, 1.442695
      %v2882 = vpow.pop %v2881
      %v2883 = vmul.f32 %v2797, 1.442695
      %v2884 = vpow.pop %v2883
      %v2885 = vmul.f32 %v2798, 1.442695
      %v2886 = vpow.pop %v2885
      %v2887 = vmul.f32 %v2799, 1.442695
      %v2888 = vpow.pop %v2887
      %v2889 = vmul.f32 %v2800, 1.442695
      %v2890 = vpow.pop %v2889
      %v2891 = vmul.f32 %v2801, 1.442695
      %v2892 = vpow.pop %v2891
      %v2893 = vmul.f32 %v2802, 1.442695
      %v2894 = vpow.pop %v2893
      %v2895 = vmul.f32 %v2803, 1.442695
      %v2896 = vpow.pop %v2895
      %v2897 = vmul.f32 %v2804, 1.442695
      %v2898 = vpow.pop %v2897
      %v2899 = vmul.f32 %v2805, 1.442695
      %v2900 = vpow.pop %v2899
      %v2901 = vmul.f32 %v2806, 1.442695
      %v2902 = vpow.pop %v2901
      %v2903 = vmul.f32 %v2807, 1.442695
      %v2904 = vpow.pop %v2903
      %v2905 = vmul.f32 %v2808, 1.442695
      %v2906 = vpow.pop %v2905
      %v2907 = vmul.f32 %v2809, 1.442695
      %v2908 = vpow.pop %v2907
      %v2909 = vmul.f32 %v2810, 1.442695
      %v2910 = vpow.pop %v2909
      %v2911 = vmul.f32 %v2811, 1.442695
      %v2912 = vpow.pop %v2911
      %v2913 = vmul.f32 %v2812, 1.442695
      %v2914 = vpow.pop %v2913
      %v2915 = vmul.f32 %v2813, 1.442695
      %v2916 = vpow.pop %v2915
      %v2917 = vmul.f32 %v2814, 1.442695
      %v2918 = vpow.pop %v2917
      %v2919 = vmul.f32 %v2815, 1.442695
      %v2920 = vpow.pop %v2919
      %v2921 = vmul.f32 %v2816, 1.442695
      %v2922 = vpow.pop %v2921
      %v2923 = vmul.f32 %v2817, 1.442695
      %v2924 = vpow.pop %v2923
      %v2925 = vmul.f32 %v2818, 1.442695
      %v2926 = vpow.pop %v2925
      %v2927 = vmul.f32 %v2819, 1.442695
      %v2928 = vpow.pop %v2927
      %v2929 = vmul.f32 %v2820, 1.442695
      %v2930 = vpow.pop %v2929
      %v2931 = vmul.f32 %v2821, 1.442695
      %v2932 = vpow.pop %v2931
      %v2933 = vmul.f32 %v2822, 1.442695
      %v2934 = vpow.pop %v2933
      %v2935 = vmul.f32 %v2823, 1.442695
      %v2936 = vpow.pop %v2935
      %v2937 = vmul.f32 %v2824, 1.442695
      %v2938 = vpow.pop %v2937
      %v2939 = vmul.f32 %v2825, 1.442695
      %v2940 = vpow.pop %v2939
      %v2941 = vmul.f32 %v2826, 1.442695
      %v2942 = vpow.pop %v2941
      %v2943 = vmul.f32 %v2827, 1.442695
      %v2944 = vpow.pop %v2943
      %v2945 = vmul.f32 %v2828, 1.442695
      %v2946 = vpow.pop %v2945
      %v2947 = vmul.f32 %v2829, 1.442695
      %v2948 = vpow.pop %v2947
      %v2949 = vmul.f32 %v2830, 1.442695
      %v2950 = vpow.pop %v2949
      %v2951 = vmul.f32 %v2831, 1.442695
      %v2952 = vpow.pop %v2951
      %v2953 = vmul.f32 %v2832, 1.442695
      %v2954 = vpow.pop %v2953
      %v2955 = vmul.f32 %v2833, 1.442695
      %v2956 = vpow.pop %v2955
      %v2957 = vmul.f32 %v2834, 1.442695
      %v2958 = vpow.pop %v2957
      %v2959 = vmul.f32 %v2835, 1.442695
      %v2960 = vpow.pop %v2959
      %v2961 = vmul.f32 %v2836, 1.442695
      %v2962 = vpow.pop %v2961
      %v2963 = vmul.f32 %v2837, 1.442695
      %v2964 = vpow.pop %v2963
      %v2965 = vmul.f32 %v2838, 1.442695
      %v2966 = vpow.pop %v2965
      %v2967 = vmul.f32 %v2839, 1.442695
      %v2968 = vpow.pop %v2967
      %v2969 = vmul.f32 %v2840, 1.442695
      %v2970 = vpow.pop %v2969
      %v2971 = vmul.f32 %v2841, 1.442695
      %v2972 = vpow.pop %v2971
      %v2973 = vmul.f32 %v2842, 1.442695
      %v2974 = vpow.pop %v2973
      %v2975 = vmul.f32 %v2843, 1.442695
      %v2976 = vpow.pop %v2975
      %v2977 = vmul.f32 %v2844, 1.442695
      %v2978 = vpow.pop %v2977
      %v2979 = vmul.f32 %v2845, 1.442695
      %v2980 = vpow.pop %v2979
      %v2981 = vmul.f32 %v2846, 1.442695
      %v2982 = vpow.pop %v2981
      %v2983 = vmul.f32 %v2847, 1.442695
      %v2984 = vpow.pop %v2983
      %v2985 = vmul.f32 %v2848, 1.442695
      %v2986 = vpow.pop %v2985
      %v2987 = vmul.f32 %v2849, 1.442695
      %v2988 = vpow.pop %v2987
      %v2989 = vmul.f32 %v2850, 1.442695
      %v2990 = vpow.pop %v2989
      %v2991 = vmul.f32 %v2851, 1.442695
      %v2992 = vpow.pop %v2991
      %v2993 = vmul.f32 %v2852, 1.442695
      %v2994 = vpow.pop %v2993
      %v2995 = vmul.f32 %v2853, 1.442695
      %v2996 = vpow.pop %v2995
      %v2997 = vmul.f32 %v2854, 1.442695
      %v2998 = vpow.pop %v2997
      %v2999 = vsel %vm2646, %v2856, 0.0
      %v3000 = vsel %vm2646, %v2872, 0.0
      %v3001 = vadd.f32 %v2999, %v3000
      %v3002 = vsel %vm2646, %v2888, 0.0
      %v3003 = vadd.f32 %v3001, %v3002
      %v3004 = vsel %vm2646, %v2904, 0.0
      %v3005 = vadd.f32 %v3003, %v3004
      %v3006 = vsel %vm2646, %v2920, 0.0
      %v3007 = vadd.f32 %v3005, %v3006
      %v3008 = vsel %vm2646, %v2936, 0.0
      %v3009 = vadd.f32 %v3007, %v3008
      %v3010 = vsel %vm2646, %v2952, 0.0
      %v3011 = vadd.f32 %v3009, %v3010
      %v3012 = vsel %vm2646, %v2968, 0.0
      %v3013 = vadd.f32 %v3011, %v3012
      %v3014 = vsel %vm2646, %v2984, 0.0
      %v3015 = vadd.f32 %v3013, %v3014
      %v3016 = vsel %vm2646, %v2858, 0.0
      %v3017 = vsel %vm2646, %v2874, 0.0
      %v3018 = vadd.f32 %v3016, %v3017
      %v3019 = vsel %vm2646, %v2890, 0.0
      %v3020 = vadd.f32 %v3018, %v3019
      %v3021 = vsel %vm2646, %v2906, 0.0
      %v3022 = vadd.f32 %v3020, %v3021
      %v3023 = vsel %vm2646, %v2922, 0.0
      %v3024 = vadd.f32 %v3022, %v3023
      %v3025 = vsel %vm2646, %v2938, 0.0
      %v3026 = vadd.f32 %v3024, %v3025
      %v3027 = vsel %vm2646, %v2954, 0.0
      %v3028 = vadd.f32 %v3026, %v3027
      %v3029 = vsel %vm2646, %v2970, 0.0
      %v3030 = vadd.f32 %v3028, %v3029
      %v3031 = vsel %vm2646, %v2986, 0.0
      %v3032 = vadd.f32 %v3030, %v3031
      %v3033 = vsel %vm2646, %v2860, 0.0
      %v3034 = vsel %vm2646, %v2876, 0.0
      %v3035 = vadd.f32 %v3033, %v3034
      %v3036 = vsel %vm2646, %v2892, 0.0
      %v3037 = vadd.f32 %v3035, %v3036
      %v3038 = vsel %vm2646, %v2908, 0.0
      %v3039 = vadd.f32 %v3037, %v3038
      %v3040 = vsel %vm2646, %v2924, 0.0
      %v3041 = vadd.f32 %v3039, %v3040
      %v3042 = vsel %vm2646, %v2940, 0.0
      %v3043 = vadd.f32 %v3041, %v3042
      %v3044 = vsel %vm2646, %v2956, 0.0
      %v3045 = vadd.f32 %v3043, %v3044
      %v3046 = vsel %vm2646, %v2972, 0.0
      %v3047 = vadd.f32 %v3045, %v3046
      %v3048 = vsel %vm2646, %v2988, 0.0
      %v3049 = vadd.f32 %v3047, %v3048
      %v3050 = vsel %vm2646, %v2862, 0.0
      %v3051 = vsel %vm2646, %v2878, 0.0
      %v3052 = vadd.f32 %v3050, %v3051
      %v3053 = vsel %vm2646, %v2894, 0.0
      %v3054 = vadd.f32 %v3052, %v3053
      %v3055 = vsel %vm2646, %v2910, 0.0
      %v3056 = vadd.f32 %v3054, %v3055
      %v3057 = vsel %vm2646, %v2926, 0.0
      %v3058 = vadd.f32 %v3056, %v3057
      %v3059 = vsel %vm2646, %v2942, 0.0
      %v3060 = vadd.f32 %v3058, %v3059
      %v3061 = vsel %vm2646, %v2958, 0.0
      %v3062 = vadd.f32 %v3060, %v3061
      %v3063 = vsel %vm2646, %v2974, 0.0
      %v3064 = vadd.f32 %v3062, %v3063
      %v3065 = vsel %vm2646, %v2990, 0.0
      %v3066 = vadd.f32 %v3064, %v3065
      %v3067 = vsel %vm2646, %v2864, 0.0
      %v3068 = vsel %vm2646, %v2880, 0.0
      %v3069 = vadd.f32 %v3067, %v3068
      %v3070 = vsel %vm2646, %v2896, 0.0
      %v3071 = vadd.f32 %v3069, %v3070
      %v3072 = vsel %vm2646, %v2912, 0.0
      %v3073 = vadd.f32 %v3071, %v3072
      %v3074 = vsel %vm2646, %v2928, 0.0
      %v3075 = vadd.f32 %v3073, %v3074
      %v3076 = vsel %vm2646, %v2944, 0.0
      %v3077 = vadd.f32 %v3075, %v3076
      %v3078 = vsel %vm2646, %v2960, 0.0
      %v3079 = vadd.f32 %v3077, %v3078
      %v3080 = vsel %vm2646, %v2976, 0.0
      %v3081 = vadd.f32 %v3079, %v3080
      %v3082 = vsel %vm2646, %v2992, 0.0
      %v3083 = vadd.f32 %v3081, %v3082
      %v3084 = vsel %vm2646, %v2866, 0.0
      %v3085 = vsel %vm2646, %v2882, 0.0
      %v3086 = vadd.f32 %v3084, %v3085
      %v3087 = vsel %vm2646, %v2898, 0.0
      %v3088 = vadd.f32 %v3086, %v3087
      %v3089 = vsel %vm2646, %v2914, 0.0
      %v3090 = vadd.f32 %v3088, %v3089
      %v3091 = vsel %vm2646, %v2930, 0.0
      %v3092 = vadd.f32 %v3090, %v3091
      %v3093 = vsel %vm2646, %v2946, 0.0
      %v3094 = vadd.f32 %v3092, %v3093
      %v3095 = vsel %vm2646, %v2962, 0.0
      %v3096 = vadd.f32 %v3094, %v3095
      %v3097 = vsel %vm2646, %v2978, 0.0
      %v3098 = vadd.f32 %v3096, %v3097
      %v3099 = vsel %vm2646, %v2994, 0.0
      %v3100 = vadd.f32 %v3098, %v3099
      %v3101 = vsel %vm2646, %v2868, 0.0
      %v3102 = vsel %vm2646, %v2884, 0.0
      %v3103 = vadd.f32 %v3101, %v3102
      %v3104 = vsel %vm2646, %v2900, 0.0
      %v3105 = vadd.f32 %v3103, %v3104
      %v3106 = vsel %vm2646, %v2916, 0.0
      %v3107 = vadd.f32 %v3105, %v3106
      %v3108 = vsel %vm2646, %v2932, 0.0
      %v3109 = vadd.f32 %v3107, %v3108
      %v3110 = vsel %vm2646, %v2948, 0.0
      %v3111 = vadd.f32 %v3109, %v3110
      %v3112 = vsel %vm2646, %v2964, 0.0
      %v3113 = vadd.f32 %v3111, %v3112
      %v3114 = vsel %vm2646, %v2980, 0.0
      %v3115 = vadd.f32 %v3113, %v3114
      %v3116 = vsel %vm2646, %v2996, 0.0
      %v3117 = vadd.f32 %v3115, %v3116
      %v3118 = vsel %vm2646, %v2870, 0.0
      %v3119 = vsel %vm2646, %v2886, 0.0
      %v3120 = vadd.f32 %v3118, %v3119
      %v3121 = vsel %vm2646, %v2902, 0.0
      %v3122 = vadd.f32 %v3120, %v3121
      %v3123 = vsel %vm2646, %v2918, 0.0
      %v3124 = vadd.f32 %v3122, %v3123
      %v3125 = vsel %vm2646, %v2934, 0.0
      %v3126 = vadd.f32 %v3124, %v3125
      %v3127 = vsel %vm2646, %v2950, 0.0
      %v3128 = vadd.f32 %v3126, %v3127
      %v3129 = vsel %vm2646, %v2966, 0.0
      %v3130 = vadd.f32 %v3128, %v3129
      %v3131 = vsel %vm2646, %v2982, 0.0
      %v3132 = vadd.f32 %v3130, %v3131
      %v3133 = vsel %vm2646, %v2998, 0.0
      %v3134 = vadd.f32 %v3132, %v3133
      %v3135 = vrcp.pop %v3015
      %v3136 = vrcp.pop %v3032
      %v3137 = vrcp.pop %v3049
      %v3138 = vrcp.pop %v3066
      %v3139 = vrcp.pop %v3083
      %v3140 = vrcp.pop %v3100
      %v3141 = vrcp.pop %v3117
      %v3142 = vrcp.pop %v3134
      %v3143 = vmul.f32 %v2856, %v3135
      %v3144 = vmul.f32 %v2858, %v3136
      %v3145 = vmul.f32 %v2860, %v3137
      %v3146 = vmul.f32 %v2862, %v3138
      %v3147 = vmul.f32 %v2864, %v3139
      %v3148 = vmul.f32 %v2866, %v3140
      %v3149 = vmul.f32 %v2868, %v3141
      %v3150 = vmul.f32 %v2870, %v3142
      %v3151 = vmul.f32 %v2872, %v3135
      %v3152 = vmul.f32 %v2874, %v3136
      %v3153 = vmul.f32 %v2876, %v3137
      %v3154 = vmul.f32 %v2878, %v3138
      %v3155 = vmul.f32 %v2880, %v3139
      %v3156 = vmul.f32 %v2882, %v3140
      %v3157 = vmul.f32 %v2884, %v3141
      %v3158 = vmul.f32 %v2886, %v3142
      %v3159 = vmul.f32 %v2888, %v3135
      %v3160 = vmul.f32 %v2890, %v3136
      %v3161 = vmul.f32 %v2892, %v3137
      %v3162 = vmul.f32 %v2894, %v3138
      %v3163 = vmul.f32 %v2896, %v3139
      %v3164 = vmul.f32 %v2898, %v3140
      %v3165 = vmul.f32 %v2900, %v3141
      %v3166 = vmul.f32 %v2902, %v3142
      %v3167 = vmul.f32 %v2904, %v3135
      %v3168 = vmul.f32 %v2906, %v3136
      %v3169 = vmul.f32 %v2908, %v3137
      %v3170 = vmul.f32 %v2910, %v3138
      %v3171 = vmul.f32 %v2912, %v3139
      %v3172 = vmul.f32 %v2914, %v3140
      %v3173 = vmul.f32 %v2916, %v3141
      %v3174 = vmul.f32 %v2918, %v3142
      %v3175 = vmul.f32 %v2920, %v3135
      %v3176 = vmul.f32 %v2922, %v3136
      %v3177 = vmul.f32 %v2924, %v3137
      %v3178 = vmul.f32 %v2926, %v3138
      %v3179 = vmul.f32 %v2928, %v3139
      %v3180 = vmul.f32 %v2930, %v3140
      %v3181 = vmul.f32 %v2932, %v3141
      %v3182 = vmul.f32 %v2934, %v3142
      %v3183 = vmul.f32 %v2936, %v3135
      %v3184 = vmul.f32 %v2938, %v3136
      %v3185 = vmul.f32 %v2940, %v3137
      %v3186 = vmul.f32 %v2942, %v3138
      %v3187 = vmul.f32 %v2944, %v3139
      %v3188 = vmul.f32 %v2946, %v3140
      %v3189 = vmul.f32 %v2948, %v3141
      %v3190 = vmul.f32 %v2950, %v3142
      %v3191 = vmul.f32 %v2952, %v3135
      %v3192 = vmul.f32 %v2954, %v3136
      %v3193 = vmul.f32 %v2956, %v3137
      %v3194 = vmul.f32 %v2958, %v3138
      %v3195 = vmul.f32 %v2960, %v3139
      %v3196 = vmul.f32 %v2962, %v3140
      %v3197 = vmul.f32 %v2964, %v3141
      %v3198 = vmul.f32 %v2966, %v3142
      %v3199 = vmul.f32 %v2968, %v3135
      %v3200 = vmul.f32 %v2970, %v3136
      %v3201 = vmul.f32 %v2972, %v3137
      %v3202 = vmul.f32 %v2974, %v3138
      %v3203 = vmul.f32 %v2976, %v3139
      %v3204 = vmul.f32 %v2978, %v3140
      %v3205 = vmul.f32 %v2980, %v3141
      %v3206 = vmul.f32 %v2982, %v3142
      %v3207 = vmul.f32 %v2984, %v3135
      %v3208 = vmul.f32 %v2986, %v3136
      %v3209 = vmul.f32 %v2988, %v3137
      %v3210 = vmul.f32 %v2990, %v3138
      %v3211 = vmul.f32 %v2992, %v3139
      %v3212 = vmul.f32 %v2994, %v3140
      %v3213 = vmul.f32 %v2996, %v3141
      %v3214 = vmul.f32 %v2998, %v3142
      %v3215 = vld [vmem:[%s6] sm:$0xf]
      %v3217 = vsel %vm2646, %v3143, 0
      %v3220 = vsel %vm2646, %v3144, 0
      %v3223 = vsel %vm2646, %v3145, 0
      %v3226 = vsel %vm2646, %v3146, 0
      %v3229 = vsel %vm2646, %v3147, 0
      %v3232 = vsel %vm2646, %v3148, 0
      %v3235 = vsel %vm2646, %v3149, 0
      %v3238 = vsel %vm2646, %v3150, 0
      %v3241 = vsel %vm2646, %v3151, 0
      %v3244 = vsel %vm2646, %v3152, 0
      %v3247 = vsel %vm2646, %v3153, 0
      %v3250 = vsel %vm2646, %v3154, 0
      %v3253 = vsel %vm2646, %v3155, 0
      %v3256 = vsel %vm2646, %v3156, 0
      %v3259 = vsel %vm2646, %v3157, 0
      %v3262 = vsel %vm2646, %v3158, 0
      %v3265 = vsel %vm2646, %v3159, 0
      %v3268 = vsel %vm2646, %v3160, 0
      %v3271 = vsel %vm2646, %v3161, 0
      %v3274 = vsel %vm2646, %v3162, 0
      %v3277 = vsel %vm2646, %v3163, 0
      %v3280 = vsel %vm2646, %v3164, 0
      %v3283 = vsel %vm2646, %v3165, 0
      %v3286 = vsel %vm2646, %v3166, 0
      %v3289 = vsel %vm2646, %v3167, 0
      %v3292 = vsel %vm2646, %v3168, 0
      %v3295 = vsel %vm2646, %v3169, 0
      %v3298 = vsel %vm2646, %v3170, 0
      %v3301 = vsel %vm2646, %v3171, 0
      %v3304 = vsel %vm2646, %v3172, 0
      %v3307 = vsel %vm2646, %v3173, 0
      %v3310 = vsel %vm2646, %v3174, 0
      %v3313 = vsel %vm2646, %v3175, 0
      %v3316 = vsel %vm2646, %v3176, 0
      %v3319 = vsel %vm2646, %v3177, 0
      %v3322 = vsel %vm2646, %v3178, 0
      %v3325 = vsel %vm2646, %v3179, 0
      %v3328 = vsel %vm2646, %v3180, 0
      %v3331 = vsel %vm2646, %v3181, 0
      %v3334 = vsel %vm2646, %v3182, 0
      %v3337 = vsel %vm2646, %v3183, 0
      %v3340 = vsel %vm2646, %v3184, 0
      %v3343 = vsel %vm2646, %v3185, 0
      %v3346 = vsel %vm2646, %v3186, 0
      %v3349 = vsel %vm2646, %v3187, 0
      %v3352 = vsel %vm2646, %v3188, 0
      %v3355 = vsel %vm2646, %v3189, 0
      %v3358 = vsel %vm2646, %v3190, 0
      %v3361 = vsel %vm2646, %v3191, 0
      %v3364 = vsel %vm2646, %v3192, 0
      %v3367 = vsel %vm2646, %v3193, 0
      %v3370 = vsel %vm2646, %v3194, 0
      %v3373 = vsel %vm2646, %v3195, 0
      %v3376 = vsel %vm2646, %v3196, 0
      %v3379 = vsel %vm2646, %v3197, 0
      %v3382 = vsel %vm2646, %v3198, 0
      %v3385 = vsel %vm2646, %v3199, 0
      %v3388 = vsel %vm2646, %v3200, 0
      %v3391 = vsel %vm2646, %v3201, 0
      %v3394 = vsel %vm2646, %v3202, 0
      %v3397 = vsel %vm2646, %v3203, 0
      %v3400 = vsel %vm2646, %v3204, 0
      %v3403 = vsel %vm2646, %v3205, 0
      %v3406 = vsel %vm2646, %v3206, 0
      %v3409 = vsel %vm2646, %v3207, 0
      %v3412 = vsel %vm2646, %v3208, 0
      %v3415 = vsel %vm2646, %v3209, 0
      %v3418 = vsel %vm2646, %v3210, 0
      %v3421 = vsel %vm2646, %v3211, 0
      %v3424 = vsel %vm2646, %v3212, 0
      %v3427 = vsel %vm2646, %v3213, 0
      %v3430 = vsel %vm2646, %v3214, 0
      %vm3432 = vcmask 1043456
      %v3434 = vsel %vm3432, %v3215, 0
      %3436 = vmatprep.subr.mxu0 0.0
      %3437 = vmatpush1.msra.mxu0 0.0
      %3438 = vmatprep.subr.mxu0 0.0
      %3439 = vmatpush1.msra.mxu0 0.0
      %3440 = vmatprep.subr.mxu0 0.0
      %3441 = vmatpush1.msra.mxu0 0.0
      %3442 = vmatprep.subr.mxu0 0.0
      %3443 = vmatpush1.msra.mxu0 0.0
      %3444 = vmatprep.subr.mxu0 0.0
      %3445 = vmatpush1.msra.mxu0 0.0
      %3446 = vmatprep.subr.mxu0 0.0
      %3447 = vmatpush1.msra.mxu0 0.0
      %3448 = vmatprep.subr.mxu0 0.0
      %3449 = vmatpush1.msra.mxu0 0.0
      %3450 = vmatprep.subr.mxu0 0.0
      %3451 = vmatpush1.msra.mxu0 0.0
      %3452 = vmatprep.subr.mxu0 0.0
      %3453 = vmatpush1.msra.mxu0 0.0
      %3454 = vmatprep.subr.mxu0 0.0
      %3455 = vmatpush1.msra.mxu0 0.0
      %3456 = vmatprep.subr.mxu0 0.0
      %3457 = vmatpush1.msra.mxu0 0.0
      %3458 = vmatprep.subr.mxu0 0.0
      %3459 = vmatpush1.msra.mxu0 0.0
      %3460 = vmatprep.subr.mxu0 0.0
      %3461 = vmatpush1.msra.mxu0 0.0
      %3462 = vmatprep.subr.mxu0 0.0
      %3463 = vmatpush1.msra.mxu0 0.0
      %3464 = vmatprep.subr.mxu0 0.0
      %3465 = vmatpush1.msra.mxu0 0.0
      %3466 = vmatprep.subr.mxu0 0.0
      %3467 = vmatpush1.msra.mxu0 %v3434
      %3468 = vmatprep.subr.mxu0 0.0
      %3469 = vmatpush2.msra.mxu0 0.0
      %3470 = vmatprep.subr.mxu0 0.0
      %3471 = vmatpush2.msra.mxu0 0.0
      %3472 = vmatprep.subr.mxu0 0.0
      %3473 = vmatpush2.msra.mxu0 0.0
      %3474 = vmatprep.subr.mxu0 0.0
      %3475 = vmatpush2.msra.mxu0 0.0
      %3476 = vmatprep.subr.mxu0 0.0
      %3477 = vmatpush2.msra.mxu0 0.0
      %3478 = vmatprep.subr.mxu0 0.0
      %3479 = vmatpush2.msra.mxu0 0.0
      %3480 = vmatprep.subr.mxu0 0.0
      %3481 = vmatpush2.msra.mxu0 0.0
      %3482 = vmatprep.subr.mxu0 0.0
      %3483 = vmatpush2.msra.mxu0 0.0
      %3484 = vmatprep.subr.mxu0 0.0
      %3485 = vmatpush2.msra.mxu0 0.0
      %3486 = vmatprep.subr.mxu0 0.0
      %3487 = vmatpush2.msra.mxu0 0.0
      %3488 = vmatprep.subr.mxu0 0.0
      %3489 = vmatpush2.msra.mxu0 0.0
      %3490 = vmatprep.subr.mxu0 0.0
      %3491 = vmatpush2.msra.mxu0 0.0
      %3492 = vmatprep.subr.mxu0 0.0
      %3493 = vmatpush2.msra.mxu0 0.0
      %3494 = vmatprep.subr.mxu0 0.0
      %3495 = vmatpush2.msra.mxu0 0.0
      %3496 = vmatprep.subr.mxu0 0.0
      %3497 = vmatpush2.msra.mxu0 0.0
      %3498 = vmatprep.subr.mxu0 0.0
      %3499 = vmatpush2.msra.mxu0 0.0
      %3500 = vmatprep.mubr.f32.mxu0 0.0
      %3501 = vmatmul.mubr.f32.gmra.mxu0 %v3217
      %v3502 = vpop.f32.mrf.mxu0
      %v3503 = vadd.f32 0.0, %v3502
      %v3504 = vpop.f32.mrf.mxu0
      %3505 = vmatprep.mubr.f32.mxu0 0.0
      %3506 = vmatmul.mubr.f32.gmra.mxu0 %v3220
      %v3507 = vpop.f32.mrf.mxu0
      %v3508 = vadd.f32 0.0, %v3507
      %v3509 = vpop.f32.mrf.mxu0
      %3510 = vmatprep.mubr.f32.mxu0 0.0
      %3511 = vmatmul.mubr.f32.gmra.mxu0 %v3223
      %v3512 = vpop.f32.mrf.mxu0
      %v3513 = vadd.f32 0.0, %v3512
      %v3514 = vpop.f32.mrf.mxu0
      %3515 = vmatprep.mubr.f32.mxu0 0.0
      %3516 = vmatmul.mubr.f32.gmra.mxu0 %v3226
      %v3517 = vpop.f32.mrf.mxu0
      %v3518 = vadd.f32 0.0, %v3517
      %v3519 = vpop.f32.mrf.mxu0
      %3520 = vmatprep.mubr.f32.mxu0 0.0
      %3521 = vmatmul.mubr.f32.gmra.mxu0 %v3229
      %v3522 = vpop.f32.mrf.mxu0
      %v3523 = vadd.f32 0.0, %v3522
      %v3524 = vpop.f32.mrf.mxu0
      %3525 = vmatprep.mubr.f32.mxu0 0.0
      %3526 = vmatmul.mubr.f32.gmra.mxu0 %v3232
      %v3527 = vpop.f32.mrf.mxu0
      %v3528 = vadd.f32 0.0, %v3527
      %v3529 = vpop.f32.mrf.mxu0
      %3530 = vmatprep.mubr.f32.mxu0 0.0
      %3531 = vmatmul.mubr.f32.gmra.mxu0 %v3235
      %v3532 = vpop.f32.mrf.mxu0
      %v3533 = vadd.f32 0.0, %v3532
      %v3534 = vpop.f32.mrf.mxu0
      %3535 = vmatprep.mubr.f32.mxu0 0.0
      %3536 = vmatmul.mubr.f32.gmra.mxu0 %v3238
      %v3537 = vpop.f32.mrf.mxu0
      %v3538 = vadd.f32 0.0, %v3537
      %v3539 = vpop.f32.mrf.mxu0
      %3540 = vmatprep.mubr.f32.mxu0 0.0
      %3541 = vmatmul.mubr.f32.gmra.mxu0 %v3241
      %v3542 = vpop.f32.mrf.mxu0
      %v3543 = vadd.f32 0.0, %v3542
      %v3544 = vpop.f32.mrf.mxu0
      %3545 = vmatprep.mubr.f32.mxu0 0.0
      %3546 = vmatmul.mubr.f32.gmra.mxu0 %v3244
      %v3547 = vpop.f32.mrf.mxu0
      %v3548 = vadd.f32 0.0, %v3547
      %v3549 = vpop.f32.mrf.mxu0
      %3550 = vmatprep.mubr.f32.mxu0 0.0
      %3551 = vmatmul.mubr.f32.gmra.mxu0 %v3247
      %v3552 = vpop.f32.mrf.mxu0
      %v3553 = vadd.f32 0.0, %v3552
      %v3554 = vpop.f32.mrf.mxu0
      %3555 = vmatprep.mubr.f32.mxu0 0.0
      %3556 = vmatmul.mubr.f32.gmra.mxu0 %v3250
      %v3557 = vpop.f32.mrf.mxu0
      %v3558 = vadd.f32 0.0, %v3557
      %v3559 = vpop.f32.mrf.mxu0
      %3560 = vmatprep.mubr.f32.mxu0 0.0
      %3561 = vmatmul.mubr.f32.gmra.mxu0 %v3253
      %v3562 = vpop.f32.mrf.mxu0
      %v3563 = vadd.f32 0.0, %v3562
      %v3564 = vpop.f32.mrf.mxu0
      %3565 = vmatprep.mubr.f32.mxu0 0.0
      %3566 = vmatmul.mubr.f32.gmra.mxu0 %v3256
      %v3567 = vpop.f32.mrf.mxu0
      %v3568 = vadd.f32 0.0, %v3567
      %v3569 = vpop.f32.mrf.mxu0
      %3570 = vmatprep.mubr.f32.mxu0 0.0
      %3571 = vmatmul.mubr.f32.gmra.mxu0 %v3259
      %v3572 = vpop.f32.mrf.mxu0
      %v3573 = vadd.f32 0.0, %v3572
      %v3574 = vpop.f32.mrf.mxu0
      %3575 = vmatprep.mubr.f32.mxu0 0.0
      %3576 = vmatmul.mubr.f32.gmra.mxu0 %v3262
      %v3577 = vpop.f32.mrf.mxu0
      %v3578 = vadd.f32 0.0, %v3577
      %v3579 = vpop.f32.mrf.mxu0
      %3580 = vmatprep.mubr.f32.mxu0 0.0
      %3581 = vmatmul.mubr.f32.gmra.mxu0 %v3265
      %v3582 = vpop.f32.mrf.mxu0
      %v3583 = vadd.f32 0.0, %v3582
      %v3584 = vpop.f32.mrf.mxu0
      %3585 = vmatprep.mubr.f32.mxu0 0.0
      %3586 = vmatmul.mubr.f32.gmra.mxu0 %v3268
      %v3587 = vpop.f32.mrf.mxu0
      %v3588 = vadd.f32 0.0, %v3587
      %v3589 = vpop.f32.mrf.mxu0
      %3590 = vmatprep.mubr.f32.mxu0 0.0
      %3591 = vmatmul.mubr.f32.gmra.mxu0 %v3271
      %v3592 = vpop.f32.mrf.mxu0
      %v3593 = vadd.f32 0.0, %v3592
      %v3594 = vpop.f32.mrf.mxu0
      %3595 = vmatprep.mubr.f32.mxu0 0.0
      %3596 = vmatmul.mubr.f32.gmra.mxu0 %v3274
      %v3597 = vpop.f32.mrf.mxu0
      %v3598 = vadd.f32 0.0, %v3597
      %v3599 = vpop.f32.mrf.mxu0
      %3600 = vmatprep.mubr.f32.mxu0 0.0
      %3601 = vmatmul.mubr.f32.gmra.mxu0 %v3277
      %v3602 = vpop.f32.mrf.mxu0
      %v3603 = vadd.f32 0.0, %v3602
      %v3604 = vpop.f32.mrf.mxu0
      %3605 = vmatprep.mubr.f32.mxu0 0.0
      %3606 = vmatmul.mubr.f32.gmra.mxu0 %v3280
      %v3607 = vpop.f32.mrf.mxu0
      %v3608 = vadd.f32 0.0, %v3607
      %v3609 = vpop.f32.mrf.mxu0
      %3610 = vmatprep.mubr.f32.mxu0 0.0
      %3611 = vmatmul.mubr.f32.gmra.mxu0 %v3283
      %v3612 = vpop.f32.mrf.mxu0
      %v3613 = vadd.f32 0.0, %v3612
      %v3614 = vpop.f32.mrf.mxu0
      %3615 = vmatprep.mubr.f32.mxu0 0.0
      %3616 = vmatmul.mubr.f32.gmra.mxu0 %v3286
      %v3617 = vpop.f32.mrf.mxu0
      %v3618 = vadd.f32 0.0, %v3617
      %v3619 = vpop.f32.mrf.mxu0
      %3620 = vmatprep.mubr.f32.mxu0 0.0
      %3621 = vmatmul.mubr.f32.gmra.mxu0 %v3289
      %v3622 = vpop.f32.mrf.mxu0
      %v3623 = vadd.f32 0.0, %v3622
      %v3624 = vpop.f32.mrf.mxu0
      %3625 = vmatprep.mubr.f32.mxu0 0.0
      %3626 = vmatmul.mubr.f32.gmra.mxu0 %v3292
      %v3627 = vpop.f32.mrf.mxu0
      %v3628 = vadd.f32 0.0, %v3627
      %v3629 = vpop.f32.mrf.mxu0
      %3630 = vmatprep.mubr.f32.mxu0 0.0
      %3631 = vmatmul.mubr.f32.gmra.mxu0 %v3295
      %v3632 = vpop.f32.mrf.mxu0
      %v3633 = vadd.f32 0.0, %v3632
      %v3634 = vpop.f32.mrf.mxu0
      %3635 = vmatprep.mubr.f32.mxu0 0.0
      %3636 = vmatmul.mubr.f32.gmra.mxu0 %v3298
      %v3637 = vpop.f32.mrf.mxu0
      %v3638 = vadd.f32 0.0, %v3637
      %v3639 = vpop.f32.mrf.mxu0
      %3640 = vmatprep.mubr.f32.mxu0 0.0
      %3641 = vmatmul.mubr.f32.gmra.mxu0 %v3301
      %v3642 = vpop.f32.mrf.mxu0
      %v3643 = vadd.f32 0.0, %v3642
      %v3644 = vpop.f32.mrf.mxu0
      %3645 = vmatprep.mubr.f32.mxu0 0.0
      %3646 = vmatmul.mubr.f32.gmra.mxu0 %v3304
      %v3647 = vpop.f32.mrf.mxu0
      %v3648 = vadd.f32 0.0, %v3647
      %v3649 = vpop.f32.mrf.mxu0
      %3650 = vmatprep.mubr.f32.mxu0 0.0
      %3651 = vmatmul.mubr.f32.gmra.mxu0 %v3307
      %v3652 = vpop.f32.mrf.mxu0
      %v3653 = vadd.f32 0.0, %v3652
      %v3654 = vpop.f32.mrf.mxu0
      %3655 = vmatprep.mubr.f32.mxu0 0.0
      %3656 = vmatmul.mubr.f32.gmra.mxu0 %v3310
      %v3657 = vpop.f32.mrf.mxu0
      %v3658 = vadd.f32 0.0, %v3657
      %v3659 = vpop.f32.mrf.mxu0
      %3660 = vmatprep.mubr.f32.mxu0 0.0
      %3661 = vmatmul.mubr.f32.gmra.mxu0 %v3313
      %v3662 = vpop.f32.mrf.mxu0
      %v3663 = vadd.f32 0.0, %v3662
      %v3664 = vpop.f32.mrf.mxu0
      %3665 = vmatprep.mubr.f32.mxu0 0.0
      %3666 = vmatmul.mubr.f32.gmra.mxu0 %v3316
      %v3667 = vpop.f32.mrf.mxu0
      %v3668 = vadd.f32 0.0, %v3667
      %v3669 = vpop.f32.mrf.mxu0
      %3670 = vmatprep.mubr.f32.mxu0 0.0
      %3671 = vmatmul.mubr.f32.gmra.mxu0 %v3319
      %v3672 = vpop.f32.mrf.mxu0
      %v3673 = vadd.f32 0.0, %v3672
      %v3674 = vpop.f32.mrf.mxu0
      %3675 = vmatprep.mubr.f32.mxu0 0.0
      %3676 = vmatmul.mubr.f32.gmra.mxu0 %v3322
      %v3677 = vpop.f32.mrf.mxu0
      %v3678 = vadd.f32 0.0, %v3677
      %v3679 = vpop.f32.mrf.mxu0
      %3680 = vmatprep.mubr.f32.mxu0 0.0
      %3681 = vmatmul.mubr.f32.gmra.mxu0 %v3325
      %v3682 = vpop.f32.mrf.mxu0
      %v3683 = vadd.f32 0.0, %v3682
      %v3684 = vpop.f32.mrf.mxu0
      %3685 = vmatprep.mubr.f32.mxu0 0.0
      %3686 = vmatmul.mubr.f32.gmra.mxu0 %v3328
      %v3687 = vpop.f32.mrf.mxu0
      %v3688 = vadd.f32 0.0, %v3687
      %v3689 = vpop.f32.mrf.mxu0
      %3690 = vmatprep.mubr.f32.mxu0 0.0
      %3691 = vmatmul.mubr.f32.gmra.mxu0 %v3331
      %v3692 = vpop.f32.mrf.mxu0
      %v3693 = vadd.f32 0.0, %v3692
      %v3694 = vpop.f32.mrf.mxu0
      %3695 = vmatprep.mubr.f32.mxu0 0.0
      %3696 = vmatmul.mubr.f32.gmra.mxu0 %v3334
      %v3697 = vpop.f32.mrf.mxu0
      %v3698 = vadd.f32 0.0, %v3697
      %v3699 = vpop.f32.mrf.mxu0
      %3700 = vmatprep.mubr.f32.mxu0 0.0
      %3701 = vmatmul.mubr.f32.gmra.mxu0 %v3337
      %v3702 = vpop.f32.mrf.mxu0
      %v3703 = vadd.f32 0.0, %v3702
      %v3704 = vpop.f32.mrf.mxu0
      %3705 = vmatprep.mubr.f32.mxu0 0.0
      %3706 = vmatmul.mubr.f32.gmra.mxu0 %v3340
      %v3707 = vpop.f32.mrf.mxu0
      %v3708 = vadd.f32 0.0, %v3707
      %v3709 = vpop.f32.mrf.mxu0
      %3710 = vmatprep.mubr.f32.mxu0 0.0
      %3711 = vmatmul.mubr.f32.gmra.mxu0 %v3343
      %v3712 = vpop.f32.mrf.mxu0
      %v3713 = vadd.f32 0.0, %v3712
      %v3714 = vpop.f32.mrf.mxu0
      %3715 = vmatprep.mubr.f32.mxu0 0.0
      %3716 = vmatmul.mubr.f32.gmra.mxu0 %v3346
      %v3717 = vpop.f32.mrf.mxu0
      %v3718 = vadd.f32 0.0, %v3717
      %v3719 = vpop.f32.mrf.mxu0
      %3720 = vmatprep.mubr.f32.mxu0 0.0
      %3721 = vmatmul.mubr.f32.gmra.mxu0 %v3349
      %v3722 = vpop.f32.mrf.mxu0
      %v3723 = vadd.f32 0.0, %v3722
      %v3724 = vpop.f32.mrf.mxu0
      %3725 = vmatprep.mubr.f32.mxu0 0.0
      %3726 = vmatmul.mubr.f32.gmra.mxu0 %v3352
      %v3727 = vpop.f32.mrf.mxu0
      %v3728 = vadd.f32 0.0, %v3727
      %v3729 = vpop.f32.mrf.mxu0
      %3730 = vmatprep.mubr.f32.mxu0 0.0
      %3731 = vmatmul.mubr.f32.gmra.mxu0 %v3355
      %v3732 = vpop.f32.mrf.mxu0
      %v3733 = vadd.f32 0.0, %v3732
      %v3734 = vpop.f32.mrf.mxu0
      %3735 = vmatprep.mubr.f32.mxu0 0.0
      %3736 = vmatmul.mubr.f32.gmra.mxu0 %v3358
      %v3737 = vpop.f32.mrf.mxu0
      %v3738 = vadd.f32 0.0, %v3737
      %v3739 = vpop.f32.mrf.mxu0
      %3740 = vmatprep.mubr.f32.mxu0 0.0
      %3741 = vmatmul.mubr.f32.gmra.mxu0 %v3361
      %v3742 = vpop.f32.mrf.mxu0
      %v3743 = vadd.f32 0.0, %v3742
      %v3744 = vpop.f32.mrf.mxu0
      %3745 = vmatprep.mubr.f32.mxu0 0.0
      %3746 = vmatmul.mubr.f32.gmra.mxu0 %v3364
      %v3747 = vpop.f32.mrf.mxu0
      %v3748 = vadd.f32 0.0, %v3747
      %v3749 = vpop.f32.mrf.mxu0
      %3750 = vmatprep.mubr.f32.mxu0 0.0
      %3751 = vmatmul.mubr.f32.gmra.mxu0 %v3367
      %v3752 = vpop.f32.mrf.mxu0
      %v3753 = vadd.f32 0.0, %v3752
      %v3754 = vpop.f32.mrf.mxu0
      %3755 = vmatprep.mubr.f32.mxu0 0.0
      %3756 = vmatmul.mubr.f32.gmra.mxu0 %v3370
      %v3757 = vpop.f32.mrf.mxu0
      %v3758 = vadd.f32 0.0, %v3757
      %v3759 = vpop.f32.mrf.mxu0
      %3760 = vmatprep.mubr.f32.mxu0 0.0
      %3761 = vmatmul.mubr.f32.gmra.mxu0 %v3373
      %v3762 = vpop.f32.mrf.mxu0
      %v3763 = vadd.f32 0.0, %v3762
      %v3764 = vpop.f32.mrf.mxu0
      %3765 = vmatprep.mubr.f32.mxu0 0.0
      %3766 = vmatmul.mubr.f32.gmra.mxu0 %v3376
      %v3767 = vpop.f32.mrf.mxu0
      %v3768 = vadd.f32 0.0, %v3767
      %v3769 = vpop.f32.mrf.mxu0
      %3770 = vmatprep.mubr.f32.mxu0 0.0
      %3771 = vmatmul.mubr.f32.gmra.mxu0 %v3379
      %v3772 = vpop.f32.mrf.mxu0
      %v3773 = vadd.f32 0.0, %v3772
      %v3774 = vpop.f32.mrf.mxu0
      %3775 = vmatprep.mubr.f32.mxu0 0.0
      %3776 = vmatmul.mubr.f32.gmra.mxu0 %v3382
      %v3777 = vpop.f32.mrf.mxu0
      %v3778 = vadd.f32 0.0, %v3777
      %v3779 = vpop.f32.mrf.mxu0
      %3780 = vmatprep.mubr.f32.mxu0 0.0
      %3781 = vmatmul.mubr.f32.gmra.mxu0 %v3385
      %v3782 = vpop.f32.mrf.mxu0
      %v3783 = vadd.f32 0.0, %v3782
      %v3784 = vpop.f32.mrf.mxu0
      %3785 = vmatprep.mubr.f32.mxu0 0.0
      %3786 = vmatmul.mubr.f32.gmra.mxu0 %v3388
      %v3787 = vpop.f32.mrf.mxu0
      %v3788 = vadd.f32 0.0, %v3787
      %v3789 = vpop.f32.mrf.mxu0
      %3790 = vmatprep.mubr.f32.mxu0 0.0
      %3791 = vmatmul.mubr.f32.gmra.mxu0 %v3391
      %v3792 = vpop.f32.mrf.mxu0
      %v3793 = vadd.f32 0.0, %v3792
      %v3794 = vpop.f32.mrf.mxu0
      %3795 = vmatprep.mubr.f32.mxu0 0.0
      %3796 = vmatmul.mubr.f32.gmra.mxu0 %v3394
      %v3797 = vpop.f32.mrf.mxu0
      %v3798 = vadd.f32 0.0, %v3797
      %v3799 = vpop.f32.mrf.mxu0
      %3800 = vmatprep.mubr.f32.mxu0 0.0
      %3801 = vmatmul.mubr.f32.gmra.mxu0 %v3397
      %v3802 = vpop.f32.mrf.mxu0
      %v3803 = vadd.f32 0.0, %v3802
      %v3804 = vpop.f32.mrf.mxu0
      %3805 = vmatprep.mubr.f32.mxu0 0.0
      %3806 = vmatmul.mubr.f32.gmra.mxu0 %v3400
      %v3807 = vpop.f32.mrf.mxu0
      %v3808 = vadd.f32 0.0, %v3807
      %v3809 = vpop.f32.mrf.mxu0
      %3810 = vmatprep.mubr.f32.mxu0 0.0
      %3811 = vmatmul.mubr.f32.gmra.mxu0 %v3403
      %v3812 = vpop.f32.mrf.mxu0
      %v3813 = vadd.f32 0.0, %v3812
      %v3814 = vpop.f32.mrf.mxu0
      %3815 = vmatprep.mubr.f32.mxu0 0.0
      %3816 = vmatmul.mubr.f32.gmra.mxu0 %v3406
      %v3817 = vpop.f32.mrf.mxu0
      %v3818 = vadd.f32 0.0, %v3817
      %v3819 = vpop.f32.mrf.mxu0
      %3820 = vmatprep.mubr.f32.mxu0 0.0
      %3821 = vmatmul.mubr.f32.gmra.mxu0 %v3409
      %v3822 = vpop.f32.mrf.mxu0
      %v3823 = vadd.f32 0.0, %v3822
      %v3824 = vpop.f32.mrf.mxu0
      %3825 = vmatprep.mubr.f32.mxu0 0.0
      %3826 = vmatmul.mubr.f32.gmra.mxu0 %v3412
      %v3827 = vpop.f32.mrf.mxu0
      %v3828 = vadd.f32 0.0, %v3827
      %v3829 = vpop.f32.mrf.mxu0
      %3830 = vmatprep.mubr.f32.mxu0 0.0
      %3831 = vmatmul.mubr.f32.gmra.mxu0 %v3415
      %v3832 = vpop.f32.mrf.mxu0
      %v3833 = vadd.f32 0.0, %v3832
      %v3834 = vpop.f32.mrf.mxu0
      %3835 = vmatprep.mubr.f32.mxu0 0.0
      %3836 = vmatmul.mubr.f32.gmra.mxu0 %v3418
      %v3837 = vpop.f32.mrf.mxu0
      %v3838 = vadd.f32 0.0, %v3837
      %v3839 = vpop.f32.mrf.mxu0
      %3840 = vmatprep.mubr.f32.mxu0 0.0
      %3841 = vmatmul.mubr.f32.gmra.mxu0 %v3421
      %v3842 = vpop.f32.mrf.mxu0
      %v3843 = vadd.f32 0.0, %v3842
      %v3844 = vpop.f32.mrf.mxu0
      %3845 = vmatprep.mubr.f32.mxu0 0.0
      %3846 = vmatmul.mubr.f32.gmra.mxu0 %v3424
      %v3847 = vpop.f32.mrf.mxu0
      %v3848 = vadd.f32 0.0, %v3847
      %v3849 = vpop.f32.mrf.mxu0
      %3850 = vmatprep.mubr.f32.mxu0 0.0
      %3851 = vmatmul.mubr.f32.gmra.mxu0 %v3427
      %v3852 = vpop.f32.mrf.mxu0
      %v3853 = vadd.f32 0.0, %v3852
      %v3854 = vpop.f32.mrf.mxu0
      %3855 = vmatprep.mubr.f32.mxu0 0.0
      %3856 = vmatmul.mubr.f32.gmra.mxu0 %v3430
      %v3857 = vpop.f32.mrf.mxu0
      %v3858 = vadd.f32 0.0, %v3857
      %v3859 = vpop.f32.mrf.mxu0
      %3860 = vdwg.mxu0
      %v3861 = vmul.f32 %v3503, %v1427
      %v3862 = vmul.f32 %v3508, %v1432
      %v3863 = vmul.f32 %v3513, %v1437
      %v3864 = vmul.f32 %v3518, %v1442
      %v3865 = vmul.f32 %v3523, %v1447
      %v3866 = vmul.f32 %v3528, %v1452
      %v3867 = vmul.f32 %v3533, %v1457
      %v3868 = vmul.f32 %v3538, %v1462
      %v3869 = vmul.f32 %v3543, %v1467
      %v3870 = vmul.f32 %v3548, %v1472
      %v3871 = vmul.f32 %v3553, %v1477
      %v3872 = vmul.f32 %v3558, %v1482
      %v3873 = vmul.f32 %v3563, %v1487
      %v3874 = vmul.f32 %v3568, %v1492
      %v3875 = vmul.f32 %v3573, %v1497
      %v3876 = vmul.f32 %v3578, %v1502
      %v3877 = vmul.f32 %v3583, %v1507
      %v3878 = vmul.f32 %v3588, %v1512
      %v3879 = vmul.f32 %v3593, %v1517
      %v3880 = vmul.f32 %v3598, %v1522
      %v3881 = vmul.f32 %v3603, %v1527
      %v3882 = vmul.f32 %v3608, %v1532
      %v3883 = vmul.f32 %v3613, %v1537
      %v3884 = vmul.f32 %v3618, %v1542
      %v3885 = vmul.f32 %v3623, %v1547
      %v3886 = vmul.f32 %v3628, %v1552
      %v3887 = vmul.f32 %v3633, %v1557
      %v3888 = vmul.f32 %v3638, %v1562
      %v3889 = vmul.f32 %v3643, %v1567
      %v3890 = vmul.f32 %v3648, %v1572
      %v3891 = vmul.f32 %v3653, %v1577
      %v3892 = vmul.f32 %v3658, %v1582
      %v3893 = vmul.f32 %v3663, %v1587
      %v3894 = vmul.f32 %v3668, %v1592
      %v3895 = vmul.f32 %v3673, %v1597
      %v3896 = vmul.f32 %v3678, %v1602
      %v3897 = vmul.f32 %v3683, %v1607
      %v3898 = vmul.f32 %v3688, %v1612
      %v3899 = vmul.f32 %v3693, %v1617
      %v3900 = vmul.f32 %v3698, %v1622
      %v3901 = vmul.f32 %v3703, %v1627
      %v3902 = vmul.f32 %v3708, %v1632
      %v3903 = vmul.f32 %v3713, %v1637
      %v3904 = vmul.f32 %v3718, %v1642
      %v3905 = vmul.f32 %v3723, %v1647
      %v3906 = vmul.f32 %v3728, %v1652
      %v3907 = vmul.f32 %v3733, %v1657
      %v3908 = vmul.f32 %v3738, %v1662
      %v3909 = vmul.f32 %v3743, %v1667
      %v3910 = vmul.f32 %v3748, %v1672
      %v3911 = vmul.f32 %v3753, %v1677
      %v3912 = vmul.f32 %v3758, %v1682
      %v3913 = vmul.f32 %v3763, %v1687
      %v3914 = vmul.f32 %v3768, %v1692
      %v3915 = vmul.f32 %v3773, %v1697
      %v3916 = vmul.f32 %v3778, %v1702
      %v3917 = vmul.f32 %v3783, %v1707
      %v3918 = vmul.f32 %v3788, %v1712
      %v3919 = vmul.f32 %v3793, %v1717
      %v3920 = vmul.f32 %v3798, %v1722
      %v3921 = vmul.f32 %v3803, %v1727
      %v3922 = vmul.f32 %v3808, %v1732
      %v3923 = vmul.f32 %v3813, %v1737
      %v3924 = vmul.f32 %v3818, %v1742
      %v3925 = vmul.f32 %v3823, %v1747
      %v3926 = vmul.f32 %v3828, %v1752
      %v3927 = vmul.f32 %v3833, %v1757
      %v3928 = vmul.f32 %v3838, %v1762
      %v3929 = vmul.f32 %v3843, %v1767
      %v3930 = vmul.f32 %v3848, %v1772
      %v3931 = vmul.f32 %v3853, %v1777
      %v3932 = vmul.f32 %v3858, %v1782
      %v3933 = vsel %vm460, %v3861, 0.0
      %v3934 = vsel %vm460, %v3869, 0.0
      %v3935 = vadd.f32 %v3933, %v3934
      %v3936 = vsel %vm460, %v3877, 0.0
      %v3937 = vadd.f32 %v3935, %v3936
      %v3938 = vsel %vm460, %v3885, 0.0
      %v3939 = vadd.f32 %v3937, %v3938
      %v3940 = vsel %vm460, %v3893, 0.0
      %v3941 = vadd.f32 %v3939, %v3940
      %v3942 = vsel %vm460, %v3901, 0.0
      %v3943 = vadd.f32 %v3941, %v3942
      %v3944 = vsel %vm460, %v3909, 0.0
      %v3945 = vadd.f32 %v3943, %v3944
      %v3946 = vsel %vm460, %v3917, 0.0
      %v3947 = vadd.f32 %v3945, %v3946
      %v3948 = vsel %vm460, %v3925, 0.0
      %v3949 = vadd.f32 %v3947, %v3948
      %v3950 = vsel %vm460, %v3862, 0.0
      %v3951 = vsel %vm460, %v3870, 0.0
      %v3952 = vadd.f32 %v3950, %v3951
      %v3953 = vsel %vm460, %v3878, 0.0
      %v3954 = vadd.f32 %v3952, %v3953
      %v3955 = vsel %vm460, %v3886, 0.0
      %v3956 = vadd.f32 %v3954, %v3955
      %v3957 = vsel %vm460, %v3894, 0.0
      %v3958 = vadd.f32 %v3956, %v3957
      %v3959 = vsel %vm460, %v3902, 0.0
      %v3960 = vadd.f32 %v3958, %v3959
      %v3961 = vsel %vm460, %v3910, 0.0
      %v3962 = vadd.f32 %v3960, %v3961
      %v3963 = vsel %vm460, %v3918, 0.0
      %v3964 = vadd.f32 %v3962, %v3963
      %v3965 = vsel %vm460, %v3926, 0.0
      %v3966 = vadd.f32 %v3964, %v3965
      %v3967 = vsel %vm460, %v3863, 0.0
      %v3968 = vsel %vm460, %v3871, 0.0
      %v3969 = vadd.f32 %v3967, %v3968
      %v3970 = vsel %vm460, %v3879, 0.0
      %v3971 = vadd.f32 %v3969, %v3970
      %v3972 = vsel %vm460, %v3887, 0.0
      %v3973 = vadd.f32 %v3971, %v3972
      %v3974 = vsel %vm460, %v3895, 0.0
      %v3975 = vadd.f32 %v3973, %v3974
      %v3976 = vsel %vm460, %v3903, 0.0
      %v3977 = vadd.f32 %v3975, %v3976
      %v3978 = vsel %vm460, %v3911, 0.0
      %v3979 = vadd.f32 %v3977, %v3978
      %v3980 = vsel %vm460, %v3919, 0.0
      %v3981 = vadd.f32 %v3979, %v3980
      %v3982 = vsel %vm460, %v3927, 0.0
      %v3983 = vadd.f32 %v3981, %v3982
      %v3984 = vsel %vm460, %v3864, 0.0
      %v3985 = vsel %vm460, %v3872, 0.0
      %v3986 = vadd.f32 %v3984, %v3985
      %v3987 = vsel %vm460, %v3880, 0.0
      %v3988 = vadd.f32 %v3986, %v3987
      %v3989 = vsel %vm460, %v3888, 0.0
      %v3990 = vadd.f32 %v3988, %v3989
      %v3991 = vsel %vm460, %v3896, 0.0
      %v3992 = vadd.f32 %v3990, %v3991
      %v3993 = vsel %vm460, %v3904, 0.0
      %v3994 = vadd.f32 %v3992, %v3993
      %v3995 = vsel %vm460, %v3912, 0.0
      %v3996 = vadd.f32 %v3994, %v3995
      %v3997 = vsel %vm460, %v3920, 0.0
      %v3998 = vadd.f32 %v3996, %v3997
      %v3999 = vsel %vm460, %v3928, 0.0
      %v4000 = vadd.f32 %v3998, %v3999
      %v4001 = vsel %vm460, %v3865, 0.0
      %v4002 = vsel %vm460, %v3873, 0.0
      %v4003 = vadd.f32 %v4001, %v4002
      %v4004 = vsel %vm460, %v3881, 0.0
      %v4005 = vadd.f32 %v4003, %v4004
      %v4006 = vsel %vm460, %v3889, 0.0
      %v4007 = vadd.f32 %v4005, %v4006
      %v4008 = vsel %vm460, %v3897, 0.0
      %v4009 = vadd.f32 %v4007, %v4008
      %v4010 = vsel %vm460, %v3905, 0.0
      %v4011 = vadd.f32 %v4009, %v4010
      %v4012 = vsel %vm460, %v3913, 0.0
      %v4013 = vadd.f32 %v4011, %v4012
      %v4014 = vsel %vm460, %v3921, 0.0
      %v4015 = vadd.f32 %v4013, %v4014
      %v4016 = vsel %vm460, %v3929, 0.0
      %v4017 = vadd.f32 %v4015, %v4016
      %v4018 = vsel %vm460, %v3866, 0.0
      %v4019 = vsel %vm460, %v3874, 0.0
      %v4020 = vadd.f32 %v4018, %v4019
      %v4021 = vsel %vm460, %v3882, 0.0
      %v4022 = vadd.f32 %v4020, %v4021
      %v4023 = vsel %vm460, %v3890, 0.0
      %v4024 = vadd.f32 %v4022, %v4023
      %v4025 = vsel %vm460, %v3898, 0.0
      %v4026 = vadd.f32 %v4024, %v4025
      %v4027 = vsel %vm460, %v3906, 0.0
      %v4028 = vadd.f32 %v4026, %v4027
      %v4029 = vsel %vm460, %v3914, 0.0
      %v4030 = vadd.f32 %v4028, %v4029
      %v4031 = vsel %vm460, %v3922, 0.0
      %v4032 = vadd.f32 %v4030, %v4031
      %v4033 = vsel %vm460, %v3930, 0.0
      %v4034 = vadd.f32 %v4032, %v4033
      %v4035 = vsel %vm460, %v3867, 0.0
      %v4036 = vsel %vm460, %v3875, 0.0
      %v4037 = vadd.f32 %v4035, %v4036
      %v4038 = vsel %vm460, %v3883, 0.0
      %v4039 = vadd.f32 %v4037, %v4038
      %v4040 = vsel %vm460, %v3891, 0.0
      %v4041 = vadd.f32 %v4039, %v4040
      %v4042 = vsel %vm460, %v3899, 0.0
      %v4043 = vadd.f32 %v4041, %v4042
      %v4044 = vsel %vm460, %v3907, 0.0
      %v4045 = vadd.f32 %v4043, %v4044
      %v4046 = vsel %vm460, %v3915, 0.0
      %v4047 = vadd.f32 %v4045, %v4046
      %v4048 = vsel %vm460, %v3923, 0.0
      %v4049 = vadd.f32 %v4047, %v4048
      %v4050 = vsel %vm460, %v3931, 0.0
      %v4051 = vadd.f32 %v4049, %v4050
      %v4052 = vsel %vm460, %v3868, 0.0
      %v4053 = vsel %vm460, %v3876, 0.0
      %v4054 = vadd.f32 %v4052, %v4053
      %v4055 = vsel %vm460, %v3884, 0.0
      %v4056 = vadd.f32 %v4054, %v4055
      %v4057 = vsel %vm460, %v3892, 0.0
      %v4058 = vadd.f32 %v4056, %v4057
      %v4059 = vsel %vm460, %v3900, 0.0
      %v4060 = vadd.f32 %v4058, %v4059
      %v4061 = vsel %vm460, %v3908, 0.0
      %v4062 = vadd.f32 %v4060, %v4061
      %v4063 = vsel %vm460, %v3916, 0.0
      %v4064 = vadd.f32 %v4062, %v4063
      %v4065 = vsel %vm460, %v3924, 0.0
      %v4066 = vadd.f32 %v4064, %v4065
      %v4067 = vsel %vm460, %v3932, 0.0
      %v4068 = vadd.f32 %v4066, %v4067
      %v4069 = vld [vmem:[%s7] sm:$0xff]
      %v4070 = vld [vmem:[%s7 + $0x8] sm:$0xff]
      %v4071 = vld [vmem:[%s7 + $0x10] sm:$0xff]
      %v4072 = vld [vmem:[%s7 + $0x18] sm:$0xff]
      %v4073 = vld [vmem:[%s8] sm:$0x1]
      %v4075 = vlaneseq
      %v4076 = vshrl.u32 %v4075, 7
      %v4077 = vsub.s32 0, %v4076
      %v4078 = vrot.slane %v4073, %v4077
      %v4081 = vsel %vm460, %v3949, 0
      %v4084 = vsel %vm460, %v3966, 0
      %v4087 = vsel %vm460, %v3983, 0
      %v4090 = vsel %vm460, %v4000, 0
      %v4093 = vsel %vm460, %v4017, 0
      %v4096 = vsel %vm460, %v4034, 0
      %v4099 = vsel %vm460, %v4051, 0
      %v4102 = vsel %vm460, %v4068, 0
      %4104 = vmatprep.subr.mxu0 0.0
      %4105 = vmatpush1.msra.mxu0 0.0
      %4106 = vmatprep.subr.mxu0 0.0
      %4107 = vmatpush1.msra.mxu0 0.0
      %4108 = vmatprep.subr.mxu0 0.0
      %4109 = vmatpush1.msra.mxu0 0.0
      %4110 = vmatprep.subr.mxu0 0.0
      %4111 = vmatpush1.msra.mxu0 0.0
      %4112 = vmatprep.subr.mxu0 0.0
      %4113 = vmatpush1.msra.mxu0 0.0
      %4114 = vmatprep.subr.mxu0 0.0
      %4115 = vmatpush1.msra.mxu0 0.0
      %4116 = vmatprep.subr.mxu0 0.0
      %4117 = vmatpush1.msra.mxu0 0.0
      %4118 = vmatprep.subr.mxu0 0.0
      %4119 = vmatpush1.msra.mxu0 0.0
      %4120 = vmatprep.subr.mxu0 0.0
      %4121 = vmatpush1.msra.mxu0 0.0
      %4122 = vmatprep.subr.mxu0 0.0
      %4123 = vmatpush1.msra.mxu0 0.0
      %4124 = vmatprep.subr.mxu0 0.0
      %4125 = vmatpush1.msra.mxu0 0.0
      %4126 = vmatprep.subr.mxu0 0.0
      %4127 = vmatpush1.msra.mxu0 0.0
      %4128 = vmatprep.subr.mxu0 0.0
      %4129 = vmatpush1.msra.mxu0 %v4072
      %4130 = vmatprep.subr.mxu0 0.0
      %4131 = vmatpush1.msra.mxu0 %v4071
      %4132 = vmatprep.subr.mxu0 0.0
      %4133 = vmatpush1.msra.mxu0 %v4070
      %4134 = vmatprep.subr.mxu0 0.0
      %4135 = vmatpush1.msra.mxu0 %v4069
      %4136 = vmatprep.subr.mxu0 0.0
      %4137 = vmatpush2.msra.mxu0 0.0
      %4138 = vmatprep.subr.mxu0 0.0
      %4139 = vmatpush2.msra.mxu0 0.0
      %4140 = vmatprep.subr.mxu0 0.0
      %4141 = vmatpush2.msra.mxu0 0.0
      %4142 = vmatprep.subr.mxu0 0.0
      %4143 = vmatpush2.msra.mxu0 0.0
      %4144 = vmatprep.subr.mxu0 0.0
      %4145 = vmatpush2.msra.mxu0 0.0
      %4146 = vmatprep.subr.mxu0 0.0
      %4147 = vmatpush2.msra.mxu0 0.0
      %4148 = vmatprep.subr.mxu0 0.0
      %4149 = vmatpush2.msra.mxu0 0.0
      %4150 = vmatprep.subr.mxu0 0.0
      %4151 = vmatpush2.msra.mxu0 0.0
      %4152 = vmatprep.subr.mxu0 0.0
      %4153 = vmatpush2.msra.mxu0 0.0
      %4154 = vmatprep.subr.mxu0 0.0
      %4155 = vmatpush2.msra.mxu0 0.0
      %4156 = vmatprep.subr.mxu0 0.0
      %4157 = vmatpush2.msra.mxu0 0.0
      %4158 = vmatprep.subr.mxu0 0.0
      %4159 = vmatpush2.msra.mxu0 0.0
      %4160 = vmatprep.subr.mxu0 0.0
      %4161 = vmatpush2.msra.mxu0 0.0
      %4162 = vmatprep.subr.mxu0 0.0
      %4163 = vmatpush2.msra.mxu0 0.0
      %4164 = vmatprep.subr.mxu0 0.0
      %4165 = vmatpush2.msra.mxu0 0.0
      %4166 = vmatprep.subr.mxu0 0.0
      %4167 = vmatpush2.msra.mxu0 0.0
      %4168 = vmatprep.mubr.f32.mxu0 0.0
      %4169 = vmatmul.mubr.f32.gmra.mxu0 %v4081
      %v4170 = vpop.f32.mrf.mxu0
      %v4171 = vadd.f32 %v4078, %v4170
      %v4172 = vpop.f32.mrf.mxu0
      %4173 = vmatprep.mubr.f32.mxu0 0.0
      %4174 = vmatmul.mubr.f32.gmra.mxu0 %v4084
      %v4175 = vpop.f32.mrf.mxu0
      %v4176 = vadd.f32 %v4078, %v4175
      %v4177 = vpop.f32.mrf.mxu0
      %4178 = vmatprep.mubr.f32.mxu0 0.0
      %4179 = vmatmul.mubr.f32.gmra.mxu0 %v4087
      %v4180 = vpop.f32.mrf.mxu0
      %v4181 = vadd.f32 %v4078, %v4180
      %v4182 = vpop.f32.mrf.mxu0
      %4183 = vmatprep.mubr.f32.mxu0 0.0
      %4184 = vmatmul.mubr.f32.gmra.mxu0 %v4090
      %v4185 = vpop.f32.mrf.mxu0
      %v4186 = vadd.f32 %v4078, %v4185
      %v4187 = vpop.f32.mrf.mxu0
      %4188 = vmatprep.mubr.f32.mxu0 0.0
      %4189 = vmatmul.mubr.f32.gmra.mxu0 %v4093
      %v4190 = vpop.f32.mrf.mxu0
      %v4191 = vadd.f32 %v4078, %v4190
      %v4192 = vpop.f32.mrf.mxu0
      %4193 = vmatprep.mubr.f32.mxu0 0.0
      %4194 = vmatmul.mubr.f32.gmra.mxu0 %v4096
      %v4195 = vpop.f32.mrf.mxu0
      %v4196 = vadd.f32 %v4078, %v4195
      %v4197 = vpop.f32.mrf.mxu0
      %4198 = vmatprep.mubr.f32.mxu0 0.0
      %4199 = vmatmul.mubr.f32.gmra.mxu0 %v4099
      %v4200 = vpop.f32.mrf.mxu0
      %v4201 = vadd.f32 %v4078, %v4200
      %v4202 = vpop.f32.mrf.mxu0
      %4203 = vmatprep.mubr.f32.mxu0 0.0
      %4204 = vmatmul.mubr.f32.gmra.mxu0 %v4102
      %v4205 = vpop.f32.mrf.mxu0
      %v4206 = vadd.f32 %v4078, %v4205
      %v4207 = vpop.f32.mrf.mxu0
      %4208 = vdwg.mxu0
      %v4209 = vadd.f32 %v441, %v4171
      %v4210 = vadd.f32 %v442, %v4176
      %v4211 = vadd.f32 %v443, %v4181
      %v4212 = vadd.f32 %v444, %v4186
      %v4213 = vadd.f32 %v445, %v4191
      %v4214 = vadd.f32 %v446, %v4196
      %v4215 = vadd.f32 %v447, %v4201
      %v4216 = vadd.f32 %v448, %v4206
      %v4217 = vld [vmem:[%s9] sm:$0xff]
      %v4218 = vld [vmem:[%s9 + $0x8] sm:$0xff]
      %v4219 = vld [vmem:[%s9 + $0x10] sm:$0xff]
      %v4220 = vld [vmem:[%s9 + $0x18] sm:$0xff]
      %v4221 = vld [vmem:[%s10] sm:$0x1]
      %v4223 = vlaneseq
      %v4224 = vshrl.u32 %v4223, 7
      %v4225 = vsub.s32 0, %v4224
      %v4226 = vrot.slane %v4221, %v4225
      %v4229 = vsel %vm460, %v4209, 0
      %v4232 = vsel %vm460, %v4210, 0
      %v4235 = vsel %vm460, %v4211, 0
      %v4238 = vsel %vm460, %v4212, 0
      %v4241 = vsel %vm460, %v4213, 0
      %v4244 = vsel %vm460, %v4214, 0
      %v4247 = vsel %vm460, %v4215, 0
      %v4250 = vsel %vm460, %v4216, 0
      %4252 = vmatprep.subr.mxu0 0.0
      %4253 = vmatpush1.msra.mxu0 0.0
      %4254 = vmatprep.subr.mxu0 0.0
      %4255 = vmatpush1.msra.mxu0 0.0
      %4256 = vmatprep.subr.mxu0 0.0
      %4257 = vmatpush1.msra.mxu0 0.0
      %4258 = vmatprep.subr.mxu0 0.0
      %4259 = vmatpush1.msra.mxu0 0.0
      %4260 = vmatprep.subr.mxu0 0.0
      %4261 = vmatpush1.msra.mxu0 0.0
      %4262 = vmatprep.subr.mxu0 0.0
      %4263 = vmatpush1.msra.mxu0 0.0
      %4264 = vmatprep.subr.mxu0 0.0
      %4265 = vmatpush1.msra.mxu0 0.0
      %4266 = vmatprep.subr.mxu0 0.0
      %4267 = vmatpush1.msra.mxu0 0.0
      %4268 = vmatprep.subr.mxu0 0.0
      %4269 = vmatpush1.msra.mxu0 0.0
      %4270 = vmatprep.subr.mxu0 0.0
      %4271 = vmatpush1.msra.mxu0 0.0
      %4272 = vmatprep.subr.mxu0 0.0
      %4273 = vmatpush1.msra.mxu0 0.0
      %4274 = vmatprep.subr.mxu0 0.0
      %4275 = vmatpush1.msra.mxu0 0.0
      %4276 = vmatprep.subr.mxu0 0.0
      %4277 = vmatpush1.msra.mxu0 %v4220
      %4278 = vmatprep.subr.mxu0 0.0
      %4279 = vmatpush1.msra.mxu0 %v4219
      %4280 = vmatprep.subr.mxu0 0.0
      %4281 = vmatpush1.msra.mxu0 %v4218
      %4282 = vmatprep.subr.mxu0 0.0
      %4283 = vmatpush1.msra.mxu0 %v4217
      %4284 = vmatprep.subr.mxu0 0.0
      %4285 = vmatpush2.msra.mxu0 0.0
      %4286 = vmatprep.subr.mxu0 0.0
      %4287 = vmatpush2.msra.mxu0 0.0
      %4288 = vmatprep.subr.mxu0 0.0
      %4289 = vmatpush2.msra.mxu0 0.0
      %4290 = vmatprep.subr.mxu0 0.0
      %4291 = vmatpush2.msra.mxu0 0.0
      %4292 = vmatprep.subr.mxu0 0.0
      %4293 = vmatpush2.msra.mxu0 0.0
      %4294 = vmatprep.subr.mxu0 0.0
      %4295 = vmatpush2.msra.mxu0 0.0
      %4296 = vmatprep.subr.mxu0 0.0
      %4297 = vmatpush2.msra.mxu0 0.0
      %4298 = vmatprep.subr.mxu0 0.0
      %4299 = vmatpush2.msra.mxu0 0.0
      %4300 = vmatprep.subr.mxu0 0.0
      %4301 = vmatpush2.msra.mxu0 0.0
      %4302 = vmatprep.subr.mxu0 0.0
      %4303 = vmatpush2.msra.mxu0 0.0
      %4304 = vmatprep.subr.mxu0 0.0
      %4305 = vmatpush2.msra.mxu0 0.0
      %4306 = vmatprep.subr.mxu0 0.0
      %4307 = vmatpush2.msra.mxu0 0.0
      %4308 = vmatprep.subr.mxu0 0.0
      %4309 = vmatpush2.msra.mxu0 0.0
      %4310 = vmatprep.subr.mxu0 0.0
      %4311 = vmatpush2.msra.mxu0 0.0
      %4312 = vmatprep.subr.mxu0 0.0
      %4313 = vmatpush2.msra.mxu0 0.0
      %4314 = vmatprep.subr.mxu0 0.0
      %4315 = vmatpush2.msra.mxu0 0.0
      %4316 = vmatprep.mubr.f32.mxu0 0.0
      %4317 = vmatmul.mubr.f32.gmra.mxu0 %v4229
      %v4318 = vpop.f32.mrf.mxu0
      %v4319 = vadd.f32 %v4226, %v4318
      %v4320 = vpop.f32.mrf.mxu0
      %4321 = vmatprep.mubr.f32.mxu0 0.0
      %4322 = vmatmul.mubr.f32.gmra.mxu0 %v4232
      %v4323 = vpop.f32.mrf.mxu0
      %v4324 = vadd.f32 %v4226, %v4323
      %v4325 = vpop.f32.mrf.mxu0
      %4326 = vmatprep.mubr.f32.mxu0 0.0
      %4327 = vmatmul.mubr.f32.gmra.mxu0 %v4235
      %v4328 = vpop.f32.mrf.mxu0
      %v4329 = vadd.f32 %v4226, %v4328
      %v4330 = vpop.f32.mrf.mxu0
      %4331 = vmatprep.mubr.f32.mxu0 0.0
      %4332 = vmatmul.mubr.f32.gmra.mxu0 %v4238
      %v4333 = vpop.f32.mrf.mxu0
      %v4334 = vadd.f32 %v4226, %v4333
      %v4335 = vpop.f32.mrf.mxu0
      %4336 = vmatprep.mubr.f32.mxu0 0.0
      %4337 = vmatmul.mubr.f32.gmra.mxu0 %v4241
      %v4338 = vpop.f32.mrf.mxu0
      %v4339 = vadd.f32 %v4226, %v4338
      %v4340 = vpop.f32.mrf.mxu0
      %4341 = vmatprep.mubr.f32.mxu0 0.0
      %4342 = vmatmul.mubr.f32.gmra.mxu0 %v4244
      %v4343 = vpop.f32.mrf.mxu0
      %v4344 = vadd.f32 %v4226, %v4343
      %v4345 = vpop.f32.mrf.mxu0
      %4346 = vmatprep.mubr.f32.mxu0 0.0
      %4347 = vmatmul.mubr.f32.gmra.mxu0 %v4247
      %v4348 = vpop.f32.mrf.mxu0
      %v4349 = vadd.f32 %v4226, %v4348
      %v4350 = vpop.f32.mrf.mxu0
      %4351 = vmatprep.mubr.f32.mxu0 0.0
      %4352 = vmatmul.mubr.f32.gmra.mxu0 %v4250
      %v4353 = vpop.f32.mrf.mxu0
      %v4354 = vadd.f32 %v4226, %v4353
      %v4355 = vpop.f32.mrf.mxu0
      %4356 = vdwg.mxu0
      %v4357 = vmul.f32 %v4319, 0.5
      %v4358 = vmul.f32 %v4324, 0.5
      %v4359 = vmul.f32 %v4329, 0.5
      %v4360 = vmul.f32 %v4334, 0.5
      %v4361 = vmul.f32 %v4339, 0.5
      %v4362 = vmul.f32 %v4344, 0.5
      %v4363 = vmul.f32 %v4349, 0.5
      %v4364 = vmul.f32 %v4354, 0.5
      %v4365 = vmul.f32 %v4319, 0.044715
      %v4366 = vmul.f32 %v4324, 0.044715
      %v4367 = vmul.f32 %v4329, 0.044715
      %v4368 = vmul.f32 %v4334, 0.044715
      %v4369 = vmul.f32 %v4339, 0.044715
      %v4370 = vmul.f32 %v4344, 0.044715
      %v4371 = vmul.f32 %v4349, 0.044715
      %v4372 = vmul.f32 %v4354, 0.044715
      %v4373 = vmul.f32 %v4365, %v4319
      %v4374 = vmul.f32 %v4366, %v4324
      %v4375 = vmul.f32 %v4367, %v4329
      %v4376 = vmul.f32 %v4368, %v4334
      %v4377 = vmul.f32 %v4369, %v4339
      %v4378 = vmul.f32 %v4370, %v4344
      %v4379 = vmul.f32 %v4371, %v4349
      %v4380 = vmul.f32 %v4372, %v4354
      %v4381 = vmul.f32 %v4373, %v4319
      %v4382 = vmul.f32 %v4374, %v4324
      %v4383 = vmul.f32 %v4375, %v4329
      %v4384 = vmul.f32 %v4376, %v4334
      %v4385 = vmul.f32 %v4377, %v4339
      %v4386 = vmul.f32 %v4378, %v4344
      %v4387 = vmul.f32 %v4379, %v4349
      %v4388 = vmul.f32 %v4380, %v4354
      %v4389 = vadd.f32 %v4319, %v4381
      %v4390 = vadd.f32 %v4324, %v4382
      %v4391 = vadd.f32 %v4329, %v4383
      %v4392 = vadd.f32 %v4334, %v4384
      %v4393 = vadd.f32 %v4339, %v4385
      %v4394 = vadd.f32 %v4344, %v4386
      %v4395 = vadd.f32 %v4349, %v4387
      %v4396 = vadd.f32 %v4354, %v4388
      %v4397 = vmul.f32 %v4389, 0.7978846
      %v4398 = vmul.f32 %v4390, 0.7978846
      %v4399 = vmul.f32 %v4391, 0.7978846
      %v4400 = vmul.f32 %v4392, 0.7978846
      %v4401 = vmul.f32 %v4393, 0.7978846
      %v4402 = vmul.f32 %v4394, 0.7978846
      %v4403 = vmul.f32 %v4395, 0.7978846
      %v4404 = vmul.f32 %v4396, 0.7978846
      %v4405 = vtanh.pop %v4397
      %v4406 = vtanh.pop %v4398
      %v4407 = vtanh.pop %v4399
      %v4408 = vtanh.pop %v4400
      %v4409 = vtanh.pop %v4401
      %v4410 = vtanh.pop %v4402
      %v4411 = vtanh.pop %v4403
      %v4412 = vtanh.pop %v4404
      %v4413 = vadd.f32 %v4405, 1.0
      %v4414 = vadd.f32 %v4406, 1.0
      %v4415 = vadd.f32 %v4407, 1.0
      %v4416 = vadd.f32 %v4408, 1.0
      %v4417 = vadd.f32 %v4409, 1.0
      %v4418 = vadd.f32 %v4410, 1.0
      %v4419 = vadd.f32 %v4411, 1.0
      %v4420 = vadd.f32 %v4412, 1.0
      %v4421 = vmul.f32 %v4357, %v4413
      %v4422 = vmul.f32 %v4358, %v4414
      %v4423 = vmul.f32 %v4359, %v4415
      %v4424 = vmul.f32 %v4360, %v4416
      %v4425 = vmul.f32 %v4361, %v4417
      %v4426 = vmul.f32 %v4362, %v4418
      %v4427 = vmul.f32 %v4363, %v4419
      %v4428 = vmul.f32 %v4364, %v4420
      %v4429 = vld [vmem:[%s11] sm:$0xff]
      %v4430 = vld [vmem:[%s11 + $0x8] sm:$0xff]
      %v4431 = vld [vmem:[%s11 + $0x10] sm:$0xff]
      %v4432 = vld [vmem:[%s11 + $0x18] sm:$0xff]
      %v4433 = vld [vmem:[%s11 + $0x20] sm:$0xff]
      %v4434 = vld [vmem:[%s11 + $0x28] sm:$0xff]
      %v4435 = vld [vmem:[%s11 + $0x30] sm:$0xff]
      %v4436 = vld [vmem:[%s11 + $0x38] sm:$0xff]
      %v4437 = vld [vmem:[%s11 + $0x40] sm:$0xff]
      %v4438 = vld [vmem:[%s11 + $0x48] sm:$0xff]
      %v4439 = vld [vmem:[%s11 + $0x50] sm:$0xff]
      %v4440 = vld [vmem:[%s11 + $0x58] sm:$0xff]
      %v4441 = vld [vmem:[%s11 + $0x60] sm:$0xff]
      %v4442 = vld [vmem:[%s11 + $0x68] sm:$0xff]
      %v4443 = vld [vmem:[%s11 + $0x70] sm:$0xff]
      %v4444 = vld [vmem:[%s11 + $0x78] sm:$0xff]
      %v4445 = vld [vmem:[%s12] sm:$0x1]
      %v4447 = vlaneseq
      %v4448 = vshrl.u32 %v4447, 7
      %v4449 = vsub.s32 0, %v4448
      %v4450 = vrot.slane %v4445, %v4449
      %4452 = vmatprep.subr.mxu0 0.0
      %4453 = vmatpush1.msra.mxu0 %v4444
      %4454 = vmatprep.subr.mxu0 0.0
      %4455 = vmatpush1.msra.mxu0 %v4443
      %4456 = vmatprep.subr.mxu0 0.0
      %4457 = vmatpush1.msra.mxu0 %v4442
      %4458 = vmatprep.subr.mxu0 0.0
      %4459 = vmatpush1.msra.mxu0 %v4441
      %4460 = vmatprep.subr.mxu0 0.0
      %4461 = vmatpush1.msra.mxu0 %v4440
      %4462 = vmatprep.subr.mxu0 0.0
      %4463 = vmatpush1.msra.mxu0 %v4439
      %4464 = vmatprep.subr.mxu0 0.0
      %4465 = vmatpush1.msra.mxu0 %v4438
      %4466 = vmatprep.subr.mxu0 0.0
      %4467 = vmatpush1.msra.mxu0 %v4437
      %4468 = vmatprep.subr.mxu0 0.0
      %4469 = vmatpush1.msra.mxu0 %v4436
      %4470 = vmatprep.subr.mxu0 0.0
      %4471 = vmatpush1.msra.mxu0 %v4435
      %4472 = vmatprep.subr.mxu0 0.0
      %4473 = vmatpush1.msra.mxu0 %v4434
      %4474 = vmatprep.subr.mxu0 0.0
      %4475 = vmatpush1.msra.mxu0 %v4433
      %4476 = vmatprep.subr.mxu0 0.0
      %4477 = vmatpush1.msra.mxu0 %v4432
      %4478 = vmatprep.subr.mxu0 0.0
      %4479 = vmatpush1.msra.mxu0 %v4431
      %4480 = vmatprep.subr.mxu0 0.0
      %4481 = vmatpush1.msra.mxu0 %v4430
      %4482 = vmatprep.subr.mxu0 0.0
      %4483 = vmatpush1.msra.mxu0 %v4429
      %4484 = vmatprep.subr.mxu0 0.0
      %4485 = vmatpush2.msra.mxu0 0.0
      %4486 = vmatprep.subr.mxu0 0.0
      %4487 = vmatpush2.msra.mxu0 0.0
      %4488 = vmatprep.subr.mxu0 0.0
      %4489 = vmatpush2.msra.mxu0 0.0
      %4490 = vmatprep.subr.mxu0 0.0
      %4491 = vmatpush2.msra.mxu0 0.0
      %4492 = vmatprep.subr.mxu0 0.0
      %4493 = vmatpush2.msra.mxu0 0.0
      %4494 = vmatprep.subr.mxu0 0.0
      %4495 = vmatpush2.msra.mxu0 0.0
      %4496 = vmatprep.subr.mxu0 0.0
      %4497 = vmatpush2.msra.mxu0 0.0
      %4498 = vmatprep.subr.mxu0 0.0
      %4499 = vmatpush2.msra.mxu0 0.0
      %4500 = vmatprep.subr.mxu0 0.0
      %4501 = vmatpush2.msra.mxu0 0.0
      %4502 = vmatprep.subr.mxu0 0.0
      %4503 = vmatpush2.msra.mxu0 0.0
      %4504 = vmatprep.subr.mxu0 0.0
      %4505 = vmatpush2.msra.mxu0 0.0
      %4506 = vmatprep.subr.mxu0 0.0
      %4507 = vmatpush2.msra.mxu0 0.0
      %4508 = vmatprep.subr.mxu0 0.0
      %4509 = vmatpush2.msra.mxu0 0.0
      %4510 = vmatprep.subr.mxu0 0.0
      %4511 = vmatpush2.msra.mxu0 0.0
      %4512 = vmatprep.subr.mxu0 0.0
      %4513 = vmatpush2.msra.mxu0 0.0
      %4514 = vmatprep.subr.mxu0 0.0
      %4515 = vmatpush2.msra.mxu0 0.0
      %4516 = vmatprep.mubr.f32.mxu0 0.0
      %4517 = vmatmul.mubr.f32.gmra.mxu0 %v4421
      %v4518 = vpop.f32.mrf.mxu0
      %v4519 = vadd.f32 %v4450, %v4518
      %v4520 = vpop.f32.mrf.mxu0
      %4521 = vmatprep.mubr.f32.mxu0 0.0
      %4522 = vmatmul.mubr.f32.gmra.mxu0 %v4422
      %v4523 = vpop.f32.mrf.mxu0
      %v4524 = vadd.f32 %v4450, %v4523
      %v4525 = vpop.f32.mrf.mxu0
      %4526 = vmatprep.mubr.f32.mxu0 0.0
      %4527 = vmatmul.mubr.f32.gmra.mxu0 %v4423
      %v4528 = vpop.f32.mrf.mxu0
      %v4529 = vadd.f32 %v4450, %v4528
      %v4530 = vpop.f32.mrf.mxu0
      %4531 = vmatprep.mubr.f32.mxu0 0.0
      %4532 = vmatmul.mubr.f32.gmra.mxu0 %v4424
      %v4533 = vpop.f32.mrf.mxu0
      %v4534 = vadd.f32 %v4450, %v4533
      %v4535 = vpop.f32.mrf.mxu0
      %4536 = vmatprep.mubr.f32.mxu0 0.0
      %4537 = vmatmul.mubr.f32.gmra.mxu0 %v4425
      %v4538 = vpop.f32.mrf.mxu0
      %v4539 = vadd.f32 %v4450, %v4538
      %v4540 = vpop.f32.mrf.mxu0
      %4541 = vmatprep.mubr.f32.mxu0 0.0
      %4542 = vmatmul.mubr.f32.gmra.mxu0 %v4426
      %v4543 = vpop.f32.mrf.mxu0
      %v4544 = vadd.f32 %v4450, %v4543
      %v4545 = vpop.f32.mrf.mxu0
      %4546 = vmatprep.mubr.f32.mxu0 0.0
      %4547 = vmatmul.mubr.f32.gmra.mxu0 %v4427
      %v4548 = vpop.f32.mrf.mxu0
      %v4549 = vadd.f32 %v4450, %v4548
      %v4550 = vpop.f32.mrf.mxu0
      %4551 = vmatprep.mubr.f32.mxu0 0.0
      %4552 = vmatmul.mubr.f32.gmra.mxu0 %v4428
      %v4553 = vpop.f32.mrf.mxu0
      %v4554 = vadd.f32 %v4450, %v4553
      %v4555 = vpop.f32.mrf.mxu0
      %4556 = vdwg.mxu0
      %v4557 = vadd.f32 %v4209, %v4519
      %v4558 = vadd.f32 %v4210, %v4524
      %v4559 = vadd.f32 %v4211, %v4529
      %v4560 = vadd.f32 %v4212, %v4534
      %v4561 = vadd.f32 %v4213, %v4539
      %v4562 = vadd.f32 %v4214, %v4544
      %v4563 = vadd.f32 %v4215, %v4549
      %v4564 = vadd.f32 %v4216, %v4554
      %4565 = vst.msk [vmem:[%s440] sm:$0xff] %vm460, %v4557
      %4566 = vst.msk [vmem:[%s440 + $0x8] sm:$0xff] %vm460, %v4558
      %4567 = vst.msk [vmem:[%s440 + $0x10] sm:$0xff] %vm460, %v4559
      %4568 = vst.msk [vmem:[%s440 + $0x18] sm:$0xff] %vm460, %v4560
      %4569 = vst.msk [vmem:[%s440 + $0x20] sm:$0xff] %vm460, %v4561
      %4570 = vst.msk [vmem:[%s440 + $0x28] sm:$0xff] %vm460, %v4562
      %4571 = vst.msk [vmem:[%s440 + $0x30] sm:$0xff] %vm460, %v4563
      %4572 = vst.msk [vmem:[%s440 + $0x38] sm:$0xff] %vm460, %v4564
      %p4573 = scmp.lt.s32.totalorder %s24, 1
      %s4574 = scalar_select %p4573, %s24, 1
      %s4575 = smul.addr %s4574, 8
      %s4576 = smul.addr %s4575, 8
      %s4577 = scalar_lea.vmem %s13, %s4576
      // Predicated region
      $region73: #{tpu_custom_call.1} parent=71 // pred_check
        %p4578 = pneg %p320
      $region74: #{tpu_custom_call.1} parent=71 // pred_check_branch
        %4580 = sbr.rel (%p4578) target = $region76
      $region75: #{tpu_custom_call.1} parent=71 // pred_region
        _
      $region76: #{tpu_custom_call.1} parent=71 // pred_fallthru
        _
    $region72: #{tpu_custom_call.1} parent=5 // pred_fallthru
      _
    %p4581 = scmp.le.s32.totalorder 2, %s19
    // Predicated region
    $region77: #{tpu_custom_call.1} parent=5 // pred_check
      %p4582 = pneg %p4581
    $region78: #{tpu_custom_call.1} parent=5 // pred_check_branch
      %4584 = sbr.rel (%p4582) target = $region80
    $region79: #{tpu_custom_call.1} parent=5 // pred_region
      %s4585 = ssub.s32 %s19, 2
      // Predicated region
      $region81: #{tpu_custom_call.1} parent=79 // pred_check
        %p4586 = pneg %p326
      $region82: #{tpu_custom_call.1} parent=79 // pred_check_branch
        %4588 = sbr.rel (%p4586) target = $region84
      $region83: #{tpu_custom_call.1} parent=79 // pred_region
        %p4589 = scmp.lt.s32.totalorder %s25, 1
        %s4590 = scalar_select %p4589, %s25, 1
        %s4591 = smul.addr %s4590, 8
        %s4592 = smul.addr %s4591, 8
        %s4593 = scalar_lea.vmem %s13, %s4592
      $region84: #{tpu_custom_call.1} parent=79 // pred_fallthru
        _
    $region80: #{tpu_custom_call.1} parent=5 // pred_fallthru
      _
  $region6: #{tpu_custom_call.1} parent=0 // loop_footer
    %s23 = sadd.s32 1, %s19
  $region7: #{tpu_custom_call.1} parent=0 // loop_footer_branch
    %18 = sbr.rel target = $region3
  $region8: #{tpu_custom_call.1} parent=0 // loop_exit
    _

</llo_original>
